<compile_context>
chip_gen: v6e
topology: v6e:2x2x1
jax: 0.10.0
libtpu: 0.0.40
codegen_flags: <defaults>
</compile_context>

<pallas_src>
import functools

import numpy as np

import jax
import jax.numpy as jnp
from jax import lax
from jax.experimental import pallas as pl
from jax.experimental.pallas import tpu as pltpu


# ----------------------------------------------------------------------------
# Host-side helper: 0/1 gather matrices for 2x2 max pooling on the flat layout.
# p[j] = max_k (S[k] @ y)[j] with S[k, j, (2*hj+dh)*W + (2*wj+dw)] = 1.
# ----------------------------------------------------------------------------
def _pool_onehots(h, w):
    ho, wo = h // 2, w // 2
    mats = np.zeros((4, ho * wo, h * w), np.float32)
    for k, (dh, dw) in enumerate(((0, 0), (0, 1), (1, 0), (1, 1))):
        for hj in range(ho):
            for wj in range(wo):
                mats[k, hj * wo + wj, (2 * hj + dh) * w + (2 * wj + dw)] = 1.0
    return jnp.asarray(mats)


# ----------------------------------------------------------------------------
# In-kernel conv3x3(+bias)+ReLU from a zero-padded flat VMEM buffer.
# pad_ref holds [W+1 zeros, x_flat (H*W rows), W+1 zeros]; the 9 taps are
# contiguous static slices; only the left/right column wrap needs masking.
# ----------------------------------------------------------------------------
def _conv3x3_from_padded(pad_ref, wmat_ref, bias_ref, hw, w, mask_l, mask_r):
    p0 = w + 1
    taps = []
    for dh in (-1, 0, 1):
        for dw in (-1, 0, 1):
            o = dh * w + dw
            t = pad_ref[p0 + o:p0 + o + hw, :]
            if dw == -1:
                t = jnp.where(mask_l, t, 0.0)
            elif dw == 1:
                t = jnp.where(mask_r, t, 0.0)
            taps.append(t)
    a = jnp.concatenate(taps, axis=-1)                     # (HW, 9*C)
    y = jnp.dot(a, wmat_ref[...], preferred_element_type=jnp.float32)
    return jnp.maximum(y + bias_ref[...], 0.0)


# ----------------------------------------------------------------------------
# Fused Block kernel: conv1+ReLU -> conv2+ReLU -> 2x2 max-pool.
# Outputs both the un-pooled conv2 activation (for block_outputs) and the
# pooled activation (input of the next block).
# ----------------------------------------------------------------------------
def _block_kernel(x_ref, w1_ref, b1_ref, w2_ref, b2_ref, s_ref,
                  y_ref, p_ref, pad1_ref, pad2_ref, *, H, W):
    hw = H * W
    pad = W + 1

    wi = lax.broadcasted_iota(jnp.int32, (hw, 1), 0) % W
    mask_l = wi >= 1          # tap dw = -1 invalid at w == 0
    mask_r = wi <= W - 2      # tap dw = +1 invalid at w == W-1

    # conv1 + ReLU (input tile resident once; taps built in VMEM, no im2col).
    pad1_ref[...] = jnp.zeros_like(pad1_ref)
    pad1_ref[pad:pad + hw, :] = x_ref[0]
    y1 = _conv3x3_from_padded(pad1_ref, w1_ref, b1_ref, hw, W, mask_l, mask_r)

    # conv2 + ReLU (intermediate y1 never leaves VMEM).
    pad2_ref[...] = jnp.zeros_like(pad2_ref)
    pad2_ref[pad:pad + hw, :] = y1.astype(pad2_ref.dtype)
    y2 = _conv3x3_from_padded(pad2_ref, w2_ref, b2_ref, hw, W, mask_l, mask_r)
    y_ref[0] = y2.astype(y_ref.dtype)

    # Fused 2x2 max-pool: 4 exact 0/1 gather matmuls + elementwise max.
    pool = jnp.dot(s_ref[0], y2, preferred_element_type=jnp.float32)
    for k in range(1, 4):
        pool = jnp.maximum(
            pool, jnp.dot(s_ref[k], y2, preferred_element_type=jnp.float32))
    p_ref[0] = pool.astype(p_ref.dtype)


def block_forward(x_flat, w1, b1, w2, b2, h, w):
    """x_flat: [N, H*W, Cin]; returns (conv2 output [N,H*W,Cout], pooled [N,(H//2)*(W//2),Cout])."""
    n, hw, cin = x_flat.shape
    cout = w1.shape[-1]
    hwo = (h // 2) * (w // 2)
    s = _pool_onehots(h, w)
    w1m = w1.reshape(9 * cin, cout)
    w2m = w2.reshape(9 * cout, cout)
    kernel = functools.partial(_block_kernel, H=h, W=w)

    y, p = pl.pallas_call(
        kernel,
        out_shape=(jax.ShapeDtypeStruct((n, hw, cout), x_flat.dtype),
                   jax.ShapeDtypeStruct((n, hwo, cout), x_flat.dtype)),
        grid_spec=pltpu.PrefetchScalarGridSpec(
            num_scalar_prefetch=0,
            grid=(n,),
            in_specs=[
                pl.BlockSpec((1, hw, cin), lambda i: (i, 0, 0)),
                pl.BlockSpec((9 * cin, cout), lambda i: (0, 0)),      # resident
                pl.BlockSpec((1, cout), lambda i: (0, 0)),            # resident
                pl.BlockSpec((9 * cout, cout), lambda i: (0, 0)),     # resident
                pl.BlockSpec((1, cout), lambda i: (0, 0)),            # resident
                pl.BlockSpec((4, hwo, hw), lambda i: (0, 0, 0)),      # resident
            ],
            out_specs=[
                pl.BlockSpec((1, hw, cout), lambda i: (i, 0, 0)),
                pl.BlockSpec((1, hwo, cout), lambda i: (i, 0, 0)),
            ],
            scratch_shapes=[
                pltpu.VMEM((hw + 2 * (w + 1), cin), jnp.float32),
                pltpu.VMEM((hw + 2 * (w + 1), cout), jnp.float32),
            ]),
        compiler_params=pltpu.CompilerParams(
            dimension_semantics=("parallel",)),
    )(x_flat, w1m, b1.reshape(1, cout), w2m, b2.reshape(1, cout), s)
    return y, p


# ----------------------------------------------------------------------------
# Standalone MaxPool2d(2) (used only for the initial pool before block 1).
# Takes the full flat NHWC tensor (single DMA per image, no strided slices
# materialized in HBM) and pools with the same exact one-hot gather matmuls.
# ----------------------------------------------------------------------------
def _maxpool_kernel(x_ref, s_ref, o_ref):
    x = x_ref[0]
    p = jnp.dot(s_ref[0], x, preferred_element_type=jnp.float32)
    for k in range(1, 4):
        p = jnp.maximum(p, jnp.dot(s_ref[k], x,
                                   preferred_element_type=jnp.float32))
    o_ref[0] = p.astype(o_ref.dtype)


def maxpool2x2_flat(x_flat, h, w):
    n, hw, c = x_flat.shape
    hwo = (h // 2) * (w // 2)
    s = _pool_onehots(h, w)
    return pl.pallas_call(
        _maxpool_kernel,
        out_shape=jax.ShapeDtypeStruct((n, hwo, c), x_flat.dtype),
        grid_spec=pltpu.PrefetchScalarGridSpec(
            num_scalar_prefetch=0,
            grid=(n,),
            in_specs=[pl.BlockSpec((1, hw, c), lambda i: (i, 0, 0)),
                      pl.BlockSpec((4, hwo, hw), lambda i: (0, 0, 0))],
            out_specs=pl.BlockSpec((1, hwo, c), lambda i: (i, 0, 0))),
        compiler_params=pltpu.CompilerParams(
            dimension_semantics=("parallel",)),
    )(x_flat, s)


# ----------------------------------------------------------------------------
# Encoder forward (matches the PyTorch module semantics).
# ----------------------------------------------------------------------------
def encoder_forward(x_nchw, params):
    """params: list of (w1[9,Cin,Cout], b1[Cout], w2[9,Cout,Cout], b2[Cout])."""
    n, c, h, w = x_nchw.shape
    block_outputs = [x_nchw]                                # kept in NCHW
    xf = jnp.transpose(x_nchw, (0, 2, 3, 1)).reshape(n, h * w, c)
    xf = maxpool2x2_flat(xf, h, w)
    h, w = h // 2, w // 2
    cout = c
    for (w1, b1, w2, b2) in params:
        cout = w1.shape[-1]
        y, p = block_forward(xf, w1, b1, w2, b2, h, w)      # fused conv+conv+pool
        block_outputs.append(
            jnp.transpose(y.reshape(n, h, w, cout), (0, 3, 1, 2)))
        xf = p
        h, w = h // 2, w // 2
    out = jnp.transpose(xf.reshape(n, h, w, cout), (0, 3, 1, 2))
    # TODO(synk): the PyTorch forward print()s block shapes; skipped (host-side side effect only).
    return out, block_outputs


# ----------------------------------------------------------------------------
# Pure-JAX reference (for a correctness assert only).
# ----------------------------------------------------------------------------
def _ref_forward(x_nchw, params):
    def conv(x, w9, b):
        w_hwio = w9.reshape(3, 3, w9.shape[1], w9.shape[2])
        y = lax.conv_general_dilated(
            x, w_hwio, window_strides=(1, 1), padding="SAME",
            dimension_numbers=("NHWC", "HWIO", "NHWC"))
        return jnp.maximum(y + b, 0.0)

    def pool(x):
        return lax.reduce_window(x, -jnp.inf, lax.max,
                                 (1, 2, 2, 1), (1, 2, 2, 1), "VALID")

    x = jnp.transpose(x_nchw, (0, 2, 3, 1))
    outs = [x_nchw]
    x = pool(x)
    for (w1, b1, w2, b2) in params:
        x = conv(conv(x, w1, b1), w2, b2)
        outs.append(jnp.transpose(x, (0, 3, 1, 2)))
        x = pool(x)
    return jnp.transpose(x, (0, 3, 1, 2)), outs


if __name__ == "__main__":
    key = jax.random.PRNGKey(0)
    channels = (4, 8, 16)                                   # Encoder(channels=(4, 8, 16))
    N, H, W = 2, 16, 16
    key, kx = jax.random.split(key)
    x = jax.random.normal(kx, (N, channels[0], H, W), jnp.float32)  # NCHW input

    # Deterministic parameters (Conv2d weight [Cout,Cin,3,3] -> here [9,Cin,Cout]).
    params = []
    for i in range(len(channels) - 1):
        cin, cout = channels[i], channels[i + 1]
        key, k1, k2, k3, k4 = jax.random.split(key, 5)
        w1 = 0.1 * jax.random.normal(k1, (9, cin, cout), jnp.float32)
        b1 = 0.1 * jax.random.normal(k2, (cout,), jnp.float32)
        w2 = 0.1 * jax.random.normal(k3, (9, cout, cout), jnp.float32)
        b2 = 0.1 * jax.random.normal(k4, (cout,), jnp.float32)
        params.append((w1, b1, w2, b2))

    fwd = jax.jit(encoder_forward)
    out, block_outputs = fwd(x, params)
    out = jax.block_until_ready(out)
    block_outputs = [jax.block_until_ready(b) for b in block_outputs]

    # Shape checks (mirrors what the PyTorch forward would print).
    assert out.shape == (N, channels[-1], H // 2 ** len(channels), W // 2 ** len(channels))
    assert block_outputs[0].shape == (N, channels[0], H, W)
    for i in range(1, len(channels)):
        assert block_outputs[i].shape == (N, channels[i], H // 2 ** i, W // 2 ** i)

    # Numerical check against a pure-JAX reference.
    ref_out, ref_blocks = _ref_forward(x, params)
    assert jnp.allclose(out, ref_out, atol=1e-3, rtol=1e-3)
    for a, b in zip(block_outputs, ref_blocks):
        assert jnp.allclose(a, b, atol=1e-3, rtol=1e-3)

    print("KERNEL_OK")
</pallas_src>

<mosaic_0001>
module attributes {stable_mosaic.version = 11 : i64} {
  func.func @_maxpool_kernel(%arg0: i32, %arg1: memref<1x256x4xf32, #tpu.memory_space<vmem>>, %arg2: memref<4x64x256xf32, #tpu.memory_space<vmem>>, %arg3: memref<1x64x4xf32, #tpu.memory_space<vmem>>) attributes {dimension_semantics = [#tpu.dimension_semantics<parallel>], iteration_bounds = array<i64: 2>, scalar_prefetch = 0 : i64, scratch_operands = 0 : i64, tpu.core_type = #tpu.core_type<tc>, window_params = [{transform_indices = @transform_0, window_bounds = array<i64: 1, 256, 4>}, {pipeline_mode = #tpu.pipeline_mode<synchronous>, transform_indices = @transform_1, window_bounds = array<i64: 4, 64, 256>}, {transform_indices = @transform_2, window_bounds = array<i64: 1, 64, 4>}]} {
    %c0 = arith.constant 0 : index
    %c0_0 = arith.constant 0 : index
    %c0_1 = arith.constant 0 : index
    %0 = vector.load %arg1[%c0, %c0_0, %c0_1] : memref<1x256x4xf32, #tpu.memory_space<vmem>>, vector<1x256x4xf32>
    %1 = vector.shape_cast %0 : vector<1x256x4xf32> to vector<256x4xf32>
    %c0_2 = arith.constant 0 : index
    %c0_3 = arith.constant 0 : index
    %c0_4 = arith.constant 0 : index
    %2 = vector.load %arg2[%c0_2, %c0_3, %c0_4] : memref<4x64x256xf32, #tpu.memory_space<vmem>>, vector<1x64x256xf32>
    %3 = vector.shape_cast %2 : vector<1x64x256xf32> to vector<64x256xf32>
    %cst = arith.constant dense<0.000000e+00> : vector<64x4xf32>
    %4 = tpu.matmul %3, %1, %cst {dimension_numbers = #tpu.dot_dimension_numbers<[1], [0], [0], [1], [0, 0, 1, 1], [], []>} : vector<64x256xf32>, vector<256x4xf32>, vector<64x4xf32> -> vector<64x4xf32>
    %c1 = arith.constant 1 : index
    %c0_5 = arith.constant 0 : index
    %c0_6 = arith.constant 0 : index
    %5 = vector.load %arg2[%c1, %c0_5, %c0_6] : memref<4x64x256xf32, #tpu.memory_space<vmem>>, vector<1x64x256xf32>
    %6 = vector.shape_cast %5 : vector<1x64x256xf32> to vector<64x256xf32>
    %cst_7 = arith.constant dense<0.000000e+00> : vector<64x4xf32>
    %7 = tpu.matmul %6, %1, %cst_7 {dimension_numbers = #tpu.dot_dimension_numbers<[1], [0], [0], [1], [0, 0, 1, 1], [], []>} : vector<64x256xf32>, vector<256x4xf32>, vector<64x4xf32> -> vector<64x4xf32>
    %8 = arith.maximumf %4, %7 : vector<64x4xf32>
    %c2 = arith.constant 2 : index
    %c0_8 = arith.constant 0 : index
    %c0_9 = arith.constant 0 : index
    %9 = vector.load %arg2[%c2, %c0_8, %c0_9] : memref<4x64x256xf32, #tpu.memory_space<vmem>>, vector<1x64x256xf32>
    %10 = vector.shape_cast %9 : vector<1x64x256xf32> to vector<64x256xf32>
    %cst_10 = arith.constant dense<0.000000e+00> : vector<64x4xf32>
    %11 = tpu.matmul %10, %1, %cst_10 {dimension_numbers = #tpu.dot_dimension_numbers<[1], [0], [0], [1], [0, 0, 1, 1], [], []>} : vector<64x256xf32>, vector<256x4xf32>, vector<64x4xf32> -> vector<64x4xf32>
    %12 = arith.maximumf %8, %11 : vector<64x4xf32>
    %c3 = arith.constant 3 : index
    %c0_11 = arith.constant 0 : index
    %c0_12 = arith.constant 0 : index
    %13 = vector.load %arg2[%c3, %c0_11, %c0_12] : memref<4x64x256xf32, #tpu.memory_space<vmem>>, vector<1x64x256xf32>
    %14 = vector.shape_cast %13 : vector<1x64x256xf32> to vector<64x256xf32>
    %cst_13 = arith.constant dense<0.000000e+00> : vector<64x4xf32>
    %15 = tpu.matmul %14, %1, %cst_13 {dimension_numbers = #tpu.dot_dimension_numbers<[1], [0], [0], [1], [0, 0, 1, 1], [], []>} : vector<64x256xf32>, vector<256x4xf32>, vector<64x4xf32> -> vector<64x4xf32>
    %16 = arith.maximumf %12, %15 : vector<64x4xf32>
    %c0_14 = arith.constant 0 : index
    %c0_15 = arith.constant 0 : index
    %c0_16 = arith.constant 0 : index
    %17 = vector.load %arg3[%c0_14, %c0_15, %c0_16] : memref<1x64x4xf32, #tpu.memory_space<vmem>>, vector<1x64x4xf32>
    %18 = vector.shape_cast %17 : vector<1x64x4xf32> to vector<64x4xf32>
    %19 = vector.shape_cast %16 : vector<64x4xf32> to vector<1x64x4xf32>
    tpu.vector_store %arg3[%c0_14, %c0_15, %c0_16], %19 {strides = array<i32>} : memref<1x64x4xf32, #tpu.memory_space<vmem>>, vector<1x64x4xf32>,
    return
  }
  func.func @transform_0(%arg0: i32) -> (i32, i32, i32) {
    %c0_i32 = arith.constant 0 : i32
    %c0_i32_0 = arith.constant 0 : i32
    %c0_i32_1 = arith.constant 0 : i32
    return %arg0, %c0_i32, %c0_i32_0 : i32, i32, i32
  }
  func.func @transform_1(%arg0: i32) -> (i32, i32, i32) {
    %c0_i32 = arith.constant 0 : i32
    %c0_i32_0 = arith.constant 0 : i32
    %c0_i32_1 = arith.constant 0 : i32
    %c0_i32_2 = arith.constant 0 : i32
    return %c0_i32, %c0_i32_0, %c0_i32_1 : i32, i32, i32
  }
  func.func @transform_2(%arg0: i32) -> (i32, i32, i32) {
    %c0_i32 = arith.constant 0 : i32
    %c0_i32_0 = arith.constant 0 : i32
    %c0_i32_1 = arith.constant 0 : i32
    return %arg0, %c0_i32, %c0_i32_0 : i32, i32, i32
  }
}

module attributes {stable_mosaic.version = 11 : i64} {
  func.func @_block_kernel(%arg0: i32, %arg1: memref<1x16x8xf32, #tpu.memory_space<vmem>>, %arg2: memref<72x16xf32, #tpu.memory_space<vmem>>, %arg3: memref<1x16xf32, #tpu.memory_space<vmem>>, %arg4: memref<144x16xf32, #tpu.memory_space<vmem>>, %arg5: memref<1x16xf32, #tpu.memory_space<vmem>>, %arg6: memref<4x4x16xf32, #tpu.memory_space<vmem>>, %arg7: memref<1x16x16xf32, #tpu.memory_space<vmem>>, %arg8: memref<1x4x16xf32, #tpu.memory_space<vmem>>, %arg9: memref<26x8xf32, #tpu.memory_space<vmem>>, %arg10: memref<26x16xf32, #tpu.memory_space<vmem>>) attributes {dimension_semantics = [#tpu.dimension_semantics<parallel>], iteration_bounds = array<i64: 2>, scalar_prefetch = 0 : i64, scratch_operands = 2 : i64, tpu.core_type = #tpu.core_type<tc>, window_params = [{transform_indices = @transform_0, window_bounds = array<i64: 1, 16, 8>}, {pipeline_mode = #tpu.pipeline_mode<synchronous>, transform_indices = @transform_1, window_bounds = array<i64: 72, 16>}, {pipeline_mode = #tpu.pipeline_mode<synchronous>, transform_indices = @transform_2, window_bounds = array<i64: 1, 16>}, {pipeline_mode = #tpu.pipeline_mode<synchronous>, transform_indices = @transform_3, window_bounds = array<i64: 144, 16>}, {pipeline_mode = #tpu.pipeline_mode<synchronous>, transform_indices = @transform_4, window_bounds = array<i64: 1, 16>}, {pipeline_mode = #tpu.pipeline_mode<synchronous>, transform_indices = @transform_5, window_bounds = array<i64: 4, 4, 16>}, {transform_indices = @transform_6, window_bounds = array<i64: 1, 16, 16>}, {transform_indices = @transform_7, window_bounds = array<i64: 1, 4, 16>}]} {
    %0 = tpu.iota {dimensions = array<i32: 0>} : vector<16x1xi32>
    %c4_i32 = arith.constant 4 : i32
    %c0_i32 = arith.constant 0 : i32
    %1 = arith.cmpi eq, %c4_i32, %c0_i32 : i32
    %c1_i32 = arith.constant 1 : i32
    %2 = arith.select %1, %c1_i32, %c4_i32 : i32
    %3 = vector.broadcast %2 : i32 to vector<16x1xi32>
    %4 = arith.remsi %0, %3 : vector<16x1xi32>
    %c0_i32_0 = arith.constant 0 : i32
    %5 = vector.broadcast %c0_i32_0 : i32 to vector<16x1xi32>
    %6 = arith.cmpi ne, %4, %5 : vector<16x1xi32>
    %c0_i32_1 = arith.constant 0 : i32
    %7 = vector.broadcast %c0_i32_1 : i32 to vector<16x1xi32>
    %8 = arith.cmpi slt, %4, %7 : vector<16x1xi32>
    %c0_i32_2 = arith.constant 0 : i32
    %9 = arith.cmpi slt, %2, %c0_i32_2 : i32
    %10 = vector.broadcast %9 : i1 to vector<16x1xi1>
    %11 = vector.broadcast %10 : vector<16x1xi1> to vector<16x1xi1>
    %12 = arith.xori %8, %11 : vector<16x1xi1>
    %13 = arith.andi %12, %6 : vector<16x1xi1>
    %14 = vector.broadcast %2 : i32 to vector<16x1xi32>
    %15 = arith.addi %4, %14 : vector<16x1xi32>
    %16 = arith.select %13, %15, %4 : vector<16x1xi1>, vector<16x1xi32>
    %c1_i32_3 = arith.constant 1 : i32
    %17 = vector.broadcast %c1_i32_3 : i32 to vector<16x1xi32>
    %18 = arith.cmpi sge, %16, %17 : vector<16x1xi32>
    %c2_i32 = arith.constant 2 : i32
    %19 = vector.broadcast %c2_i32 : i32 to vector<16x1xi32>
    %20 = arith.cmpi sle, %16, %19 : vector<16x1xi32>
    %cst = arith.constant 0.000000e+00 : f32
    %21 = vector.broadcast %cst : f32 to vector<26x8xf32>
    %c0 = arith.constant 0 : index
    %c0_4 = arith.constant 0 : index
    %22 = vector.load %arg9[%c0, %c0_4] : memref<26x8xf32, #tpu.memory_space<vmem>>, vector<26x8xf32>
    tpu.vector_store %arg9[%c0, %c0_4], %21 {strides = array<i32>} : memref<26x8xf32, #tpu.memory_space<vmem>>, vector<26x8xf32>,
    %c0_5 = arith.constant 0 : index
    %c0_6 = arith.constant 0 : index
    %c0_7 = arith.constant 0 : index
    %23 = vector.load %arg1[%c0_5, %c0_6, %c0_7] : memref<1x16x8xf32, #tpu.memory_space<vmem>>, vector<1x16x8xf32>
    %24 = vector.shape_cast %23 : vector<1x16x8xf32> to vector<16x8xf32>
    %c5 = arith.constant 5 : index
    %c0_8 = arith.constant 0 : index
    %25 = vector.load %arg9[%c5, %c0_8] : memref<26x8xf32, #tpu.memory_space<vmem>>, vector<16x8xf32>
    tpu.vector_store %arg9[%c5, %c0_8], %24 {strides = array<i32>} : memref<26x8xf32, #tpu.memory_space<vmem>>, vector<16x8xf32>,
    %c0_9 = arith.constant 0 : index
    %c0_10 = arith.constant 0 : index
    %26 = vector.load %arg9[%c0_9, %c0_10] : memref<26x8xf32, #tpu.memory_space<vmem>>, vector<16x8xf32>
    %cst_11 = arith.constant 0.000000e+00 : f32
    %27 = vector.shape_cast %18 : vector<16x1xi1> to vector<16x1xi1>
    %28 = vector.broadcast %27 : vector<16x1xi1> to vector<16x8xi1>
    %29 = vector.broadcast %cst_11 : f32 to vector<16x8xf32>
    %30 = arith.select %28, %26, %29 : vector<16x8xi1>, vector<16x8xf32>
    %c1 = arith.constant 1 : index
    %c0_12 = arith.constant 0 : index
    %31 = vector.load %arg9[%c1, %c0_12] : memref<26x8xf32, #tpu.memory_space<vmem>>, vector<16x8xf32>
    %c2 = arith.constant 2 : index
    %c0_13 = arith.constant 0 : index
    %32 = vector.load %arg9[%c2, %c0_13] : memref<26x8xf32, #tpu.memory_space<vmem>>, vector<16x8xf32>
    %cst_14 = arith.constant 0.000000e+00 : f32
    %33 = vector.shape_cast %20 : vector<16x1xi1> to vector<16x1xi1>
    %34 = vector.broadcast %33 : vector<16x1xi1> to vector<16x8xi1>
    %35 = vector.broadcast %cst_14 : f32 to vector<16x8xf32>
    %36 = arith.select %34, %32, %35 : vector<16x8xi1>, vector<16x8xf32>
    %c4 = arith.constant 4 : index
    %c0_15 = arith.constant 0 : index
    %37 = vector.load %arg9[%c4, %c0_15] : memref<26x8xf32, #tpu.memory_space<vmem>>, vector<16x8xf32>
    %cst_16 = arith.constant 0.000000e+00 : f32
    %38 = vector.shape_cast %18 : vector<16x1xi1> to vector<16x1xi1>
    %39 = vector.broadcast %38 : vector<16x1xi1> to vector<16x8xi1>
    %40 = vector.broadcast %cst_16 : f32 to vector<16x8xf32>
    %41 = arith.select %39, %37, %40 : vector<16x8xi1>, vector<16x8xf32>
    %c5_17 = arith.constant 5 : index
    %c0_18 = arith.constant 0 : index
    %42 = vector.load %arg9[%c5_17, %c0_18] : memref<26x8xf32, #tpu.memory_space<vmem>>, vector<16x8xf32>
    %c6 = arith.constant 6 : index
    %c0_19 = arith.constant 0 : index
    %43 = vector.load %arg9[%c6, %c0_19] : memref<26x8xf32, #tpu.memory_space<vmem>>, vector<16x8xf32>
    %cst_20 = arith.constant 0.000000e+00 : f32
    %44 = vector.shape_cast %20 : vector<16x1xi1> to vector<16x1xi1>
    %45 = vector.broadcast %44 : vector<16x1xi1> to vector<16x8xi1>
    %46 = vector.broadcast %cst_20 : f32 to vector<16x8xf32>
    %47 = arith.select %45, %43, %46 : vector<16x8xi1>, vector<16x8xf32>
    %c8 = arith.constant 8 : index
    %c0_21 = arith.constant 0 : index
    %48 = vector.load %arg9[%c8, %c0_21] : memref<26x8xf32, #tpu.memory_space<vmem>>, vector<16x8xf32>
    %cst_22 = arith.constant 0.000000e+00 : f32
    %49 = vector.shape_cast %18 : vector<16x1xi1> to vector<16x1xi1>
    %50 = vector.broadcast %49 : vector<16x1xi1> to vector<16x8xi1>
    %51 = vector.broadcast %cst_22 : f32 to vector<16x8xf32>
    %52 = arith.select %50, %48, %51 : vector<16x8xi1>, vector<16x8xf32>
    %c9 = arith.constant 9 : index
    %c0_23 = arith.constant 0 : index
    %53 = vector.load %arg9[%c9, %c0_23] : memref<26x8xf32, #tpu.memory_space<vmem>>, vector<16x8xf32>
    %c10 = arith.constant 10 : index
    %c0_24 = arith.constant 0 : index
    %54 = vector.load %arg9[%c10, %c0_24] : memref<26x8xf32, #tpu.memory_space<vmem>>, vector<16x8xf32>
    %cst_25 = arith.constant 0.000000e+00 : f32
    %55 = vector.shape_cast %20 : vector<16x1xi1> to vector<16x1xi1>
    %56 = vector.broadcast %55 : vector<16x1xi1> to vector<16x8xi1>
    %57 = vector.broadcast %cst_25 : f32 to vector<16x8xf32>
    %58 = arith.select %56, %54, %57 : vector<16x8xi1>, vector<16x8xf32>
    %59 = tpu.concatenate %30, %31, %36, %41, %42, %47, %52, %53, %58 in 1 : vector<16x8xf32>, vector<16x8xf32>, vector<16x8xf32>, vector<16x8xf32>, vector<16x8xf32>, vector<16x8xf32>, vector<16x8xf32>, vector<16x8xf32>, vector<16x8xf32> -> vector<16x72xf32>
    %c0_26 = arith.constant 0 : index
    %c0_27 = arith.constant 0 : index
    %60 = vector.load %arg2[%c0_26, %c0_27] : memref<72x16xf32, #tpu.memory_space<vmem>>, vector<72x16xf32>
    %cst_28 = arith.constant dense<0.000000e+00> : vector<16x16xf32>
    %61 = tpu.matmul %59, %60, %cst_28 {dimension_numbers = #tpu.dot_dimension_numbers<[1], [0], [0], [1], [0, 0, 1, 1], [], []>} : vector<16x72xf32>, vector<72x16xf32>, vector<16x16xf32> -> vector<16x16xf32>
    %c0_29 = arith.constant 0 : index
    %c0_30 = arith.constant 0 : index
    %62 = vector.load %arg3[%c0_29, %c0_30] : memref<1x16xf32, #tpu.memory_space<vmem>>, vector<1x16xf32>
    %63 = vector.broadcast %62 : vector<1x16xf32> to vector<16x16xf32>
    %64 = arith.addf %61, %63 : vector<16x16xf32>
    %cst_31 = arith.constant 0.000000e+00 : f32
    %65 = vector.broadcast %cst_31 : f32 to vector<16x16xf32>
    %66 = arith.maximumf %64, %65 : vector<16x16xf32>
    %cst_32 = arith.constant 0.000000e+00 : f32
    %67 = vector.broadcast %cst_32 : f32 to vector<26x16xf32>
    %c0_33 = arith.constant 0 : index
    %c0_34 = arith.constant 0 : index
    %68 = vector.load %arg10[%c0_33, %c0_34] : memref<26x16xf32, #tpu.memory_space<vmem>>, vector<26x16xf32>
    tpu.vector_store %arg10[%c0_33, %c0_34], %67 {strides = array<i32>} : memref<26x16xf32, #tpu.memory_space<vmem>>, vector<26x16xf32>,
    %c5_35 = arith.constant 5 : index
    %c0_36 = arith.constant 0 : index
    %69 = vector.load %arg10[%c5_35, %c0_36] : memref<26x16xf32, #tpu.memory_space<vmem>>, vector<16x16xf32>
    tpu.vector_store %arg10[%c5_35, %c0_36], %66 {strides = array<i32>} : memref<26x16xf32, #tpu.memory_space<vmem>>, vector<16x16xf32>,
    %c0_37 = arith.constant 0 : index
    %c0_38 = arith.constant 0 : index
    %70 = vector.load %arg10[%c0_37, %c0_38] : memref<26x16xf32, #tpu.memory_space<vmem>>, vector<16x16xf32>
    %cst_39 = arith.constant 0.000000e+00 : f32
    %71 = vector.shape_cast %18 : vector<16x1xi1> to vector<16x1xi1>
    %72 = vector.broadcast %71 : vector<16x1xi1> to vector<16x16xi1>
    %73 = vector.broadcast %cst_39 : f32 to vector<16x16xf32>
    %74 = arith.select %72, %70, %73 : vector<16x16xi1>, vector<16x16xf32>
    %c1_40 = arith.constant 1 : index
    %c0_41 = arith.constant 0 : index
    %75 = vector.load %arg10[%c1_40, %c0_41] : memref<26x16xf32, #tpu.memory_space<vmem>>, vector<16x16xf32>
    %c2_42 = arith.constant 2 : index
    %c0_43 = arith.constant 0 : index
    %76 = vector.load %arg10[%c2_42, %c0_43] : memref<26x16xf32, #tpu.memory_space<vmem>>, vector<16x16xf32>
    %cst_44 = arith.constant 0.000000e+00 : f32
    %77 = vector.shape_cast %20 : vector<16x1xi1> to vector<16x1xi1>
    %78 = vector.broadcast %77 : vector<16x1xi1> to vector<16x16xi1>
    %79 = vector.broadcast %cst_44 : f32 to vector<16x16xf32>
    %80 = arith.select %78, %76, %79 : vector<16x16xi1>, vector<16x16xf32>
    %c4_45 = arith.constant 4 : index
    %c0_46 = arith.constant 0 : index
    %81 = vector.load %arg10[%c4_45, %c0_46] : memref<26x16xf32, #tpu.memory_space<vmem>>, vector<16x16xf32>
    %cst_47 = arith.constant 0.000000e+00 : f32
    %82 = vector.shape_cast %18 : vector<16x1xi1> to vector<16x1xi1>
    %83 = vector.broadcast %82 : vector<16x1xi1> to vector<16x16xi1>
    %84 = vector.broadcast %cst_47 : f32 to vector<16x16xf32>
    %85 = arith.select %83, %81, %84 : vector<16x16xi1>, vector<16x16xf32>
    %c5_48 = arith.constant 5 : index
    %c0_49 = arith.constant 0 : index
    %86 = vector.load %arg10[%c5_48, %c0_49] : memref<26x16xf32, #tpu.memory_space<vmem>>, vector<16x16xf32>
    %c6_50 = arith.constant 6 : index
    %c0_51 = arith.constant 0 : index
    %87 = vector.load %arg10[%c6_50, %c0_51] : memref<26x16xf32, #tpu.memory_space<vmem>>, vector<16x16xf32>
    %cst_52 = arith.constant 0.000000e+00 : f32
    %88 = vector.shape_cast %20 : vector<16x1xi1> to vector<16x1xi1>
    %89 = vector.broadcast %88 : vector<16x1xi1> to vector<16x16xi1>
    %90 = vector.broadcast %cst_52 : f32 to vector<16x16xf32>
    %91 = arith.select %89, %87, %90 : vector<16x16xi1>, vector<16x16xf32>
    %c8_53 = arith.constant 8 : index
    %c0_54 = arith.constant 0 : index
    %92 = vector.load %arg10[%c8_53, %c0_54] : memref<26x16xf32, #tpu.memory_space<vmem>>, vector<16x16xf32>
    %cst_55 = arith.constant 0.000000e+00 : f32
    %93 = vector.shape_cast %18 : vector<16x1xi1> to vector<16x1xi1>
    %94 = vector.broadcast %93 : vector<16x1xi1> to vector<16x16xi1>
    %95 = vector.broadcast %cst_55 : f32 to vector<16x16xf32>
    %96 = arith.select %94, %92, %95 : vector<16x16xi1>, vector<16x16xf32>
    %c9_56 = arith.constant 9 : index
    %c0_57 = arith.constant 0 : index
    %97 = vector.load %arg10[%c9_56, %c0_57] : memref<26x16xf32, #tpu.memory_space<vmem>>, vector<16x16xf32>
    %c10_58 = arith.constant 10 : index
    %c0_59 = arith.constant 0 : index
    %98 = vector.load %arg10[%c10_58, %c0_59] : memref<26x16xf32, #tpu.memory_space<vmem>>, vector<16x16xf32>
    %cst_60 = arith.constant 0.000000e+00 : f32
    %99 = vector.shape_cast %20 : vector<16x1xi1> to vector<16x1xi1>
    %100 = vector.broadcast %99 : vector<16x1xi1> to vector<16x16xi1>
    %101 = vector.broadcast %cst_60 : f32 to vector<16x16xf32>
    %102 = arith.select %100, %98, %101 : vector<16x16xi1>, vector<16x16xf32>
    %103 = tpu.concatenate %74, %75, %80, %85, %86, %91, %96, %97, %102 in 1 : vector<16x16xf32>, vector<16x16xf32>, vector<16x16xf32>, vector<16x16xf32>, vector<16x16xf32>, vector<16x16xf32>, vector<16x16xf32>, vector<16x16xf32>, vector<16x16xf32> -> vector<16x144xf32>
    %c0_61 = arith.constant 0 : index
    %c0_62 = arith.constant 0 : index
    %104 = vector.load %arg4[%c0_61, %c0_62] : memref<144x16xf32, #tpu.memory_space<vmem>>, vector<144x16xf32>
    %cst_63 = arith.constant dense<0.000000e+00> : vector<16x16xf32>
    %105 = tpu.matmul %103, %104, %cst_63 {dimension_numbers = #tpu.dot_dimension_numbers<[1], [0], [0], [1], [0, 0, 1, 1], [], []>} : vector<16x144xf32>, vector<144x16xf32>, vector<16x16xf32> -> vector<16x16xf32>
    %c0_64 = arith.constant 0 : index
    %c0_65 = arith.constant 0 : index
    %106 = vector.load %arg5[%c0_64, %c0_65] : memref<1x16xf32, #tpu.memory_space<vmem>>, vector<1x16xf32>
    %107 = vector.broadcast %106 : vector<1x16xf32> to vector<16x16xf32>
    %108 = arith.addf %105, %107 : vector<16x16xf32>
    %cst_66 = arith.constant 0.000000e+00 : f32
    %109 = vector.broadcast %cst_66 : f32 to vector<16x16xf32>
    %110 = arith.maximumf %108, %109 : vector<16x16xf32>
    %c0_67 = arith.constant 0 : index
    %c0_68 = arith.constant 0 : index
    %c0_69 = arith.constant 0 : index
    %111 = vector.load %arg7[%c0_67, %c0_68, %c0_69] : memref<1x16x16xf32, #tpu.memory_space<vmem>>, vector<1x16x16xf32>
    %112 = vector.shape_cast %111 : vector<1x16x16xf32> to vector<16x16xf32>
    %113 = vector.shape_cast %110 : vector<16x16xf32> to vector<1x16x16xf32>
    tpu.vector_store %arg7[%c0_67, %c0_68, %c0_69], %113 {strides = array<i32>} : memref<1x16x16xf32, #tpu.memory_space<vmem>>, vector<1x16x16xf32>,
    %c0_70 = arith.constant 0 : index
    %c0_71 = arith.constant 0 : index
    %c0_72 = arith.constant 0 : index
    %114 = vector.load %arg6[%c0_70, %c0_71, %c0_72] : memref<4x4x16xf32, #tpu.memory_space<vmem>>, vector<1x4x16xf32>
    %115 = vector.shape_cast %114 : vector<1x4x16xf32> to vector<4x16xf32>
    %cst_73 = arith.constant dense<0.000000e+00> : vector<4x16xf32>
    %116 = tpu.matmul %115, %110, %cst_73 {dimension_numbers = #tpu.dot_dimension_numbers<[1], [0], [0], [1], [0, 0, 1, 1], [], []>} : vector<4x16xf32>, vector<16x16xf32>, vector<4x16xf32> -> vector<4x16xf32>
    %c1_74 = arith.constant 1 : index
    %c0_75 = arith.constant 0 : index
    %c0_76 = arith.constant 0 : index
    %117 = vector.load %arg6[%c1_74, %c0_75, %c0_76] : memref<4x4x16xf32, #tpu.memory_space<vmem>>, vector<1x4x16xf32>
    %118 = vector.shape_cast %117 : vector<1x4x16xf32> to vector<4x16xf32>
    %cst_77 = arith.constant dense<0.000000e+00> : vector<4x16xf32>
    %119 = tpu.matmul %118, %110, %cst_77 {dimension_numbers = #tpu.dot_dimension_numbers<[1], [0], [0], [1], [0, 0, 1, 1], [], []>} : vector<4x16xf32>, vector<16x16xf32>, vector<4x16xf32> -> vector<4x16xf32>
    %120 = arith.maximumf %116, %119 : vector<4x16xf32>
    %c2_78 = arith.constant 2 : index
    %c0_79 = arith.constant 0 : index
    %c0_80 = arith.constant 0 : index
    %121 = vector.load %arg6[%c2_78, %c0_79, %c0_80] : memref<4x4x16xf32, #tpu.memory_space<vmem>>, vector<1x4x16xf32>
    %122 = vector.shape_cast %121 : vector<1x4x16xf32> to vector<4x16xf32>
    %cst_81 = arith.constant dense<0.000000e+00> : vector<4x16xf32>
    %123 = tpu.matmul %122, %110, %cst_81 {dimension_numbers = #tpu.dot_dimension_numbers<[1], [0], [0], [1], [0, 0, 1, 1], [], []>} : vector<4x16xf32>, vector<16x16xf32>, vector<4x16xf32> -> vector<4x16xf32>
    %124 = arith.maximumf %120, %123 : vector<4x16xf32>
    %c3 = arith.constant 3 : index
    %c0_82 = arith.constant 0 : index
    %c0_83 = arith.constant 0 : index
    %125 = vector.load %arg6[%c3, %c0_82, %c0_83] : memref<4x4x16xf32, #tpu.memory_space<vmem>>, vector<1x4x16xf32>
    %126 = vector.shape_cast %125 : vector<1x4x16xf32> to vector<4x16xf32>
    %cst_84 = arith.constant dense<0.000000e+00> : vector<4x16xf32>
    %127 = tpu.matmul %126, %110, %cst_84 {dimension_numbers = #tpu.dot_dimension_numbers<[1], [0], [0], [1], [0, 0, 1, 1], [], []>} : vector<4x16xf32>, vector<16x16xf32>, vector<4x16xf32> -> vector<4x16xf32>
    %128 = arith.maximumf %124, %127 : vector<4x16xf32>
    %c0_85 = arith.constant 0 : index
    %c0_86 = arith.constant 0 : index
    %c0_87 = arith.constant 0 : index
    %129 = vector.load %arg8[%c0_85, %c0_86, %c0_87] : memref<1x4x16xf32, #tpu.memory_space<vmem>>, vector<1x4x16xf32>
    %130 = vector.shape_cast %129 : vector<1x4x16xf32> to vector<4x16xf32>
    %131 = vector.shape_cast %128 : vector<4x16xf32> to vector<1x4x16xf32>
    tpu.vector_store %arg8[%c0_85, %c0_86, %c0_87], %131 {strides = array<i32>} : memref<1x4x16xf32, #tpu.memory_space<vmem>>, vector<1x4x16xf32>,
    return
  }
  func.func @transform_0(%arg0: i32) -> (i32, i32, i32) {
    %c0_i32 = arith.constant 0 : i32
    %c0_i32_0 = arith.constant 0 : i32
    %c0_i32_1 = arith.constant 0 : i32
    return %arg0, %c0_i32, %c0_i32_0 : i32, i32, i32
  }
  func.func @transform_1(%arg0: i32) -> (i32, i32) {
    %c0_i32 = arith.constant 0 : i32
    %c0_i32_0 = arith.constant 0 : i32
    %c0_i32_1 = arith.constant 0 : i32
    return %c0_i32, %c0_i32_0 : i32, i32
  }
  func.func @transform_2(%arg0: i32) -> (i32, i32) {
    %c0_i32 = arith.constant 0 : i32
    %c0_i32_0 = arith.constant 0 : i32
    %c0_i32_1 = arith.constant 0 : i32
    return %c0_i32, %c0_i32_0 : i32, i32
  }
  func.func @transform_3(%arg0: i32) -> (i32, i32) {
    %c0_i32 = arith.constant 0 : i32
    %c0_i32_0 = arith.constant 0 : i32
    %c0_i32_1 = arith.constant 0 : i32
    return %c0_i32, %c0_i32_0 : i32, i32
  }
  func.func @transform_4(%arg0: i32) -> (i32, i32) {
    %c0_i32 = arith.constant 0 : i32
    %c0_i32_0 = arith.constant 0 : i32
    %c0_i32_1 = arith.constant 0 : i32
    return %c0_i32, %c0_i32_0 : i32, i32
  }
  func.func @transform_5(%arg0: i32) -> (i32, i32, i32) {
    %c0_i32 = arith.constant 0 : i32
    %c0_i32_0 = arith.constant 0 : i32
    %c0_i32_1 = arith.constant 0 : i32
    %c0_i32_2 = arith.constant 0 : i32
    return %c0_i32, %c0_i32_0, %c0_i32_1 : i32, i32, i32
  }
  func.func @transform_6(%arg0: i32) -> (i32, i32, i32) {
    %c0_i32 = arith.constant 0 : i32
    %c0_i32_0 = arith.constant 0 : i32
    %c0_i32_1 = arith.constant 0 : i32
    return %arg0, %c0_i32, %c0_i32_0 : i32, i32, i32
  }
  func.func @transform_7(%arg0: i32) -> (i32, i32, i32) {
    %c0_i32 = arith.constant 0 : i32
    %c0_i32_0 = arith.constant 0 : i32
    %c0_i32_1 = arith.constant 0 : i32
    return %arg0, %c0_i32, %c0_i32_0 : i32, i32, i32
  }
}

module attributes {stable_mosaic.version = 11 : i64} {
  func.func @_block_kernel(%arg0: i32, %arg1: memref<1x64x4xf32, #tpu.memory_space<vmem>>, %arg2: memref<36x8xf32, #tpu.memory_space<vmem>>, %arg3: memref<1x8xf32, #tpu.memory_space<vmem>>, %arg4: memref<72x8xf32, #tpu.memory_space<vmem>>, %arg5: memref<1x8xf32, #tpu.memory_space<vmem>>, %arg6: memref<4x16x64xf32, #tpu.memory_space<vmem>>, %arg7: memref<1x64x8xf32, #tpu.memory_space<vmem>>, %arg8: memref<1x16x8xf32, #tpu.memory_space<vmem>>, %arg9: memref<82x4xf32, #tpu.memory_space<vmem>>, %arg10: memref<82x8xf32, #tpu.memory_space<vmem>>) attributes {dimension_semantics = [#tpu.dimension_semantics<parallel>], iteration_bounds = array<i64: 2>, scalar_prefetch = 0 : i64, scratch_operands = 2 : i64, tpu.core_type = #tpu.core_type<tc>, window_params = [{transform_indices = @transform_0, window_bounds = array<i64: 1, 64, 4>}, {pipeline_mode = #tpu.pipeline_mode<synchronous>, transform_indices = @transform_1, window_bounds = array<i64: 36, 8>}, {pipeline_mode = #tpu.pipeline_mode<synchronous>, transform_indices = @transform_2, window_bounds = array<i64: 1, 8>}, {pipeline_mode = #tpu.pipeline_mode<synchronous>, transform_indices = @transform_3, window_bounds = array<i64: 72, 8>}, {pipeline_mode = #tpu.pipeline_mode<synchronous>, transform_indices = @transform_4, window_bounds = array<i64: 1, 8>}, {pipeline_mode = #tpu.pipeline_mode<synchronous>, transform_indices = @transform_5, window_bounds = array<i64: 4, 16, 64>}, {transform_indices = @transform_6, window_bounds = array<i64: 1, 64, 8>}, {transform_indices = @transform_7, window_bounds = array<i64: 1, 16, 8>}]} {
    %0 = tpu.iota {dimensions = array<i32: 0>} : vector<64x1xi32>
    %c8_i32 = arith.constant 8 : i32
    %c0_i32 = arith.constant 0 : i32
    %1 = arith.cmpi eq, %c8_i32, %c0_i32 : i32
    %c1_i32 = arith.constant 1 : i32
    %2 = arith.select %1, %c1_i32, %c8_i32 : i32
    %3 = vector.broadcast %2 : i32 to vector<64x1xi32>
    %4 = arith.remsi %0, %3 : vector<64x1xi32>
    %c0_i32_0 = arith.constant 0 : i32
    %5 = vector.broadcast %c0_i32_0 : i32 to vector<64x1xi32>
    %6 = arith.cmpi ne, %4, %5 : vector<64x1xi32>
    %c0_i32_1 = arith.constant 0 : i32
    %7 = vector.broadcast %c0_i32_1 : i32 to vector<64x1xi32>
    %8 = arith.cmpi slt, %4, %7 : vector<64x1xi32>
    %c0_i32_2 = arith.constant 0 : i32
    %9 = arith.cmpi slt, %2, %c0_i32_2 : i32
    %10 = vector.broadcast %9 : i1 to vector<64x1xi1>
    %11 = vector.broadcast %10 : vector<64x1xi1> to vector<64x1xi1>
    %12 = arith.xori %8, %11 : vector<64x1xi1>
    %13 = arith.andi %12, %6 : vector<64x1xi1>
    %14 = vector.broadcast %2 : i32 to vector<64x1xi32>
    %15 = arith.addi %4, %14 : vector<64x1xi32>
    %16 = arith.select %13, %15, %4 : vector<64x1xi1>, vector<64x1xi32>
    %c1_i32_3 = arith.constant 1 : i32
    %17 = vector.broadcast %c1_i32_3 : i32 to vector<64x1xi32>
    %18 = arith.cmpi sge, %16, %17 : vector<64x1xi32>
    %c6_i32 = arith.constant 6 : i32
    %19 = vector.broadcast %c6_i32 : i32 to vector<64x1xi32>
    %20 = arith.cmpi sle, %16, %19 : vector<64x1xi32>
    %cst = arith.constant 0.000000e+00 : f32
    %21 = vector.broadcast %cst : f32 to vector<82x4xf32>
    %c0 = arith.constant 0 : index
    %c0_4 = arith.constant 0 : index
    %22 = vector.load %arg9[%c0, %c0_4] : memref<82x4xf32, #tpu.memory_space<vmem>>, vector<82x4xf32>
    tpu.vector_store %arg9[%c0, %c0_4], %21 {strides = array<i32>} : memref<82x4xf32, #tpu.memory_space<vmem>>, vector<82x4xf32>,
    %c0_5 = arith.constant 0 : index
    %c0_6 = arith.constant 0 : index
    %c0_7 = arith.constant 0 : index
    %23 = vector.load %arg1[%c0_5, %c0_6, %c0_7] : memref<1x64x4xf32, #tpu.memory_space<vmem>>, vector<1x64x4xf32>
    %24 = vector.shape_cast %23 : vector<1x64x4xf32> to vector<64x4xf32>
    %c9 = arith.constant 9 : index
    %c0_8 = arith.constant 0 : index
    %25 = vector.load %arg9[%c9, %c0_8] : memref<82x4xf32, #tpu.memory_space<vmem>>, vector<64x4xf32>
    tpu.vector_store %arg9[%c9, %c0_8], %24 {strides = array<i32>} : memref<82x4xf32, #tpu.memory_space<vmem>>, vector<64x4xf32>,
    %c0_9 = arith.constant 0 : index
    %c0_10 = arith.constant 0 : index
    %26 = vector.load %arg9[%c0_9, %c0_10] : memref<82x4xf32, #tpu.memory_space<vmem>>, vector<64x4xf32>
    %cst_11 = arith.constant 0.000000e+00 : f32
    %27 = vector.shape_cast %18 : vector<64x1xi1> to vector<64x1xi1>
    %28 = vector.broadcast %27 : vector<64x1xi1> to vector<64x4xi1>
    %29 = vector.broadcast %cst_11 : f32 to vector<64x4xf32>
    %30 = arith.select %28, %26, %29 : vector<64x4xi1>, vector<64x4xf32>
    %c1 = arith.constant 1 : index
    %c0_12 = arith.constant 0 : index
    %31 = vector.load %arg9[%c1, %c0_12] : memref<82x4xf32, #tpu.memory_space<vmem>>, vector<64x4xf32>
    %c2 = arith.constant 2 : index
    %c0_13 = arith.constant 0 : index
    %32 = vector.load %arg9[%c2, %c0_13] : memref<82x4xf32, #tpu.memory_space<vmem>>, vector<64x4xf32>
    %cst_14 = arith.constant 0.000000e+00 : f32
    %33 = vector.shape_cast %20 : vector<64x1xi1> to vector<64x1xi1>
    %34 = vector.broadcast %33 : vector<64x1xi1> to vector<64x4xi1>
    %35 = vector.broadcast %cst_14 : f32 to vector<64x4xf32>
    %36 = arith.select %34, %32, %35 : vector<64x4xi1>, vector<64x4xf32>
    %c8 = arith.constant 8 : index
    %c0_15 = arith.constant 0 : index
    %37 = vector.load %arg9[%c8, %c0_15] : memref<82x4xf32, #tpu.memory_space<vmem>>, vector<64x4xf32>
    %cst_16 = arith.constant 0.000000e+00 : f32
    %38 = vector.shape_cast %18 : vector<64x1xi1> to vector<64x1xi1>
    %39 = vector.broadcast %38 : vector<64x1xi1> to vector<64x4xi1>
    %40 = vector.broadcast %cst_16 : f32 to vector<64x4xf32>
    %41 = arith.select %39, %37, %40 : vector<64x4xi1>, vector<64x4xf32>
    %c9_17 = arith.constant 9 : index
    %c0_18 = arith.constant 0 : index
    %42 = vector.load %arg9[%c9_17, %c0_18] : memref<82x4xf32, #tpu.memory_space<vmem>>, vector<64x4xf32>
    %c10 = arith.constant 10 : index
    %c0_19 = arith.constant 0 : index
    %43 = vector.load %arg9[%c10, %c0_19] : memref<82x4xf32, #tpu.memory_space<vmem>>, vector<64x4xf32>
    %cst_20 = arith.constant 0.000000e+00 : f32
    %44 = vector.shape_cast %20 : vector<64x1xi1> to vector<64x1xi1>
    %45 = vector.broadcast %44 : vector<64x1xi1> to vector<64x4xi1>
    %46 = vector.broadcast %cst_20 : f32 to vector<64x4xf32>
    %47 = arith.select %45, %43, %46 : vector<64x4xi1>, vector<64x4xf32>
    %c16 = arith.constant 16 : index
    %c0_21 = arith.constant 0 : index
    %48 = vector.load %arg9[%c16, %c0_21] : memref<82x4xf32, #tpu.memory_space<vmem>>, vector<64x4xf32>
    %cst_22 = arith.constant 0.000000e+00 : f32
    %49 = vector.shape_cast %18 : vector<64x1xi1> to vector<64x1xi1>
    %50 = vector.broadcast %49 : vector<64x1xi1> to vector<64x4xi1>
    %51 = vector.broadcast %cst_22 : f32 to vector<64x4xf32>
    %52 = arith.select %50, %48, %51 : vector<64x4xi1>, vector<64x4xf32>
    %c17 = arith.constant 17 : index
    %c0_23 = arith.constant 0 : index
    %53 = vector.load %arg9[%c17, %c0_23] : memref<82x4xf32, #tpu.memory_space<vmem>>, vector<64x4xf32>
    %c18 = arith.constant 18 : index
    %c0_24 = arith.constant 0 : index
    %54 = vector.load %arg9[%c18, %c0_24] : memref<82x4xf32, #tpu.memory_space<vmem>>, vector<64x4xf32>
    %cst_25 = arith.constant 0.000000e+00 : f32
    %55 = vector.shape_cast %20 : vector<64x1xi1> to vector<64x1xi1>
    %56 = vector.broadcast %55 : vector<64x1xi1> to vector<64x4xi1>
    %57 = vector.broadcast %cst_25 : f32 to vector<64x4xf32>
    %58 = arith.select %56, %54, %57 : vector<64x4xi1>, vector<64x4xf32>
    %59 = tpu.concatenate %30, %31, %36, %41, %42, %47, %52, %53, %58 in 1 : vector<64x4xf32>, vector<64x4xf32>, vector<64x4xf32>, vector<64x4xf32>, vector<64x4xf32>, vector<64x4xf32>, vector<64x4xf32>, vector<64x4xf32>, vector<64x4xf32> -> vector<64x36xf32>
    %c0_26 = arith.constant 0 : index
    %c0_27 = arith.constant 0 : index
    %60 = vector.load %arg2[%c0_26, %c0_27] : memref<36x8xf32, #tpu.memory_space<vmem>>, vector<36x8xf32>
    %cst_28 = arith.constant dense<0.000000e+00> : vector<64x8xf32>
    %61 = tpu.matmul %59, %60, %cst_28 {dimension_numbers = #tpu.dot_dimension_numbers<[1], [0], [0], [1], [0, 0, 1, 1], [], []>} : vector<64x36xf32>, vector<36x8xf32>, vector<64x8xf32> -> vector<64x8xf32>
    %c0_29 = arith.constant 0 : index
    %c0_30 = arith.constant 0 : index
    %62 = vector.load %arg3[%c0_29, %c0_30] : memref<1x8xf32, #tpu.memory_space<vmem>>, vector<1x8xf32>
    %63 = vector.broadcast %62 : vector<1x8xf32> to vector<64x8xf32>
    %64 = arith.addf %61, %63 : vector<64x8xf32>
    %cst_31 = arith.constant 0.000000e+00 : f32
    %65 = vector.broadcast %cst_31 : f32 to vector<64x8xf32>
    %66 = arith.maximumf %64, %65 : vector<64x8xf32>
    %cst_32 = arith.constant 0.000000e+00 : f32
    %67 = vector.broadcast %cst_32 : f32 to vector<82x8xf32>
    %c0_33 = arith.constant 0 : index
    %c0_34 = arith.constant 0 : index
    %68 = vector.load %arg10[%c0_33, %c0_34] : memref<82x8xf32, #tpu.memory_space<vmem>>, vector<82x8xf32>
    tpu.vector_store %arg10[%c0_33, %c0_34], %67 {strides = array<i32>} : memref<82x8xf32, #tpu.memory_space<vmem>>, vector<82x8xf32>,
    %c9_35 = arith.constant 9 : index
    %c0_36 = arith.constant 0 : index
    %69 = vector.load %arg10[%c9_35, %c0_36] : memref<82x8xf32, #tpu.memory_space<vmem>>, vector<64x8xf32>
    tpu.vector_store %arg10[%c9_35, %c0_36], %66 {strides = array<i32>} : memref<82x8xf32, #tpu.memory_space<vmem>>, vector<64x8xf32>,
    %c0_37 = arith.constant 0 : index
    %c0_38 = arith.constant 0 : index
    %70 = vector.load %arg10[%c0_37, %c0_38] : memref<82x8xf32, #tpu.memory_space<vmem>>, vector<64x8xf32>
    %cst_39 = arith.constant 0.000000e+00 : f32
    %71 = vector.shape_cast %18 : vector<64x1xi1> to vector<64x1xi1>
    %72 = vector.broadcast %71 : vector<64x1xi1> to vector<64x8xi1>
    %73 = vector.broadcast %cst_39 : f32 to vector<64x8xf32>
    %74 = arith.select %72, %70, %73 : vector<64x8xi1>, vector<64x8xf32>
    %c1_40 = arith.constant 1 : index
    %c0_41 = arith.constant 0 : index
    %75 = vector.load %arg10[%c1_40, %c0_41] : memref<82x8xf32, #tpu.memory_space<vmem>>, vector<64x8xf32>
    %c2_42 = arith.constant 2 : index
    %c0_43 = arith.constant 0 : index
    %76 = vector.load %arg10[%c2_42, %c0_43] : memref<82x8xf32, #tpu.memory_space<vmem>>, vector<64x8xf32>
    %cst_44 = arith.constant 0.000000e+00 : f32
    %77 = vector.shape_cast %20 : vector<64x1xi1> to vector<64x1xi1>
    %78 = vector.broadcast %77 : vector<64x1xi1> to vector<64x8xi1>
    %79 = vector.broadcast %cst_44 : f32 to vector<64x8xf32>
    %80 = arith.select %78, %76, %79 : vector<64x8xi1>, vector<64x8xf32>
    %c8_45 = arith.constant 8 : index
    %c0_46 = arith.constant 0 : index
    %81 = vector.load %arg10[%c8_45, %c0_46] : memref<82x8xf32, #tpu.memory_space<vmem>>, vector<64x8xf32>
    %cst_47 = arith.constant 0.000000e+00 : f32
    %82 = vector.shape_cast %18 : vector<64x1xi1> to vector<64x1xi1>
    %83 = vector.broadcast %82 : vector<64x1xi1> to vector<64x8xi1>
    %84 = vector.broadcast %cst_47 : f32 to vector<64x8xf32>
    %85 = arith.select %83, %81, %84 : vector<64x8xi1>, vector<64x8xf32>
    %c9_48 = arith.constant 9 : index
    %c0_49 = arith.constant 0 : index
    %86 = vector.load %arg10[%c9_48, %c0_49] : memref<82x8xf32, #tpu.memory_space<vmem>>, vector<64x8xf32>
    %c10_50 = arith.constant 10 : index
    %c0_51 = arith.constant 0 : index
    %87 = vector.load %arg10[%c10_50, %c0_51] : memref<82x8xf32, #tpu.memory_space<vmem>>, vector<64x8xf32>
    %cst_52 = arith.constant 0.000000e+00 : f32
    %88 = vector.shape_cast %20 : vector<64x1xi1> to vector<64x1xi1>
    %89 = vector.broadcast %88 : vector<64x1xi1> to vector<64x8xi1>
    %90 = vector.broadcast %cst_52 : f32 to vector<64x8xf32>
    %91 = arith.select %89, %87, %90 : vector<64x8xi1>, vector<64x8xf32>
    %c16_53 = arith.constant 16 : index
    %c0_54 = arith.constant 0 : index
    %92 = vector.load %arg10[%c16_53, %c0_54] : memref<82x8xf32, #tpu.memory_space<vmem>>, vector<64x8xf32>
    %cst_55 = arith.constant 0.000000e+00 : f32
    %93 = vector.shape_cast %18 : vector<64x1xi1> to vector<64x1xi1>
    %94 = vector.broadcast %93 : vector<64x1xi1> to vector<64x8xi1>
    %95 = vector.broadcast %cst_55 : f32 to vector<64x8xf32>
    %96 = arith.select %94, %92, %95 : vector<64x8xi1>, vector<64x8xf32>
    %c17_56 = arith.constant 17 : index
    %c0_57 = arith.constant 0 : index
    %97 = vector.load %arg10[%c17_56, %c0_57] : memref<82x8xf32, #tpu.memory_space<vmem>>, vector<64x8xf32>
    %c18_58 = arith.constant 18 : index
    %c0_59 = arith.constant 0 : index
    %98 = vector.load %arg10[%c18_58, %c0_59] : memref<82x8xf32, #tpu.memory_space<vmem>>, vector<64x8xf32>
    %cst_60 = arith.constant 0.000000e+00 : f32
    %99 = vector.shape_cast %20 : vector<64x1xi1> to vector<64x1xi1>
    %100 = vector.broadcast %99 : vector<64x1xi1> to vector<64x8xi1>
    %101 = vector.broadcast %cst_60 : f32 to vector<64x8xf32>
    %102 = arith.select %100, %98, %101 : vector<64x8xi1>, vector<64x8xf32>
    %103 = tpu.concatenate %74, %75, %80, %85, %86, %91, %96, %97, %102 in 1 : vector<64x8xf32>, vector<64x8xf32>, vector<64x8xf32>, vector<64x8xf32>, vector<64x8xf32>, vector<64x8xf32>, vector<64x8xf32>, vector<64x8xf32>, vector<64x8xf32> -> vector<64x72xf32>
    %c0_61 = arith.constant 0 : index
    %c0_62 = arith.constant 0 : index
    %104 = vector.load %arg4[%c0_61, %c0_62] : memref<72x8xf32, #tpu.memory_space<vmem>>, vector<72x8xf32>
    %cst_63 = arith.constant dense<0.000000e+00> : vector<64x8xf32>
    %105 = tpu.matmul %103, %104, %cst_63 {dimension_numbers = #tpu.dot_dimension_numbers<[1], [0], [0], [1], [0, 0, 1, 1], [], []>} : vector<64x72xf32>, vector<72x8xf32>, vector<64x8xf32> -> vector<64x8xf32>
    %c0_64 = arith.constant 0 : index
    %c0_65 = arith.constant 0 : index
    %106 = vector.load %arg5[%c0_64, %c0_65] : memref<1x8xf32, #tpu.memory_space<vmem>>, vector<1x8xf32>
    %107 = vector.broadcast %106 : vector<1x8xf32> to vector<64x8xf32>
    %108 = arith.addf %105, %107 : vector<64x8xf32>
    %cst_66 = arith.constant 0.000000e+00 : f32
    %109 = vector.broadcast %cst_66 : f32 to vector<64x8xf32>
    %110 = arith.maximumf %108, %109 : vector<64x8xf32>
    %c0_67 = arith.constant 0 : index
    %c0_68 = arith.constant 0 : index
    %c0_69 = arith.constant 0 : index
    %111 = vector.load %arg7[%c0_67, %c0_68, %c0_69] : memref<1x64x8xf32, #tpu.memory_space<vmem>>, vector<1x64x8xf32>
    %112 = vector.shape_cast %111 : vector<1x64x8xf32> to vector<64x8xf32>
    %113 = vector.shape_cast %110 : vector<64x8xf32> to vector<1x64x8xf32>
    tpu.vector_store %arg7[%c0_67, %c0_68, %c0_69], %113 {strides = array<i32>} : memref<1x64x8xf32, #tpu.memory_space<vmem>>, vector<1x64x8xf32>,
    %c0_70 = arith.constant 0 : index
    %c0_71 = arith.constant 0 : index
    %c0_72 = arith.constant 0 : index
    %114 = vector.load %arg6[%c0_70, %c0_71, %c0_72] : memref<4x16x64xf32, #tpu.memory_space<vmem>>, vector<1x16x64xf32>
    %115 = vector.shape_cast %114 : vector<1x16x64xf32> to vector<16x64xf32>
    %cst_73 = arith.constant dense<0.000000e+00> : vector<16x8xf32>
    %116 = tpu.matmul %115, %110, %cst_73 {dimension_numbers = #tpu.dot_dimension_numbers<[1], [0], [0], [1], [0, 0, 1, 1], [], []>} : vector<16x64xf32>, vector<64x8xf32>, vector<16x8xf32> -> vector<16x8xf32>
    %c1_74 = arith.constant 1 : index
    %c0_75 = arith.constant 0 : index
    %c0_76 = arith.constant 0 : index
    %117 = vector.load %arg6[%c1_74, %c0_75, %c0_76] : memref<4x16x64xf32, #tpu.memory_space<vmem>>, vector<1x16x64xf32>
    %118 = vector.shape_cast %117 : vector<1x16x64xf32> to vector<16x64xf32>
    %cst_77 = arith.constant dense<0.000000e+00> : vector<16x8xf32>
    %119 = tpu.matmul %118, %110, %cst_77 {dimension_numbers = #tpu.dot_dimension_numbers<[1], [0], [0], [1], [0, 0, 1, 1], [], []>} : vector<16x64xf32>, vector<64x8xf32>, vector<16x8xf32> -> vector<16x8xf32>
    %120 = arith.maximumf %116, %119 : vector<16x8xf32>
    %c2_78 = arith.constant 2 : index
    %c0_79 = arith.constant 0 : index
    %c0_80 = arith.constant 0 : index
    %121 = vector.load %arg6[%c2_78, %c0_79, %c0_80] : memref<4x16x64xf32, #tpu.memory_space<vmem>>, vector<1x16x64xf32>
    %122 = vector.shape_cast %121 : vector<1x16x64xf32> to vector<16x64xf32>
    %cst_81 = arith.constant dense<0.000000e+00> : vector<16x8xf32>
    %123 = tpu.matmul %122, %110, %cst_81 {dimension_numbers = #tpu.dot_dimension_numbers<[1], [0], [0], [1], [0, 0, 1, 1], [], []>} : vector<16x64xf32>, vector<64x8xf32>, vector<16x8xf32> -> vector<16x8xf32>
    %124 = arith.maximumf %120, %123 : vector<16x8xf32>
    %c3 = arith.constant 3 : index
    %c0_82 = arith.constant 0 : index
    %c0_83 = arith.constant 0 : index
    %125 = vector.load %arg6[%c3, %c0_82, %c0_83] : memref<4x16x64xf32, #tpu.memory_space<vmem>>, vector<1x16x64xf32>
    %126 = vector.shape_cast %125 : vector<1x16x64xf32> to vector<16x64xf32>
    %cst_84 = arith.constant dense<0.000000e+00> : vector<16x8xf32>
    %127 = tpu.matmul %126, %110, %cst_84 {dimension_numbers = #tpu.dot_dimension_numbers<[1], [0], [0], [1], [0, 0, 1, 1], [], []>} : vector<16x64xf32>, vector<64x8xf32>, vector<16x8xf32> -> vector<16x8xf32>
    %128 = arith.maximumf %124, %127 : vector<16x8xf32>
    %c0_85 = arith.constant 0 : index
    %c0_86 = arith.constant 0 : index
    %c0_87 = arith.constant 0 : index
    %129 = vector.load %arg8[%c0_85, %c0_86, %c0_87] : memref<1x16x8xf32, #tpu.memory_space<vmem>>, vector<1x16x8xf32>
    %130 = vector.shape_cast %129 : vector<1x16x8xf32> to vector<16x8xf32>
    %131 = vector.shape_cast %128 : vector<16x8xf32> to vector<1x16x8xf32>
    tpu.vector_store %arg8[%c0_85, %c0_86, %c0_87], %131 {strides = array<i32>} : memref<1x16x8xf32, #tpu.memory_space<vmem>>, vector<1x16x8xf32>,
    return
  }
  func.func @transform_0(%arg0: i32) -> (i32, i32, i32) {
    %c0_i32 = arith.constant 0 : i32
    %c0_i32_0 = arith.constant 0 : i32
    %c0_i32_1 = arith.constant 0 : i32
    return %arg0, %c0_i32, %c0_i32_0 : i32, i32, i32
  }
  func.func @transform_1(%arg0: i32) -> (i32, i32) {
    %c0_i32 = arith.constant 0 : i32
    %c0_i32_0 = arith.constant 0 : i32
    %c0_i32_1 = arith.constant 0 : i32
    return %c0_i32, %c0_i32_0 : i32, i32
  }
  func.func @transform_2(%arg0: i32) -> (i32, i32) {
    %c0_i32 = arith.constant 0 : i32
    %c0_i32_0 = arith.constant 0 : i32
    %c0_i32_1 = arith.constant 0 : i32
    return %c0_i32, %c0_i32_0 : i32, i32
  }
  func.func @transform_3(%arg0: i32) -> (i32, i32) {
    %c0_i32 = arith.constant 0 : i32
    %c0_i32_0 = arith.constant 0 : i32
    %c0_i32_1 = arith.constant 0 : i32
    return %c0_i32, %c0_i32_0 : i32, i32
  }
  func.func @transform_4(%arg0: i32) -> (i32, i32) {
    %c0_i32 = arith.constant 0 : i32
    %c0_i32_0 = arith.constant 0 : i32
    %c0_i32_1 = arith.constant 0 : i32
    return %c0_i32, %c0_i32_0 : i32, i32
  }
  func.func @transform_5(%arg0: i32) -> (i32, i32, i32) {
    %c0_i32 = arith.constant 0 : i32
    %c0_i32_0 = arith.constant 0 : i32
    %c0_i32_1 = arith.constant 0 : i32
    %c0_i32_2 = arith.constant 0 : i32
    return %c0_i32, %c0_i32_0, %c0_i32_1 : i32, i32, i32
  }
  func.func @transform_6(%arg0: i32) -> (i32, i32, i32) {
    %c0_i32 = arith.constant 0 : i32
    %c0_i32_0 = arith.constant 0 : i32
    %c0_i32_1 = arith.constant 0 : i32
    return %arg0, %c0_i32, %c0_i32_0 : i32, i32, i32
  }
  func.func @transform_7(%arg0: i32) -> (i32, i32, i32) {
    %c0_i32 = arith.constant 0 : i32
    %c0_i32_0 = arith.constant 0 : i32
    %c0_i32_1 = arith.constant 0 : i32
    return %arg0, %c0_i32, %c0_i32_0 : i32, i32, i32
  }
}

</mosaic_0001>

<llo_original>
// kernel: encoder_forward.3
$region0: #{encoder_forward.3}
  #allocation0 [shape = 'u32[]', space=smem, size = 0x4, offset = 0x4, fixed_abs, tag = 'smem constant byte address 0x4 - core index']
  #allocation1 [shape = 'u32[144,128]{1,0:T(1,128)}', space=vmem, size = 0x12000, scoped, tag = 'internal scratch']
  %s0 = inlined_call_operand.vmem [shape: f32[2,256,4], index: 0, kind: input, shape index: {}]
  %s1 = inlined_call_operand.vmem [shape: f32[4,64,256], index: 1, kind: input, shape index: {}]
  %s2 = inlined_call_operand.vmem [shape: f32[2,64,4], index: 2, kind: output, shape index: {}]
  %s3 = sld [smem:[#allocation0]]
  $region41: #{encoder_forward.3} parent=0
    _
  %s5 = ssub.s32 1, %s3
  %s6 = scalar_select 0, %s5, %s3
  loop: start=0, step=1, limit=4
  $region2: #{encoder_forward.3} parent=0 // loop_pre_header
    _
  $region3: #{encoder_forward.3} parent=0 // loop_header
    %s8 = sphi 0, %s12
    %p9 = scmp.ge.s32.totalorder %s8, 4
    %s18 = sphi 0, %s20
    %s21 = sphi 0, %s18
    %s22 = sphi 0, %s21
    %s38 = sphi 0, %s22
    %s42 = sphi 0, %s42
    %s44 = sphi 0, %s42
    %s45 = sphi 0, %s44
    %s59 = sphi 0, %s45
    %s65 = sphi 0, %s67
    %s68 = sphi 0, %s65
    %s69 = sphi 0, %s68
    %s85 = sphi 0, %s69
  $region4: #{encoder_forward.3} parent=0 // loop_header_branch
    %11 = sbr.rel (%p9) target = $region8
  $region5: #{encoder_forward.3} parent=0 // loop_body
    %s13 = ssub.s32 %s8, 1
    %s14 = ssub.s32 %s8, 2
    %s15 = sadd.s32 %s8, 1
    %s16 = ssub.s32 %s8, %s15
    %p17 = scmp.eq.s32.totalorder %s16, 0
    %s19 = sadd.s32 %s18, 1
    %s20 = scalar_select %p17, %s18, %s19
    %p23 = pneg %p17
    %p24 = scmp.eq.s32.totalorder %s8, 1
    %p25 = por %p23, %p24
    %p26 = scmp.ne.s32.totalorder %s18, %s21
    %p27 = scmp.eq.s32.totalorder %s8, 0
    %p28 = por %p26, %p27
    %p29 = scmp.ne.s32.totalorder %s18, %s21
    %p30 = scmp.eq.s32.totalorder %s13, 1
    %p31 = por %p29, %p30
    %p32 = scmp.ne.s32.totalorder %s21, %s22
    %p33 = scmp.eq.s32.totalorder %s13, 0
    %p34 = por %p32, %p33
    %p35 = scmp.ne.s32.totalorder %s21, %s22
    %p36 = scmp.eq.s32.totalorder %s14, 1
    %p37 = por %p35, %p36
    %p39 = scmp.ne.s32.totalorder %s22, %s38
    %p40 = scmp.eq.s32.totalorder %s14, 0
    %p41 = por %p39, %p40
    %s43 = sadd.s32 %s42, 1
    %p46 = scmp.eq.s32.totalorder %s8, 1
    %p47 = scmp.ne.s32.totalorder %s42, %s44
    %p48 = scmp.eq.s32.totalorder %s8, 0
    %p49 = por %p47, %p48
    %p50 = scmp.ne.s32.totalorder %s42, %s44
    %p51 = scmp.eq.s32.totalorder %s13, 1
    %p52 = por %p50, %p51
    %p53 = scmp.ne.s32.totalorder %s44, %s45
    %p54 = scmp.eq.s32.totalorder %s13, 0
    %p55 = por %p53, %p54
    %p56 = scmp.ne.s32.totalorder %s44, %s45
    %p57 = scmp.eq.s32.totalorder %s14, 1
    %p58 = por %p56, %p57
    %p60 = scmp.ne.s32.totalorder %s45, %s59
    %p61 = scmp.eq.s32.totalorder %s14, 0
    %p62 = por %p60, %p61
    %s63 = ssub.s32 %s8, %s15
    %p64 = scmp.eq.s32.totalorder %s63, 0
    %s66 = sadd.s32 %s65, 1
    %s67 = scalar_select %p64, %s65, %s66
    %p70 = pneg %p64
    %p71 = scmp.eq.s32.totalorder %s8, 1
    %p72 = por %p70, %p71
    %p73 = scmp.ne.s32.totalorder %s65, %s68
    %p74 = scmp.eq.s32.totalorder %s8, 0
    %p75 = por %p73, %p74
    %p76 = scmp.ne.s32.totalorder %s65, %s68
    %p77 = scmp.eq.s32.totalorder %s13, 1
    %p78 = por %p76, %p77
    %p79 = scmp.ne.s32.totalorder %s68, %s69
    %p80 = scmp.eq.s32.totalorder %s13, 0
    %p81 = por %p79, %p80
    %p82 = scmp.ne.s32.totalorder %s68, %s69
    %p83 = scmp.eq.s32.totalorder %s14, 1
    %p84 = por %p82, %p83
    %p86 = scmp.ne.s32.totalorder %s69, %s85
    %p87 = scmp.eq.s32.totalorder %s14, 0
    %p88 = por %p86, %p87
    %p89 = scmp.le.s32.totalorder 1, %s8
    %p90 = scmp.lt.s32.totalorder %s8, 3
    %p91 = pnand %p89, %p90
    %p92 = pneg %p91
    // Predicated region
    $region9: #{encoder_forward.3} parent=5 // pred_check
      _
    $region10: #{encoder_forward.3} parent=5 // pred_check_branch
      %94 = sbr.rel (%p91) target = $region12
    $region11: #{encoder_forward.3} parent=5 // pred_region
      %s95 = ssub.s32 %s8, 1
      // Predicated region
      $region13: #{encoder_forward.3} parent=11 // pred_check
        %p96 = pneg %p55
      $region14: #{encoder_forward.3} parent=11 // pred_check_branch
        %98 = sbr.rel (%p96) target = $region16
      $region15: #{encoder_forward.3} parent=11 // pred_region
        _
      $region16: #{encoder_forward.3} parent=11 // pred_fallthru
        _
    $region12: #{encoder_forward.3} parent=5 // pred_fallthru
      _
    %p99 = scmp.lt.s32.totalorder %s8, 2
    // Predicated region
    $region17: #{encoder_forward.3} parent=5 // pred_check
      %p100 = pneg %p99
    $region18: #{encoder_forward.3} parent=5 // pred_check_branch
      %102 = sbr.rel (%p100) target = $region20
    $region19: #{encoder_forward.3} parent=5 // pred_region
      // Predicated region
      $region21: #{encoder_forward.3} parent=19 // pred_check
        %p103 = pneg %p28
      $region22: #{encoder_forward.3} parent=19 // pred_check_branch
        %105 = sbr.rel (%p103) target = $region24
      $region23: #{encoder_forward.3} parent=19 // pred_region
        %p106 = scmp.lt.s32.totalorder %s8, 1
        %s107 = scalar_select %p106, %s8, 1
        %s108 = smul.addr %s107, 32
        %s109 = smul.addr %s108, 8
        %s110 = scalar_lea.vmem %s0, %s109
      $region24: #{encoder_forward.3} parent=19 // pred_fallthru
        _
    $region20: #{encoder_forward.3} parent=5 // pred_fallthru
      _
    %p111 = scmp.le.s32.totalorder 1, %s8
    %p112 = scmp.lt.s32.totalorder %s8, 3
    %p113 = pnand %p111, %p112
    %p114 = pneg %p113
    // Predicated region
    $region25: #{encoder_forward.3} parent=5 // pred_check
      _
    $region26: #{encoder_forward.3} parent=5 // pred_check_branch
      %116 = sbr.rel (%p113) target = $region28
    $region27: #{encoder_forward.3} parent=5 // pred_region
      %s117 = ssub.s32 %s8, 1
      %p118 = scmp.lt.s32.totalorder %s13, 1
      %s119 = scalar_select %p118, %s13, 1
      %s120 = smul.addr %s119, 32
      %s121 = smul.addr %s120, 8
      %s122 = scalar_lea.vmem %s0, %s121
      %p123 = pneg %p34
      %p124 = pneg %p31
      %p125 = pneg %p55
      %p126 = pneg %p52
      %p127 = pneg %p81
      %p128 = pneg %p78
      %p129 = scmp.lt.s32.totalorder %s13, 1
      %s130 = scalar_select %p129, %s13, 1
      %s131 = smul.addr %s130, 8
      %s132 = smul.addr %s131, 8
      %s133 = scalar_lea.vmem %s2, %s132
      %p134 = scmp.lt.s32.totalorder %s13, 1
      %s135 = scalar_select %p134, %s13, 1
      %s136 = smul.addr %s135, 32
      %s137 = smul.addr %s136, 8
      %s138 = scalar_lea.vmem %s0, %s137
      %p139 = scmp.lt.s32.totalorder %s13, 1
      %s140 = scalar_select %p139, %s13, 1
      %s141 = smul.addr %s140, 8
      %s142 = smul.addr %s141, 8
      %s143 = scalar_lea.vmem %s2, %s142
      %v144 = vld [vmem:[%s138] sm:$0xff]
      %v145 = vld [vmem:[%s138 + $0x8] sm:$0xff]
      %v146 = vld [vmem:[%s138 + $0x10] sm:$0xff]
      %v147 = vld [vmem:[%s138 + $0x18] sm:$0xff]
      %v148 = vld [vmem:[%s138 + $0x20] sm:$0xff]
      %v149 = vld [vmem:[%s138 + $0x28] sm:$0xff]
      %v150 = vld [vmem:[%s138 + $0x30] sm:$0xff]
      %v151 = vld [vmem:[%s138 + $0x38] sm:$0xff]
      %v152 = vld [vmem:[%s138 + $0x40] sm:$0xff]
      %v153 = vld [vmem:[%s138 + $0x48] sm:$0xff]
      %v154 = vld [vmem:[%s138 + $0x50] sm:$0xff]
      %v155 = vld [vmem:[%s138 + $0x58] sm:$0xff]
      %v156 = vld [vmem:[%s138 + $0x60] sm:$0xff]
      %v157 = vld [vmem:[%s138 + $0x68] sm:$0xff]
      %v158 = vld [vmem:[%s138 + $0x70] sm:$0xff]
      %v159 = vld [vmem:[%s138 + $0x78] sm:$0xff]
      %v160 = vld [vmem:[%s138 + $0x80] sm:$0xff]
      %v161 = vld [vmem:[%s138 + $0x88] sm:$0xff]
      %v162 = vld [vmem:[%s138 + $0x90] sm:$0xff]
      %v163 = vld [vmem:[%s138 + $0x98] sm:$0xff]
      %v164 = vld [vmem:[%s138 + $0xa0] sm:$0xff]
      %v165 = vld [vmem:[%s138 + $0xa8] sm:$0xff]
      %v166 = vld [vmem:[%s138 + $0xb0] sm:$0xff]
      %v167 = vld [vmem:[%s138 + $0xb8] sm:$0xff]
      %v168 = vld [vmem:[%s138 + $0xc0] sm:$0xff]
      %v169 = vld [vmem:[%s138 + $0xc8] sm:$0xff]
      %v170 = vld [vmem:[%s138 + $0xd0] sm:$0xff]
      %v171 = vld [vmem:[%s138 + $0xd8] sm:$0xff]
      %v172 = vld [vmem:[%s138 + $0xe0] sm:$0xff]
      %v173 = vld [vmem:[%s138 + $0xe8] sm:$0xff]
      %v174 = vld [vmem:[%s138 + $0xf0] sm:$0xff]
      %v175 = vld [vmem:[%s138 + $0xf8] sm:$0xff]
      %v176 = vld [vmem:[%s1] sm:$0xff]
      %v177 = vld [vmem:[%s1 + $0x8] sm:$0xff]
      %v178 = vld [vmem:[%s1 + $0x10] sm:$0xff]
      %v179 = vld [vmem:[%s1 + $0x18] sm:$0xff]
      %v180 = vld [vmem:[%s1 + $0x20] sm:$0xff]
      %v181 = vld [vmem:[%s1 + $0x28] sm:$0xff]
      %v182 = vld [vmem:[%s1 + $0x30] sm:$0xff]
      %v183 = vld [vmem:[%s1 + $0x38] sm:$0xff]
      %v184 = vld [vmem:[%s1 + $0x40] sm:$0xff]
      %v185 = vld [vmem:[%s1 + $0x48] sm:$0xff]
      %v186 = vld [vmem:[%s1 + $0x50] sm:$0xff]
      %v187 = vld [vmem:[%s1 + $0x58] sm:$0xff]
      %v188 = vld [vmem:[%s1 + $0x60] sm:$0xff]
      %v189 = vld [vmem:[%s1 + $0x68] sm:$0xff]
      %v190 = vld [vmem:[%s1 + $0x70] sm:$0xff]
      %v191 = vld [vmem:[%s1 + $0x78] sm:$0xff]
      %192 = vmatprep.subr.mxu0 0.0
      %193 = vmatpush1.msra.mxu0 %v159
      %194 = vmatprep.subr.mxu0 0.0
      %195 = vmatpush1.msra.mxu0 %v158
      %196 = vmatprep.subr.mxu0 0.0
      %197 = vmatpush1.msra.mxu0 %v157
      %198 = vmatprep.subr.mxu0 0.0
      %199 = vmatpush1.msra.mxu0 %v156
      %200 = vmatprep.subr.mxu0 0.0
      %201 = vmatpush1.msra.mxu0 %v155
      %202 = vmatprep.subr.mxu0 0.0
      %203 = vmatpush1.msra.mxu0 %v154
      %204 = vmatprep.subr.mxu0 0.0
      %205 = vmatpush1.msra.mxu0 %v153
      %206 = vmatprep.subr.mxu0 0.0
      %207 = vmatpush1.msra.mxu0 %v152
      %208 = vmatprep.subr.mxu0 0.0
      %209 = vmatpush1.msra.mxu0 %v151
      %210 = vmatprep.subr.mxu0 0.0
      %211 = vmatpush1.msra.mxu0 %v150
      %212 = vmatprep.subr.mxu0 0.0
      %213 = vmatpush1.msra.mxu0 %v149
      %214 = vmatprep.subr.mxu0 0.0
      %215 = vmatpush1.msra.mxu0 %v148
      %216 = vmatprep.subr.mxu0 0.0
      %217 = vmatpush1.msra.mxu0 %v147
      %218 = vmatprep.subr.mxu0 0.0
      %219 = vmatpush1.msra.mxu0 %v146
      %220 = vmatprep.subr.mxu0 0.0
      %221 = vmatpush1.msra.mxu0 %v145
      %222 = vmatprep.subr.mxu0 0.0
      %223 = vmatpush1.msra.mxu0 %v144
      %224 = vmatprep.subr.mxu0 0.0
      %225 = vmatpush2.msra.mxu0 %v175
      %226 = vmatprep.subr.mxu0 0.0
      %227 = vmatpush2.msra.mxu0 %v174
      %228 = vmatprep.subr.mxu0 0.0
      %229 = vmatpush2.msra.mxu0 %v173
      %230 = vmatprep.subr.mxu0 0.0
      %231 = vmatpush2.msra.mxu0 %v172
      %232 = vmatprep.subr.mxu0 0.0
      %233 = vmatpush2.msra.mxu0 %v171
      %234 = vmatprep.subr.mxu0 0.0
      %235 = vmatpush2.msra.mxu0 %v170
      %236 = vmatprep.subr.mxu0 0.0
      %237 = vmatpush2.msra.mxu0 %v169
      %238 = vmatprep.subr.mxu0 0.0
      %239 = vmatpush2.msra.mxu0 %v168
      %240 = vmatprep.subr.mxu0 0.0
      %241 = vmatpush2.msra.mxu0 %v167
      %242 = vmatprep.subr.mxu0 0.0
      %243 = vmatpush2.msra.mxu0 %v166
      %244 = vmatprep.subr.mxu0 0.0
      %245 = vmatpush2.msra.mxu0 %v165
      %246 = vmatprep.subr.mxu0 0.0
      %247 = vmatpush2.msra.mxu0 %v164
      %248 = vmatprep.subr.mxu0 0.0
      %249 = vmatpush2.msra.mxu0 %v163
      %250 = vmatprep.subr.mxu0 0.0
      %251 = vmatpush2.msra.mxu0 %v162
      %252 = vmatprep.subr.mxu0 0.0
      %253 = vmatpush2.msra.mxu0 %v161
      %254 = vmatprep.subr.mxu0 0.0
      %255 = vmatpush2.msra.mxu0 %v160
      %256 = vmatprep.mubr.f32.mxu0 %v177
      %257 = vmatmul.mubr.f32.gmra.mxu0 %v176
      %v258 = vpop.f32.mrf.mxu0
      %v259 = vadd.f32 0.0, %v258
      %v260 = vpop.f32.mrf.mxu0
      %261 = vmatprep.mubr.f32.mxu0 %v179
      %262 = vmatmul.mubr.f32.gmra.mxu0 %v178
      %v263 = vpop.f32.mrf.mxu0
      %v264 = vadd.f32 0.0, %v263
      %v265 = vpop.f32.mrf.mxu0
      %266 = vmatprep.mubr.f32.mxu0 %v181
      %267 = vmatmul.mubr.f32.gmra.mxu0 %v180
      %v268 = vpop.f32.mrf.mxu0
      %v269 = vadd.f32 0.0, %v268
      %v270 = vpop.f32.mrf.mxu0
      %271 = vmatprep.mubr.f32.mxu0 %v183
      %272 = vmatmul.mubr.f32.gmra.mxu0 %v182
      %v273 = vpop.f32.mrf.mxu0
      %v274 = vadd.f32 0.0, %v273
      %v275 = vpop.f32.mrf.mxu0
      %276 = vmatprep.mubr.f32.mxu0 %v185
      %277 = vmatmul.mubr.f32.gmra.mxu0 %v184
      %v278 = vpop.f32.mrf.mxu0
      %v279 = vadd.f32 0.0, %v278
      %v280 = vpop.f32.mrf.mxu0
      %281 = vmatprep.mubr.f32.mxu0 %v187
      %282 = vmatmul.mubr.f32.gmra.mxu0 %v186
      %v283 = vpop.f32.mrf.mxu0
      %v284 = vadd.f32 0.0, %v283
      %v285 = vpop.f32.mrf.mxu0
      %286 = vmatprep.mubr.f32.mxu0 %v189
      %287 = vmatmul.mubr.f32.gmra.mxu0 %v188
      %v288 = vpop.f32.mrf.mxu0
      %v289 = vadd.f32 0.0, %v288
      %v290 = vpop.f32.mrf.mxu0
      %291 = vmatprep.mubr.f32.mxu0 %v191
      %292 = vmatmul.mubr.f32.gmra.mxu0 %v190
      %v293 = vpop.f32.mrf.mxu0
      %v294 = vadd.f32 0.0, %v293
      %v295 = vpop.f32.mrf.mxu0
      %296 = vdwg.mxu0
      %s297 = scalar_lea.vmem %s1, 128
      %v298 = vld [vmem:[%s297] sm:$0xff]
      %v299 = vld [vmem:[%s297 + $0x8] sm:$0xff]
      %v300 = vld [vmem:[%s297 + $0x10] sm:$0xff]
      %v301 = vld [vmem:[%s297 + $0x18] sm:$0xff]
      %v302 = vld [vmem:[%s297 + $0x20] sm:$0xff]
      %v303 = vld [vmem:[%s297 + $0x28] sm:$0xff]
      %v304 = vld [vmem:[%s297 + $0x30] sm:$0xff]
      %v305 = vld [vmem:[%s297 + $0x38] sm:$0xff]
      %v306 = vld [vmem:[%s297 + $0x40] sm:$0xff]
      %v307 = vld [vmem:[%s297 + $0x48] sm:$0xff]
      %v308 = vld [vmem:[%s297 + $0x50] sm:$0xff]
      %v309 = vld [vmem:[%s297 + $0x58] sm:$0xff]
      %v310 = vld [vmem:[%s297 + $0x60] sm:$0xff]
      %v311 = vld [vmem:[%s297 + $0x68] sm:$0xff]
      %v312 = vld [vmem:[%s297 + $0x70] sm:$0xff]
      %v313 = vld [vmem:[%s297 + $0x78] sm:$0xff]
      %314 = vmatprep.subr.mxu0 0.0
      %315 = vmatpush1.msra.mxu0 %v159
      %316 = vmatprep.subr.mxu0 0.0
      %317 = vmatpush1.msra.mxu0 %v158
      %318 = vmatprep.subr.mxu0 0.0
      %319 = vmatpush1.msra.mxu0 %v157
      %320 = vmatprep.subr.mxu0 0.0
      %321 = vmatpush1.msra.mxu0 %v156
      %322 = vmatprep.subr.mxu0 0.0
      %323 = vmatpush1.msra.mxu0 %v155
      %324 = vmatprep.subr.mxu0 0.0
      %325 = vmatpush1.msra.mxu0 %v154
      %326 = vmatprep.subr.mxu0 0.0
      %327 = vmatpush1.msra.mxu0 %v153
      %328 = vmatprep.subr.mxu0 0.0
      %329 = vmatpush1.msra.mxu0 %v152
      %330 = vmatprep.subr.mxu0 0.0
      %331 = vmatpush1.msra.mxu0 %v151
      %332 = vmatprep.subr.mxu0 0.0
      %333 = vmatpush1.msra.mxu0 %v150
      %334 = vmatprep.subr.mxu0 0.0
      %335 = vmatpush1.msra.mxu0 %v149
      %336 = vmatprep.subr.mxu0 0.0
      %337 = vmatpush1.msra.mxu0 %v148
      %338 = vmatprep.subr.mxu0 0.0
      %339 = vmatpush1.msra.mxu0 %v147
      %340 = vmatprep.subr.mxu0 0.0
      %341 = vmatpush1.msra.mxu0 %v146
      %342 = vmatprep.subr.mxu0 0.0
      %343 = vmatpush1.msra.mxu0 %v145
      %344 = vmatprep.subr.mxu0 0.0
      %345 = vmatpush1.msra.mxu0 %v144
      %346 = vmatprep.subr.mxu0 0.0
      %347 = vmatpush2.msra.mxu0 %v175
      %348 = vmatprep.subr.mxu0 0.0
      %349 = vmatpush2.msra.mxu0 %v174
      %350 = vmatprep.subr.mxu0 0.0
      %351 = vmatpush2.msra.mxu0 %v173
      %352 = vmatprep.subr.mxu0 0.0
      %353 = vmatpush2.msra.mxu0 %v172
      %354 = vmatprep.subr.mxu0 0.0
      %355 = vmatpush2.msra.mxu0 %v171
      %356 = vmatprep.subr.mxu0 0.0
      %357 = vmatpush2.msra.mxu0 %v170
      %358 = vmatprep.subr.mxu0 0.0
      %359 = vmatpush2.msra.mxu0 %v169
      %360 = vmatprep.subr.mxu0 0.0
      %361 = vmatpush2.msra.mxu0 %v168
      %362 = vmatprep.subr.mxu0 0.0
      %363 = vmatpush2.msra.mxu0 %v167
      %364 = vmatprep.subr.mxu0 0.0
      %365 = vmatpush2.msra.mxu0 %v166
      %366 = vmatprep.subr.mxu0 0.0
      %367 = vmatpush2.msra.mxu0 %v165
      %368 = vmatprep.subr.mxu0 0.0
      %369 = vmatpush2.msra.mxu0 %v164
      %370 = vmatprep.subr.mxu0 0.0
      %371 = vmatpush2.msra.mxu0 %v163
      %372 = vmatprep.subr.mxu0 0.0
      %373 = vmatpush2.msra.mxu0 %v162
      %374 = vmatprep.subr.mxu0 0.0
      %375 = vmatpush2.msra.mxu0 %v161
      %376 = vmatprep.subr.mxu0 0.0
      %377 = vmatpush2.msra.mxu0 %v160
      %378 = vmatprep.mubr.f32.mxu0 %v299
      %379 = vmatmul.mubr.f32.gmra.mxu0 %v298
      %v380 = vpop.f32.mrf.mxu0
      %v381 = vadd.f32 0.0, %v380
      %v382 = vpop.f32.mrf.mxu0
      %383 = vmatprep.mubr.f32.mxu0 %v301
      %384 = vmatmul.mubr.f32.gmra.mxu0 %v300
      %v385 = vpop.f32.mrf.mxu0
      %v386 = vadd.f32 0.0, %v385
      %v387 = vpop.f32.mrf.mxu0
      %388 = vmatprep.mubr.f32.mxu0 %v303
      %389 = vmatmul.mubr.f32.gmra.mxu0 %v302
      %v390 = vpop.f32.mrf.mxu0
      %v391 = vadd.f32 0.0, %v390
      %v392 = vpop.f32.mrf.mxu0
      %393 = vmatprep.mubr.f32.mxu0 %v305
      %394 = vmatmul.mubr.f32.gmra.mxu0 %v304
      %v395 = vpop.f32.mrf.mxu0
      %v396 = vadd.f32 0.0, %v395
      %v397 = vpop.f32.mrf.mxu0
      %398 = vmatprep.mubr.f32.mxu0 %v307
      %399 = vmatmul.mubr.f32.gmra.mxu0 %v306
      %v400 = vpop.f32.mrf.mxu0
      %v401 = vadd.f32 0.0, %v400
      %v402 = vpop.f32.mrf.mxu0
      %403 = vmatprep.mubr.f32.mxu0 %v309
      %404 = vmatmul.mubr.f32.gmra.mxu0 %v308
      %v405 = vpop.f32.mrf.mxu0
      %v406 = vadd.f32 0.0, %v405
      %v407 = vpop.f32.mrf.mxu0
      %408 = vmatprep.mubr.f32.mxu0 %v311
      %409 = vmatmul.mubr.f32.gmra.mxu0 %v310
      %v410 = vpop.f32.mrf.mxu0
      %v411 = vadd.f32 0.0, %v410
      %v412 = vpop.f32.mrf.mxu0
      %413 = vmatprep.mubr.f32.mxu0 %v313
      %414 = vmatmul.mubr.f32.gmra.mxu0 %v312
      %v415 = vpop.f32.mrf.mxu0
      %v416 = vadd.f32 0.0, %v415
      %v417 = vpop.f32.mrf.mxu0
      %418 = vdwg.mxu0
      %v419 = vmax.f32 %v259, %v381
      %v420 = vmax.f32 %v264, %v386
      %v421 = vmax.f32 %v269, %v391
      %v422 = vmax.f32 %v274, %v396
      %v423 = vmax.f32 %v279, %v401
      %v424 = vmax.f32 %v284, %v406
      %v425 = vmax.f32 %v289, %v411
      %v426 = vmax.f32 %v294, %v416
      %s427 = scalar_lea.vmem %s1, 256
      %v428 = vld [vmem:[%s427] sm:$0xff]
      %v429 = vld [vmem:[%s427 + $0x8] sm:$0xff]
      %v430 = vld [vmem:[%s427 + $0x10] sm:$0xff]
      %v431 = vld [vmem:[%s427 + $0x18] sm:$0xff]
      %v432 = vld [vmem:[%s427 + $0x20] sm:$0xff]
      %v433 = vld [vmem:[%s427 + $0x28] sm:$0xff]
      %v434 = vld [vmem:[%s427 + $0x30] sm:$0xff]
      %v435 = vld [vmem:[%s427 + $0x38] sm:$0xff]
      %v436 = vld [vmem:[%s427 + $0x40] sm:$0xff]
      %v437 = vld [vmem:[%s427 + $0x48] sm:$0xff]
      %v438 = vld [vmem:[%s427 + $0x50] sm:$0xff]
      %v439 = vld [vmem:[%s427 + $0x58] sm:$0xff]
      %v440 = vld [vmem:[%s427 + $0x60] sm:$0xff]
      %v441 = vld [vmem:[%s427 + $0x68] sm:$0xff]
      %v442 = vld [vmem:[%s427 + $0x70] sm:$0xff]
      %v443 = vld [vmem:[%s427 + $0x78] sm:$0xff]
      %444 = vmatprep.subr.mxu0 0.0
      %445 = vmatpush1.msra.mxu0 %v159
      %446 = vmatprep.subr.mxu0 0.0
      %447 = vmatpush1.msra.mxu0 %v158
      %448 = vmatprep.subr.mxu0 0.0
      %449 = vmatpush1.msra.mxu0 %v157
      %450 = vmatprep.subr.mxu0 0.0
      %451 = vmatpush1.msra.mxu0 %v156
      %452 = vmatprep.subr.mxu0 0.0
      %453 = vmatpush1.msra.mxu0 %v155
      %454 = vmatprep.subr.mxu0 0.0
      %455 = vmatpush1.msra.mxu0 %v154
      %456 = vmatprep.subr.mxu0 0.0
      %457 = vmatpush1.msra.mxu0 %v153
      %458 = vmatprep.subr.mxu0 0.0
      %459 = vmatpush1.msra.mxu0 %v152
      %460 = vmatprep.subr.mxu0 0.0
      %461 = vmatpush1.msra.mxu0 %v151
      %462 = vmatprep.subr.mxu0 0.0
      %463 = vmatpush1.msra.mxu0 %v150
      %464 = vmatprep.subr.mxu0 0.0
      %465 = vmatpush1.msra.mxu0 %v149
      %466 = vmatprep.subr.mxu0 0.0
      %467 = vmatpush1.msra.mxu0 %v148
      %468 = vmatprep.subr.mxu0 0.0
      %469 = vmatpush1.msra.mxu0 %v147
      %470 = vmatprep.subr.mxu0 0.0
      %471 = vmatpush1.msra.mxu0 %v146
      %472 = vmatprep.subr.mxu0 0.0
      %473 = vmatpush1.msra.mxu0 %v145
      %474 = vmatprep.subr.mxu0 0.0
      %475 = vmatpush1.msra.mxu0 %v144
      %476 = vmatprep.subr.mxu0 0.0
      %477 = vmatpush2.msra.mxu0 %v175
      %478 = vmatprep.subr.mxu0 0.0
      %479 = vmatpush2.msra.mxu0 %v174
      %480 = vmatprep.subr.mxu0 0.0
      %481 = vmatpush2.msra.mxu0 %v173
      %482 = vmatprep.subr.mxu0 0.0
      %483 = vmatpush2.msra.mxu0 %v172
      %484 = vmatprep.subr.mxu0 0.0
      %485 = vmatpush2.msra.mxu0 %v171
      %486 = vmatprep.subr.mxu0 0.0
      %487 = vmatpush2.msra.mxu0 %v170
      %488 = vmatprep.subr.mxu0 0.0
      %489 = vmatpush2.msra.mxu0 %v169
      %490 = vmatprep.subr.mxu0 0.0
      %491 = vmatpush2.msra.mxu0 %v168
      %492 = vmatprep.subr.mxu0 0.0
      %493 = vmatpush2.msra.mxu0 %v167
      %494 = vmatprep.subr.mxu0 0.0
      %495 = vmatpush2.msra.mxu0 %v166
      %496 = vmatprep.subr.mxu0 0.0
      %497 = vmatpush2.msra.mxu0 %v165
      %498 = vmatprep.subr.mxu0 0.0
      %499 = vmatpush2.msra.mxu0 %v164
      %500 = vmatprep.subr.mxu0 0.0
      %501 = vmatpush2.msra.mxu0 %v163
      %502 = vmatprep.subr.mxu0 0.0
      %503 = vmatpush2.msra.mxu0 %v162
      %504 = vmatprep.subr.mxu0 0.0
      %505 = vmatpush2.msra.mxu0 %v161
      %506 = vmatprep.subr.mxu0 0.0
      %507 = vmatpush2.msra.mxu0 %v160
      %508 = vmatprep.mubr.f32.mxu0 %v429
      %509 = vmatmul.mubr.f32.gmra.mxu0 %v428
      %v510 = vpop.f32.mrf.mxu0
      %v511 = vadd.f32 0.0, %v510
      %v512 = vpop.f32.mrf.mxu0
      %513 = vmatprep.mubr.f32.mxu0 %v431
      %514 = vmatmul.mubr.f32.gmra.mxu0 %v430
      %v515 = vpop.f32.mrf.mxu0
      %v516 = vadd.f32 0.0, %v515
      %v517 = vpop.f32.mrf.mxu0
      %518 = vmatprep.mubr.f32.mxu0 %v433
      %519 = vmatmul.mubr.f32.gmra.mxu0 %v432
      %v520 = vpop.f32.mrf.mxu0
      %v521 = vadd.f32 0.0, %v520
      %v522 = vpop.f32.mrf.mxu0
      %523 = vmatprep.mubr.f32.mxu0 %v435
      %524 = vmatmul.mubr.f32.gmra.mxu0 %v434
      %v525 = vpop.f32.mrf.mxu0
      %v526 = vadd.f32 0.0, %v525
      %v527 = vpop.f32.mrf.mxu0
      %528 = vmatprep.mubr.f32.mxu0 %v437
      %529 = vmatmul.mubr.f32.gmra.mxu0 %v436
      %v530 = vpop.f32.mrf.mxu0
      %v531 = vadd.f32 0.0, %v530
      %v532 = vpop.f32.mrf.mxu0
      %533 = vmatprep.mubr.f32.mxu0 %v439
      %534 = vmatmul.mubr.f32.gmra.mxu0 %v438
      %v535 = vpop.f32.mrf.mxu0
      %v536 = vadd.f32 0.0, %v535
      %v537 = vpop.f32.mrf.mxu0
      %538 = vmatprep.mubr.f32.mxu0 %v441
      %539 = vmatmul.mubr.f32.gmra.mxu0 %v440
      %v540 = vpop.f32.mrf.mxu0
      %v541 = vadd.f32 0.0, %v540
      %v542 = vpop.f32.mrf.mxu0
      %543 = vmatprep.mubr.f32.mxu0 %v443
      %544 = vmatmul.mubr.f32.gmra.mxu0 %v442
      %v545 = vpop.f32.mrf.mxu0
      %v546 = vadd.f32 0.0, %v545
      %v547 = vpop.f32.mrf.mxu0
      %548 = vdwg.mxu0
      %v549 = vmax.f32 %v419, %v511
      %v550 = vmax.f32 %v420, %v516
      %v551 = vmax.f32 %v421, %v521
      %v552 = vmax.f32 %v422, %v526
      %v553 = vmax.f32 %v423, %v531
      %v554 = vmax.f32 %v424, %v536
      %v555 = vmax.f32 %v425, %v541
      %v556 = vmax.f32 %v426, %v546
      %s557 = scalar_lea.vmem %s1, 384
      %v558 = vld [vmem:[%s557] sm:$0xff]
      %v559 = vld [vmem:[%s557 + $0x8] sm:$0xff]
      %v560 = vld [vmem:[%s557 + $0x10] sm:$0xff]
      %v561 = vld [vmem:[%s557 + $0x18] sm:$0xff]
      %v562 = vld [vmem:[%s557 + $0x20] sm:$0xff]
      %v563 = vld [vmem:[%s557 + $0x28] sm:$0xff]
      %v564 = vld [vmem:[%s557 + $0x30] sm:$0xff]
      %v565 = vld [vmem:[%s557 + $0x38] sm:$0xff]
      %v566 = vld [vmem:[%s557 + $0x40] sm:$0xff]
      %v567 = vld [vmem:[%s557 + $0x48] sm:$0xff]
      %v568 = vld [vmem:[%s557 + $0x50] sm:$0xff]
      %v569 = vld [vmem:[%s557 + $0x58] sm:$0xff]
      %v570 = vld [vmem:[%s557 + $0x60] sm:$0xff]
      %v571 = vld [vmem:[%s557 + $0x68] sm:$0xff]
      %v572 = vld [vmem:[%s557 + $0x70] sm:$0xff]
      %v573 = vld [vmem:[%s557 + $0x78] sm:$0xff]
      %574 = vmatprep.subr.mxu0 0.0
      %575 = vmatpush1.msra.mxu0 %v159
      %576 = vmatprep.subr.mxu0 0.0
      %577 = vmatpush1.msra.mxu0 %v158
      %578 = vmatprep.subr.mxu0 0.0
      %579 = vmatpush1.msra.mxu0 %v157
      %580 = vmatprep.subr.mxu0 0.0
      %581 = vmatpush1.msra.mxu0 %v156
      %582 = vmatprep.subr.mxu0 0.0
      %583 = vmatpush1.msra.mxu0 %v155
      %584 = vmatprep.subr.mxu0 0.0
      %585 = vmatpush1.msra.mxu0 %v154
      %586 = vmatprep.subr.mxu0 0.0
      %587 = vmatpush1.msra.mxu0 %v153
      %588 = vmatprep.subr.mxu0 0.0
      %589 = vmatpush1.msra.mxu0 %v152
      %590 = vmatprep.subr.mxu0 0.0
      %591 = vmatpush1.msra.mxu0 %v151
      %592 = vmatprep.subr.mxu0 0.0
      %593 = vmatpush1.msra.mxu0 %v150
      %594 = vmatprep.subr.mxu0 0.0
      %595 = vmatpush1.msra.mxu0 %v149
      %596 = vmatprep.subr.mxu0 0.0
      %597 = vmatpush1.msra.mxu0 %v148
      %598 = vmatprep.subr.mxu0 0.0
      %599 = vmatpush1.msra.mxu0 %v147
      %600 = vmatprep.subr.mxu0 0.0
      %601 = vmatpush1.msra.mxu0 %v146
      %602 = vmatprep.subr.mxu0 0.0
      %603 = vmatpush1.msra.mxu0 %v145
      %604 = vmatprep.subr.mxu0 0.0
      %605 = vmatpush1.msra.mxu0 %v144
      %606 = vmatprep.subr.mxu0 0.0
      %607 = vmatpush2.msra.mxu0 %v175
      %608 = vmatprep.subr.mxu0 0.0
      %609 = vmatpush2.msra.mxu0 %v174
      %610 = vmatprep.subr.mxu0 0.0
      %611 = vmatpush2.msra.mxu0 %v173
      %612 = vmatprep.subr.mxu0 0.0
      %613 = vmatpush2.msra.mxu0 %v172
      %614 = vmatprep.subr.mxu0 0.0
      %615 = vmatpush2.msra.mxu0 %v171
      %616 = vmatprep.subr.mxu0 0.0
      %617 = vmatpush2.msra.mxu0 %v170
      %618 = vmatprep.subr.mxu0 0.0
      %619 = vmatpush2.msra.mxu0 %v169
      %620 = vmatprep.subr.mxu0 0.0
      %621 = vmatpush2.msra.mxu0 %v168
      %622 = vmatprep.subr.mxu0 0.0
      %623 = vmatpush2.msra.mxu0 %v167
      %624 = vmatprep.subr.mxu0 0.0
      %625 = vmatpush2.msra.mxu0 %v166
      %626 = vmatprep.subr.mxu0 0.0
      %627 = vmatpush2.msra.mxu0 %v165
      %628 = vmatprep.subr.mxu0 0.0
      %629 = vmatpush2.msra.mxu0 %v164
      %630 = vmatprep.subr.mxu0 0.0
      %631 = vmatpush2.msra.mxu0 %v163
      %632 = vmatprep.subr.mxu0 0.0
      %633 = vmatpush2.msra.mxu0 %v162
      %634 = vmatprep.subr.mxu0 0.0
      %635 = vmatpush2.msra.mxu0 %v161
      %636 = vmatprep.subr.mxu0 0.0
      %637 = vmatpush2.msra.mxu0 %v160
      %638 = vmatprep.mubr.f32.mxu0 %v559
      %639 = vmatmul.mubr.f32.gmra.mxu0 %v558
      %v640 = vpop.f32.mrf.mxu0
      %v641 = vadd.f32 0.0, %v640
      %v642 = vpop.f32.mrf.mxu0
      %643 = vmatprep.mubr.f32.mxu0 %v561
      %644 = vmatmul.mubr.f32.gmra.mxu0 %v560
      %v645 = vpop.f32.mrf.mxu0
      %v646 = vadd.f32 0.0, %v645
      %v647 = vpop.f32.mrf.mxu0
      %648 = vmatprep.mubr.f32.mxu0 %v563
      %649 = vmatmul.mubr.f32.gmra.mxu0 %v562
      %v650 = vpop.f32.mrf.mxu0
      %v651 = vadd.f32 0.0, %v650
      %v652 = vpop.f32.mrf.mxu0
      %653 = vmatprep.mubr.f32.mxu0 %v565
      %654 = vmatmul.mubr.f32.gmra.mxu0 %v564
      %v655 = vpop.f32.mrf.mxu0
      %v656 = vadd.f32 0.0, %v655
      %v657 = vpop.f32.mrf.mxu0
      %658 = vmatprep.mubr.f32.mxu0 %v567
      %659 = vmatmul.mubr.f32.gmra.mxu0 %v566
      %v660 = vpop.f32.mrf.mxu0
      %v661 = vadd.f32 0.0, %v660
      %v662 = vpop.f32.mrf.mxu0
      %663 = vmatprep.mubr.f32.mxu0 %v569
      %664 = vmatmul.mubr.f32.gmra.mxu0 %v568
      %v665 = vpop.f32.mrf.mxu0
      %v666 = vadd.f32 0.0, %v665
      %v667 = vpop.f32.mrf.mxu0
      %668 = vmatprep.mubr.f32.mxu0 %v571
      %669 = vmatmul.mubr.f32.gmra.mxu0 %v570
      %v670 = vpop.f32.mrf.mxu0
      %v671 = vadd.f32 0.0, %v670
      %v672 = vpop.f32.mrf.mxu0
      %673 = vmatprep.mubr.f32.mxu0 %v573
      %674 = vmatmul.mubr.f32.gmra.mxu0 %v572
      %v675 = vpop.f32.mrf.mxu0
      %v676 = vadd.f32 0.0, %v675
      %v677 = vpop.f32.mrf.mxu0
      %678 = vdwg.mxu0
      %v679 = vmax.f32 %v549, %v641
      %v680 = vmax.f32 %v550, %v646
      %v681 = vmax.f32 %v551, %v651
      %v682 = vmax.f32 %v552, %v656
      %v683 = vmax.f32 %v553, %v661
      %v684 = vmax.f32 %v554, %v666
      %v685 = vmax.f32 %v555, %v671
      %v686 = vmax.f32 %v556, %v676
      %vm687 = vcmask 31744
      %688 = vst.msk [vmem:[%s143] sm:$0xff] %vm687, %v679
      %689 = vst.msk [vmem:[%s143 + $0x8] sm:$0xff] %vm687, %v680
      %690 = vst.msk [vmem:[%s143 + $0x10] sm:$0xff] %vm687, %v681
      %691 = vst.msk [vmem:[%s143 + $0x18] sm:$0xff] %vm687, %v682
      %692 = vst.msk [vmem:[%s143 + $0x20] sm:$0xff] %vm687, %v683
      %693 = vst.msk [vmem:[%s143 + $0x28] sm:$0xff] %vm687, %v684
      %694 = vst.msk [vmem:[%s143 + $0x30] sm:$0xff] %vm687, %v685
      %695 = vst.msk [vmem:[%s143 + $0x38] sm:$0xff] %vm687, %v686
      %p696 = scmp.lt.s32.totalorder %s13, 1
      %s697 = scalar_select %p696, %s13, 1
      %s698 = smul.addr %s697, 8
      %s699 = smul.addr %s698, 8
      %s700 = scalar_lea.vmem %s2, %s699
      // Predicated region
      $region29: #{encoder_forward.3} parent=27 // pred_check
        %p701 = pneg %p78
      $region30: #{encoder_forward.3} parent=27 // pred_check_branch
        %703 = sbr.rel (%p701) target = $region32
      $region31: #{encoder_forward.3} parent=27 // pred_region
        _
      $region32: #{encoder_forward.3} parent=27 // pred_fallthru
        _
    $region28: #{encoder_forward.3} parent=5 // pred_fallthru
      _
    %p704 = scmp.le.s32.totalorder 2, %s8
    // Predicated region
    $region33: #{encoder_forward.3} parent=5 // pred_check
      %p705 = pneg %p704
    $region34: #{encoder_forward.3} parent=5 // pred_check_branch
      %707 = sbr.rel (%p705) target = $region36
    $region35: #{encoder_forward.3} parent=5 // pred_region
      %s708 = ssub.s32 %s8, 2
      // Predicated region
      $region37: #{encoder_forward.3} parent=35 // pred_check
        %p709 = pneg %p84
      $region38: #{encoder_forward.3} parent=35 // pred_check_branch
        %711 = sbr.rel (%p709) target = $region40
      $region39: #{encoder_forward.3} parent=35 // pred_region
        %p712 = scmp.lt.s32.totalorder %s14, 1
        %s713 = scalar_select %p712, %s14, 1
        %s714 = smul.addr %s713, 8
        %s715 = smul.addr %s714, 8
        %s716 = scalar_lea.vmem %s2, %s715
      $region40: #{encoder_forward.3} parent=35 // pred_fallthru
        _
    $region36: #{encoder_forward.3} parent=5 // pred_fallthru
      _
  $region6: #{encoder_forward.3} parent=0 // loop_footer
    %s12 = sadd.s32 1, %s8
  $region7: #{encoder_forward.3} parent=0 // loop_footer_branch
    %7 = sbr.rel target = $region3
  $region8: #{encoder_forward.3} parent=0 // loop_exit
    _

// kernel: encoder_forward.5
$region0: #{encoder_forward.5}
  #allocation0 [shape = 'u32[]', space=smem, size = 0x4, offset = 0x4, fixed_abs, tag = 'smem constant byte address 0x4 - core index']
  #allocation1 [shape = 'u32[144,128]{1,0:T(1,128)}', space=vmem, size = 0x12000, scoped, tag = 'internal scratch']
  #allocation2 [shape = 'f32[26,8]{1,0:T(8,128)}', space=vmem, size = 0x4000, scoped, tag = 'scratch operand']
  #allocation3 [shape = 'f32[26,16]{1,0:T(8,128)}', space=vmem, size = 0x4000, scoped, tag = 'scratch operand']
  %s0 = inlined_call_operand.vmem [shape: f32[2,16,8], index: 0, kind: input, shape index: {}]
  %s1 = inlined_call_operand.vmem [shape: f32[72,16], index: 1, kind: input, shape index: {}]
  %s2 = inlined_call_operand.vmem [shape: f32[1,16], index: 2, kind: input, shape index: {}]
  %s3 = inlined_call_operand.vmem [shape: f32[144,16], index: 3, kind: input, shape index: {}]
  %s4 = inlined_call_operand.vmem [shape: f32[1,16], index: 4, kind: input, shape index: {}]
  %s5 = inlined_call_operand.vmem [shape: f32[4,4,16], index: 5, kind: input, shape index: {}]
  %s6 = inlined_call_operand.hbm [shape: f32[2,16,16], index: 6, kind: output, shape index: {0}]
  %s7 = inlined_call_operand.hbm [shape: f32[2,4,16], index: 7, kind: output, shape index: {1}]
  %8 = xla_tuple %s6, %s7
  %s9 = sld [smem:[#allocation0]]
  $region65: #{encoder_forward.5} parent=0
    _
  %s11 = ssub.s32 1, %s9
  %s12 = scalar_select 0, %s11, %s9
  $region1: #{encoder_forward.5} parent=0
    #allocation4 [shape = 'u8[16384]{0}', space=vmem, size = 0x4000, scoped, tag = 'output window, operand 0']
    #allocation5 [shape = 's32[2]{0}', space=sflag, size = 0x8, scoped, tag = 'scoped memory for encoder_forward.5']
    #allocation6 [shape = 'u8[4096]{0}', space=vmem, size = 0x1000, scoped, tag = 'output window, operand 1']
    #allocation7 [shape = 's32[2]{0}', space=sflag, size = 0x8, scoped, tag = 'scoped memory for encoder_forward.5']
    %13 = vsyncpa [#allocation5], 0
    %s14 = scalar_lea.sflag [#allocation5], 1
    %15 = vsyncpa %s14, 0
    %16 = vsyncpa [#allocation7], 0
    %s17 = scalar_lea.sflag [#allocation7], 1
    %18 = vsyncpa %s17, 0
    loop: start=0, step=1, limit=4
    $region2: #{encoder_forward.5} parent=1 // loop_pre_header
      _
    $region3: #{encoder_forward.5} parent=1 // loop_header
      %s20 = sphi 0, %s24
      %p21 = scmp.ge.s32.totalorder %s20, 4
      %s30 = sphi 0, %s32
      %s33 = sphi 0, %s30
      %s34 = sphi 0, %s33
      %s50 = sphi 0, %s34
      %s54 = sphi 0, %s54
      %s56 = sphi 0, %s54
      %s57 = sphi 0, %s56
      %s71 = sphi 0, %s57
      %s75 = sphi 0, %s75
      %s77 = sphi 0, %s75
      %s78 = sphi 0, %s77
      %s92 = sphi 0, %s78
      %s96 = sphi 0, %s96
      %s98 = sphi 0, %s96
      %s99 = sphi 0, %s98
      %s113 = sphi 0, %s99
      %s117 = sphi 0, %s117
      %s119 = sphi 0, %s117
      %s120 = sphi 0, %s119
      %s134 = sphi 0, %s120
      %s138 = sphi 0, %s138
      %s140 = sphi 0, %s138
      %s141 = sphi 0, %s140
      %s155 = sphi 0, %s141
      %s161 = sphi 0, %s163
      %s164 = sphi 0, %s161
      %s165 = sphi 0, %s164
      %s181 = sphi 0, %s165
      %s187 = sphi 0, %s189
      %s190 = sphi 0, %s187
      %s191 = sphi 0, %s190
      %s207 = sphi 0, %s191
    $region4: #{encoder_forward.5} parent=1 // loop_header_branch
      %23 = sbr.rel (%p21) target = $region8
    $region5: #{encoder_forward.5} parent=1 // loop_body
      %s25 = ssub.s32 %s20, 1
      %s26 = ssub.s32 %s20, 2
      %s27 = sadd.s32 %s20, 1
      %s28 = ssub.s32 %s20, %s27
      %p29 = scmp.eq.s32.totalorder %s28, 0
      %s31 = sadd.s32 %s30, 1
      %s32 = scalar_select %p29, %s30, %s31
      %p35 = pneg %p29
      %p36 = scmp.eq.s32.totalorder %s20, 1
      %p37 = por %p35, %p36
      %p38 = scmp.ne.s32.totalorder %s30, %s33
      %p39 = scmp.eq.s32.totalorder %s20, 0
      %p40 = por %p38, %p39
      %p41 = scmp.ne.s32.totalorder %s30, %s33
      %p42 = scmp.eq.s32.totalorder %s25, 1
      %p43 = por %p41, %p42
      %p44 = scmp.ne.s32.totalorder %s33, %s34
      %p45 = scmp.eq.s32.totalorder %s25, 0
      %p46 = por %p44, %p45
      %p47 = scmp.ne.s32.totalorder %s33, %s34
      %p48 = scmp.eq.s32.totalorder %s26, 1
      %p49 = por %p47, %p48
      %p51 = scmp.ne.s32.totalorder %s34, %s50
      %p52 = scmp.eq.s32.totalorder %s26, 0
      %p53 = por %p51, %p52
      %s55 = sadd.s32 %s54, 1
      %p58 = scmp.eq.s32.totalorder %s20, 1
      %p59 = scmp.ne.s32.totalorder %s54, %s56
      %p60 = scmp.eq.s32.totalorder %s20, 0
      %p61 = por %p59, %p60
      %p62 = scmp.ne.s32.totalorder %s54, %s56
      %p63 = scmp.eq.s32.totalorder %s25, 1
      %p64 = por %p62, %p63
      %p65 = scmp.ne.s32.totalorder %s56, %s57
      %p66 = scmp.eq.s32.totalorder %s25, 0
      %p67 = por %p65, %p66
      %p68 = scmp.ne.s32.totalorder %s56, %s57
      %p69 = scmp.eq.s32.totalorder %s26, 1
      %p70 = por %p68, %p69
      %p72 = scmp.ne.s32.totalorder %s57, %s71
      %p73 = scmp.eq.s32.totalorder %s26, 0
      %p74 = por %p72, %p73
      %s76 = sadd.s32 %s75, 1
      %p79 = scmp.eq.s32.totalorder %s20, 1
      %p80 = scmp.ne.s32.totalorder %s75, %s77
      %p81 = scmp.eq.s32.totalorder %s20, 0
      %p82 = por %p80, %p81
      %p83 = scmp.ne.s32.totalorder %s75, %s77
      %p84 = scmp.eq.s32.totalorder %s25, 1
      %p85 = por %p83, %p84
      %p86 = scmp.ne.s32.totalorder %s77, %s78
      %p87 = scmp.eq.s32.totalorder %s25, 0
      %p88 = por %p86, %p87
      %p89 = scmp.ne.s32.totalorder %s77, %s78
      %p90 = scmp.eq.s32.totalorder %s26, 1
      %p91 = por %p89, %p90
      %p93 = scmp.ne.s32.totalorder %s78, %s92
      %p94 = scmp.eq.s32.totalorder %s26, 0
      %p95 = por %p93, %p94
      %s97 = sadd.s32 %s96, 1
      %p100 = scmp.eq.s32.totalorder %s20, 1
      %p101 = scmp.ne.s32.totalorder %s96, %s98
      %p102 = scmp.eq.s32.totalorder %s20, 0
      %p103 = por %p101, %p102
      %p104 = scmp.ne.s32.totalorder %s96, %s98
      %p105 = scmp.eq.s32.totalorder %s25, 1
      %p106 = por %p104, %p105
      %p107 = scmp.ne.s32.totalorder %s98, %s99
      %p108 = scmp.eq.s32.totalorder %s25, 0
      %p109 = por %p107, %p108
      %p110 = scmp.ne.s32.totalorder %s98, %s99
      %p111 = scmp.eq.s32.totalorder %s26, 1
      %p112 = por %p110, %p111
      %p114 = scmp.ne.s32.totalorder %s99, %s113
      %p115 = scmp.eq.s32.totalorder %s26, 0
      %p116 = por %p114, %p115
      %s118 = sadd.s32 %s117, 1
      %p121 = scmp.eq.s32.totalorder %s20, 1
      %p122 = scmp.ne.s32.totalorder %s117, %s119
      %p123 = scmp.eq.s32.totalorder %s20, 0
      %p124 = por %p122, %p123
      %p125 = scmp.ne.s32.totalorder %s117, %s119
      %p126 = scmp.eq.s32.totalorder %s25, 1
      %p127 = por %p125, %p126
      %p128 = scmp.ne.s32.totalorder %s119, %s120
      %p129 = scmp.eq.s32.totalorder %s25, 0
      %p130 = por %p128, %p129
      %p131 = scmp.ne.s32.totalorder %s119, %s120
      %p132 = scmp.eq.s32.totalorder %s26, 1
      %p133 = por %p131, %p132
      %p135 = scmp.ne.s32.totalorder %s120, %s134
      %p136 = scmp.eq.s32.totalorder %s26, 0
      %p137 = por %p135, %p136
      %s139 = sadd.s32 %s138, 1
      %p142 = scmp.eq.s32.totalorder %s20, 1
      %p143 = scmp.ne.s32.totalorder %s138, %s140
      %p144 = scmp.eq.s32.totalorder %s20, 0
      %p145 = por %p143, %p144
      %p146 = scmp.ne.s32.totalorder %s138, %s140
      %p147 = scmp.eq.s32.totalorder %s25, 1
      %p148 = por %p146, %p147
      %p149 = scmp.ne.s32.totalorder %s140, %s141
      %p150 = scmp.eq.s32.totalorder %s25, 0
      %p151 = por %p149, %p150
      %p152 = scmp.ne.s32.totalorder %s140, %s141
      %p153 = scmp.eq.s32.totalorder %s26, 1
      %p154 = por %p152, %p153
      %p156 = scmp.ne.s32.totalorder %s141, %s155
      %p157 = scmp.eq.s32.totalorder %s26, 0
      %p158 = por %p156, %p157
      %s159 = ssub.s32 %s20, %s27
      %p160 = scmp.eq.s32.totalorder %s159, 0
      %s162 = sadd.s32 %s161, 1
      %s163 = scalar_select %p160, %s161, %s162
      %p166 = pneg %p160
      %p167 = scmp.eq.s32.totalorder %s20, 1
      %p168 = por %p166, %p167
      %p169 = scmp.ne.s32.totalorder %s161, %s164
      %p170 = scmp.eq.s32.totalorder %s20, 0
      %p171 = por %p169, %p170
      %p172 = scmp.ne.s32.totalorder %s161, %s164
      %p173 = scmp.eq.s32.totalorder %s25, 1
      %p174 = por %p172, %p173
      %p175 = scmp.ne.s32.totalorder %s164, %s165
      %p176 = scmp.eq.s32.totalorder %s25, 0
      %p177 = por %p175, %p176
      %p178 = scmp.ne.s32.totalorder %s164, %s165
      %p179 = scmp.eq.s32.totalorder %s26, 1
      %p180 = por %p178, %p179
      %p182 = scmp.ne.s32.totalorder %s165, %s181
      %p183 = scmp.eq.s32.totalorder %s26, 0
      %p184 = por %p182, %p183
      %s185 = ssub.s32 %s20, %s27
      %p186 = scmp.eq.s32.totalorder %s185, 0
      %s188 = sadd.s32 %s187, 1
      %s189 = scalar_select %p186, %s187, %s188
      %p192 = pneg %p186
      %p193 = scmp.eq.s32.totalorder %s20, 1
      %p194 = por %p192, %p193
      %p195 = scmp.ne.s32.totalorder %s187, %s190
      %p196 = scmp.eq.s32.totalorder %s20, 0
      %p197 = por %p195, %p196
      %p198 = scmp.ne.s32.totalorder %s187, %s190
      %p199 = scmp.eq.s32.totalorder %s25, 1
      %p200 = por %p198, %p199
      %p201 = scmp.ne.s32.totalorder %s190, %s191
      %p202 = scmp.eq.s32.totalorder %s25, 0
      %p203 = por %p201, %p202
      %p204 = scmp.ne.s32.totalorder %s190, %s191
      %p205 = scmp.eq.s32.totalorder %s26, 1
      %p206 = por %p204, %p205
      %p208 = scmp.ne.s32.totalorder %s191, %s207
      %p209 = scmp.eq.s32.totalorder %s26, 0
      %p210 = por %p208, %p209
      %p211 = scmp.le.s32.totalorder 1, %s20
      %p212 = scmp.lt.s32.totalorder %s20, 3
      %p213 = pnand %p211, %p212
      %p214 = pneg %p213
      // Predicated region
      $region9: #{encoder_forward.5} parent=5 // pred_check
        _
      $region10: #{encoder_forward.5} parent=5 // pred_check_branch
        %216 = sbr.rel (%p213) target = $region12
      $region11: #{encoder_forward.5} parent=5 // pred_region
        %s217 = ssub.s32 %s20, 1
        // Predicated region
        $region13: #{encoder_forward.5} parent=11 // pred_check
          %p218 = pneg %p67
        $region14: #{encoder_forward.5} parent=11 // pred_check_branch
          %220 = sbr.rel (%p218) target = $region16
        $region15: #{encoder_forward.5} parent=11 // pred_region
          _
        $region16: #{encoder_forward.5} parent=11 // pred_fallthru
          _
        // Predicated region
        $region17: #{encoder_forward.5} parent=11 // pred_check
          %p221 = pneg %p88
        $region18: #{encoder_forward.5} parent=11 // pred_check_branch
          %223 = sbr.rel (%p221) target = $region20
        $region19: #{encoder_forward.5} parent=11 // pred_region
          _
        $region20: #{encoder_forward.5} parent=11 // pred_fallthru
          _
        // Predicated region
        $region21: #{encoder_forward.5} parent=11 // pred_check
          %p224 = pneg %p109
        $region22: #{encoder_forward.5} parent=11 // pred_check_branch
          %226 = sbr.rel (%p224) target = $region24
        $region23: #{encoder_forward.5} parent=11 // pred_region
          _
        $region24: #{encoder_forward.5} parent=11 // pred_fallthru
          _
        // Predicated region
        $region25: #{encoder_forward.5} parent=11 // pred_check
          %p227 = pneg %p130
        $region26: #{encoder_forward.5} parent=11 // pred_check_branch
          %229 = sbr.rel (%p227) target = $region28
        $region27: #{encoder_forward.5} parent=11 // pred_region
          _
        $region28: #{encoder_forward.5} parent=11 // pred_fallthru
          _
        // Predicated region
        $region29: #{encoder_forward.5} parent=11 // pred_check
          %p230 = pneg %p151
        $region30: #{encoder_forward.5} parent=11 // pred_check_branch
          %232 = sbr.rel (%p230) target = $region32
        $region31: #{encoder_forward.5} parent=11 // pred_region
          _
        $region32: #{encoder_forward.5} parent=11 // pred_fallthru
          _
      $region12: #{encoder_forward.5} parent=5 // pred_fallthru
        _
      %p233 = scmp.lt.s32.totalorder %s20, 2
      // Predicated region
      $region33: #{encoder_forward.5} parent=5 // pred_check
        %p234 = pneg %p233
      $region34: #{encoder_forward.5} parent=5 // pred_check_branch
        %236 = sbr.rel (%p234) target = $region36
      $region35: #{encoder_forward.5} parent=5 // pred_region
        // Predicated region
        $region37: #{encoder_forward.5} parent=35 // pred_check
          %p237 = pneg %p40
        $region38: #{encoder_forward.5} parent=35 // pred_check_branch
          %239 = sbr.rel (%p237) target = $region40
        $region39: #{encoder_forward.5} parent=35 // pred_region
          %p240 = scmp.lt.s32.totalorder %s20, 1
          %s241 = scalar_select %p240, %s20, 1
          %s242 = smul.addr %s241, 2
          %s243 = smul.addr %s242, 8
          %s244 = scalar_lea.vmem %s0, %s243
        $region40: #{encoder_forward.5} parent=35 // pred_fallthru
          _
      $region36: #{encoder_forward.5} parent=5 // pred_fallthru
        _
      %p245 = scmp.le.s32.totalorder 1, %s20
      %p246 = scmp.lt.s32.totalorder %s20, 3
      %p247 = pnand %p245, %p246
      %p248 = pneg %p247
      // Predicated region
      $region41: #{encoder_forward.5} parent=5 // pred_check
        _
      $region42: #{encoder_forward.5} parent=5 // pred_check_branch
        %250 = sbr.rel (%p247) target = $region44
      $region43: #{encoder_forward.5} parent=5 // pred_region
        %s251 = ssub.s32 %s20, 1
        %p252 = scmp.lt.s32.totalorder %s25, 1
        %s253 = scalar_select %p252, %s25, 1
        %s254 = smul.addr %s253, 2
        %s255 = smul.addr %s254, 8
        %s256 = scalar_lea.vmem %s0, %s255
        %p257 = pneg %p46
        %p258 = pneg %p43
        %p259 = pneg %p67
        %p260 = pneg %p64
        %p261 = pneg %p88
        %p262 = pneg %p85
        %p263 = pneg %p109
        %p264 = pneg %p106
        %p265 = pneg %p130
        %p266 = pneg %p127
        %p267 = pneg %p151
        %p268 = pneg %p148
        %p269 = pneg %p177
        %p270 = pneg %p174
        %s271 = sand.u32 %s164, 1
        %s272 = scalar_lea.sflag [#allocation5], %s271
        %s273 = sand.u32 %s164, 1
        %s274 = smul.addr %s273, 16
        %s275 = scalar_lea.vmem [#allocation4], %s274
        %p276 = pneg %p203
        %p277 = pneg %p200
        %s278 = sand.u32 %s190, 1
        %s279 = scalar_lea.sflag [#allocation7], %s278
        %s280 = sand.u32 %s190, 1
        %s281 = smul.addr %s280, 4
        %s282 = scalar_lea.vmem [#allocation6], %s281
        %p283 = scmp.lt.s32.totalorder %s25, 1
        %s284 = scalar_select %p283, %s25, 1
        %s285 = smul.addr %s284, 2
        %s286 = smul.addr %s285, 8
        %s287 = scalar_lea.vmem %s0, %s286
        %v288 = vlaneseq
        %v289 = vshrl.u32 %v288, 7
        %v290 = vadd.s32 %v289, 8
        %vm291 = vcmp.lt.s32.totalorder %v289, 0
        %v292 = vsub.s32 0, %v289
        %v293 = vsel %vm291, %v292, %v289
        %v294 = vshrl.u32 %v293, 2
        %v295 = vand.u32 %v293, 3
        %v296 = vsub.s32 0, %v295
        %v297 = vsel %vm291, %v296, %v295
        %vm298 = vcmp.lt.s32.totalorder %v290, 0
        %v299 = vsub.s32 0, %v290
        %v300 = vsel %vm298, %v299, %v290
        %v301 = vshrl.u32 %v300, 2
        %v302 = vand.u32 %v300, 3
        %v303 = vsub.s32 0, %v302
        %v304 = vsel %vm298, %v303, %v302
        %vm305 = vcmp.ne.s32.totalorder %v297, 0
        %vm306 = vcmp.ne.s32.totalorder %v304, 0
        %vm307 = vcmp.lt.s32.totalorder %v297, 0
        %vm308 = vcmp.lt.s32.totalorder %v304, 0
        %vm309 = vmand %vm307, %vm305
        %vm310 = vmand %vm308, %vm306
        %v311 = vadd.s32 %v297, 4
        %v312 = vadd.s32 %v304, 4
        %v313 = vsel %vm309, %v311, %v297
        %v314 = vsel %vm310, %v312, %v304
        %vm315 = vcmp.ge.s32.totalorder %v313, 1
        %vm316 = vcmp.ge.s32.totalorder %v314, 1
        %vm317 = vcmp.le.s32.totalorder %v313, 2
        %vm318 = vcmp.le.s32.totalorder %v314, 2
        %vm319 = vcmask 64512
        %320 = vst.msk [vmem:[#allocation2] sm:$0xff] %vm319, 0.0
        %321 = vst.msk [vmem:[#allocation2 + $0x8] sm:$0xff] %vm319, 0.0
        %322 = vst.msk [vmem:[#allocation2 + $0x10] sm:$0xff] %vm319, 0.0
        %vm323 = vcmask 58368
        %324 = vst.msk [vmem:[#allocation2 + $0x18] sm:$0x3] %vm323, 0.0
        %v325 = vld [vmem:[%s287] sm:$0xff]
        %v326 = vld [vmem:[%s287 + $0x8] sm:$0xff]
        %327 = vst.msk [vmem:[#allocation2 + $0x5] sm:$0xff] %vm319, %v325
        %328 = vst.msk [vmem:[#allocation2 + $0xd] sm:$0xff] %vm319, %v326
        %v329 = vld [vmem:[#allocation2] sm:$0xff]
        %v330 = vld [vmem:[#allocation2 + $0x8] sm:$0xff]
        %v331 = vsel %vm315, 1, 0
        %v332 = vsel %vm316, 1, 0
        %vm333 = vcmp.eq.s32.totalorder %v331, 1
        %vm334 = vcmp.eq.s32.totalorder %v332, 1
        %v335 = vsel %vm333, %v329, 0.0
        %v336 = vsel %vm334, %v330, 0.0
        %v337 = vld [vmem:[#allocation2 + $0x1] sm:$0xff]
        %v338 = vld [vmem:[#allocation2 + $0x9] sm:$0xff]
        %v339 = vld [vmem:[#allocation2 + $0x2] sm:$0xff]
        %v340 = vld [vmem:[#allocation2 + $0xa] sm:$0xff]
        %v341 = vsel %vm317, 1, 0
        %v342 = vsel %vm318, 1, 0
        %vm343 = vcmp.eq.s32.totalorder %v341, 1
        %vm344 = vcmp.eq.s32.totalorder %v342, 1
        %v345 = vsel %vm343, %v339, 0.0
        %v346 = vsel %vm344, %v340, 0.0
        %v347 = vld [vmem:[#allocation2 + $0x4] sm:$0xff]
        %v348 = vld [vmem:[#allocation2 + $0xc] sm:$0xff]
        %v349 = vsel %vm333, %v347, 0.0
        %v350 = vsel %vm334, %v348, 0.0
        %v351 = vld [vmem:[#allocation2 + $0x5] sm:$0xff]
        %v352 = vld [vmem:[#allocation2 + $0xd] sm:$0xff]
        %v353 = vld [vmem:[#allocation2 + $0x6] sm:$0xff]
        %v354 = vld [vmem:[#allocation2 + $0xe] sm:$0xff]
        %v355 = vsel %vm343, %v353, 0.0
        %v356 = vsel %vm344, %v354, 0.0
        %v357 = vld [vmem:[#allocation2 + $0x10] sm:$0xff]
        %v358 = vsel %vm333, %v330, 0.0
        %v359 = vsel %vm334, %v357, 0.0
        %v360 = vld [vmem:[#allocation2 + $0x11] sm:$0xff]
        %v361 = vld [vmem:[#allocation2 + $0x12] sm:$0xff]
        %v362 = vsel %vm343, %v340, 0.0
        %v363 = vsel %vm344, %v361, 0.0
        %366 = vrot.lane.b32.xlu0 %v337, 8
        %v367 = vpop.permute.xlu0 %366
        %368 = vrot.lane.b32.xlu0 %v338, 8
        %v369 = vpop.permute.xlu0 %368
        %374 = vrot.lane.b32.xlu0 %v345, 16
        %v375 = vpop.permute.xlu0 %374
        %376 = vrot.lane.b32.xlu0 %v346, 16
        %v377 = vpop.permute.xlu0 %376
        %382 = vrot.lane.b32.xlu0 %v349, 24
        %v383 = vpop.permute.xlu0 %382
        %384 = vrot.lane.b32.xlu0 %v350, 24
        %v385 = vpop.permute.xlu0 %384
        %390 = vrot.lane.b32.xlu0 %v351, 32
        %v391 = vpop.permute.xlu0 %390
        %392 = vrot.lane.b32.xlu0 %v352, 32
        %v393 = vpop.permute.xlu0 %392
        %398 = vrot.lane.b32.xlu0 %v355, 40
        %v399 = vpop.permute.xlu0 %398
        %400 = vrot.lane.b32.xlu0 %v356, 40
        %v401 = vpop.permute.xlu0 %400
        %406 = vrot.lane.b32.xlu0 %v358, 48
        %v407 = vpop.permute.xlu0 %406
        %408 = vrot.lane.b32.xlu0 %v359, 48
        %v409 = vpop.permute.xlu0 %408
        %413 = vrot.lane.b32.xlu0 %v338, 56
        %v414 = vpop.permute.xlu0 %413
        %415 = vrot.lane.b32.xlu0 %v360, 56
        %v416 = vpop.permute.xlu0 %415
        %421 = vrot.lane.b32.xlu0 %v362, 64
        %v422 = vpop.permute.xlu0 %421
        %423 = vrot.lane.b32.xlu0 %v363, 64
        %v424 = vpop.permute.xlu0 %423
        %v427 = vsel %vm319, %v335, %v367
        %v428 = vsel %vm319, %v336, %v369
        %vm429 = vcmask 130048
        %v430 = vsel %vm429, %v427, %v375
        %v431 = vsel %vm429, %v428, %v377
        %vm432 = vcmask 195584
        %v433 = vsel %vm432, %v430, %v383
        %v434 = vsel %vm432, %v431, %v385
        %vm435 = vcmask 261120
        %v436 = vsel %vm435, %v433, %v391
        %v437 = vsel %vm435, %v434, %v393
        %vm438 = vcmask 326656
        %v439 = vsel %vm438, %v436, %v399
        %v440 = vsel %vm438, %v437, %v401
        %vm441 = vcmask 392192
        %v442 = vsel %vm441, %v439, %v407
        %v443 = vsel %vm441, %v440, %v409
        %vm444 = vcmask 457728
        %v445 = vsel %vm444, %v442, %v414
        %v446 = vsel %vm444, %v443, %v416
        %vm447 = vcmask 523264
        %v448 = vsel %vm447, %v445, %v422
        %v449 = vsel %vm447, %v446, %v424
        %v450 = vld [vmem:[%s1] sm:$0xff]
        %v451 = vld [vmem:[%s1 + $0x8] sm:$0xff]
        %v452 = vld [vmem:[%s1 + $0x10] sm:$0xff]
        %v453 = vld [vmem:[%s1 + $0x18] sm:$0xff]
        %v454 = vld [vmem:[%s1 + $0x20] sm:$0xff]
        %v455 = vld [vmem:[%s1 + $0x28] sm:$0xff]
        %v456 = vld [vmem:[%s1 + $0x30] sm:$0xff]
        %v457 = vld [vmem:[%s1 + $0x38] sm:$0xff]
        %v458 = vld [vmem:[%s1 + $0x40] sm:$0xff]
        %v459 = vld [vmem:[%s2] sm:$0x1]
        %v461 = vlaneseq
        %v462 = vshrl.u32 %v461, 7
        %v463 = vsub.s32 0, %v462
        %v464 = vrot.slane %v459, %v463
        %vm466 = vcmask 588800
        %v468 = vsel %vm466, %v448, 0
        %v471 = vsel %vm466, %v449, 0
        %473 = vmatprep.subr.mxu0 0.0
        %474 = vmatpush1.msra.mxu0 0.0
        %475 = vmatprep.subr.mxu0 0.0
        %476 = vmatpush1.msra.mxu0 0.0
        %477 = vmatprep.subr.mxu0 0.0
        %478 = vmatpush1.msra.mxu0 0.0
        %479 = vmatprep.subr.mxu0 0.0
        %480 = vmatpush1.msra.mxu0 0.0
        %481 = vmatprep.subr.mxu0 0.0
        %482 = vmatpush1.msra.mxu0 0.0
        %483 = vmatprep.subr.mxu0 0.0
        %484 = vmatpush1.msra.mxu0 0.0
        %485 = vmatprep.subr.mxu0 0.0
        %486 = vmatpush1.msra.mxu0 0.0
        %487 = vmatprep.subr.mxu0 0.0
        %488 = vmatpush1.msra.mxu0 %v458
        %489 = vmatprep.subr.mxu0 0.0
        %490 = vmatpush1.msra.mxu0 %v457
        %491 = vmatprep.subr.mxu0 0.0
        %492 = vmatpush1.msra.mxu0 %v456
        %493 = vmatprep.subr.mxu0 0.0
        %494 = vmatpush1.msra.mxu0 %v455
        %495 = vmatprep.subr.mxu0 0.0
        %496 = vmatpush1.msra.mxu0 %v454
        %497 = vmatprep.subr.mxu0 0.0
        %498 = vmatpush1.msra.mxu0 %v453
        %499 = vmatprep.subr.mxu0 0.0
        %500 = vmatpush1.msra.mxu0 %v452
        %501 = vmatprep.subr.mxu0 0.0
        %502 = vmatpush1.msra.mxu0 %v451
        %503 = vmatprep.subr.mxu0 0.0
        %504 = vmatpush1.msra.mxu0 %v450
        %505 = vmatprep.subr.mxu0 0.0
        %506 = vmatpush2.msra.mxu0 0.0
        %507 = vmatprep.subr.mxu0 0.0
        %508 = vmatpush2.msra.mxu0 0.0
        %509 = vmatprep.subr.mxu0 0.0
        %510 = vmatpush2.msra.mxu0 0.0
        %511 = vmatprep.subr.mxu0 0.0
        %512 = vmatpush2.msra.mxu0 0.0
        %513 = vmatprep.subr.mxu0 0.0
        %514 = vmatpush2.msra.mxu0 0.0
        %515 = vmatprep.subr.mxu0 0.0
        %516 = vmatpush2.msra.mxu0 0.0
        %517 = vmatprep.subr.mxu0 0.0
        %518 = vmatpush2.msra.mxu0 0.0
        %519 = vmatprep.subr.mxu0 0.0
        %520 = vmatpush2.msra.mxu0 0.0
        %521 = vmatprep.subr.mxu0 0.0
        %522 = vmatpush2.msra.mxu0 0.0
        %523 = vmatprep.subr.mxu0 0.0
        %524 = vmatpush2.msra.mxu0 0.0
        %525 = vmatprep.subr.mxu0 0.0
        %526 = vmatpush2.msra.mxu0 0.0
        %527 = vmatprep.subr.mxu0 0.0
        %528 = vmatpush2.msra.mxu0 0.0
        %529 = vmatprep.subr.mxu0 0.0
        %530 = vmatpush2.msra.mxu0 0.0
        %531 = vmatprep.subr.mxu0 0.0
        %532 = vmatpush2.msra.mxu0 0.0
        %533 = vmatprep.subr.mxu0 0.0
        %534 = vmatpush2.msra.mxu0 0.0
        %535 = vmatprep.subr.mxu0 0.0
        %536 = vmatpush2.msra.mxu0 0.0
        %537 = vmatprep.mubr.f32.mxu0 0.0
        %538 = vmatmul.mubr.f32.gmra.mxu0 %v468
        %v539 = vpop.f32.mrf.mxu0
        %v540 = vadd.f32 %v464, %v539
        %v541 = vpop.f32.mrf.mxu0
        %542 = vmatprep.mubr.f32.mxu0 0.0
        %543 = vmatmul.mubr.f32.gmra.mxu0 %v471
        %v544 = vpop.f32.mrf.mxu0
        %v545 = vadd.f32 %v464, %v544
        %v546 = vpop.f32.mrf.mxu0
        %547 = vdwg.mxu0
        %v548 = vmax.f32 %v540, 0.0
        %v549 = vmax.f32 %v545, 0.0
        %550 = vst.msk [vmem:[#allocation3] sm:$0xff] %vm429, 0.0
        %551 = vst.msk [vmem:[#allocation3 + $0x8] sm:$0xff] %vm429, 0.0
        %552 = vst.msk [vmem:[#allocation3 + $0x10] sm:$0xff] %vm429, 0.0
        %vm553 = vcmask 123904
        %554 = vst.msk [vmem:[#allocation3 + $0x18] sm:$0x3] %vm553, 0.0
        %555 = vst.msk [vmem:[#allocation3 + $0x5] sm:$0xff] %vm429, %v548
        %556 = vst.msk [vmem:[#allocation3 + $0xd] sm:$0xff] %vm429, %v549
        %v557 = vld [vmem:[#allocation3] sm:$0xff]
        %v558 = vld [vmem:[#allocation3 + $0x8] sm:$0xff]
        %v559 = vsel %vm333, %v557, 0.0
        %v560 = vsel %vm334, %v558, 0.0
        %v561 = vld [vmem:[#allocation3 + $0x1] sm:$0xff]
        %v562 = vld [vmem:[#allocation3 + $0x9] sm:$0xff]
        %v563 = vld [vmem:[#allocation3 + $0x2] sm:$0xff]
        %v564 = vld [vmem:[#allocation3 + $0xa] sm:$0xff]
        %v565 = vsel %vm343, %v563, 0.0
        %v566 = vsel %vm344, %v564, 0.0
        %v567 = vld [vmem:[#allocation3 + $0x4] sm:$0xff]
        %v568 = vld [vmem:[#allocation3 + $0xc] sm:$0xff]
        %v569 = vsel %vm333, %v567, 0.0
        %v570 = vsel %vm334, %v568, 0.0
        %v571 = vld [vmem:[#allocation3 + $0x5] sm:$0xff]
        %v572 = vld [vmem:[#allocation3 + $0xd] sm:$0xff]
        %v573 = vld [vmem:[#allocation3 + $0x6] sm:$0xff]
        %v574 = vld [vmem:[#allocation3 + $0xe] sm:$0xff]
        %v575 = vsel %vm343, %v573, 0.0
        %v576 = vsel %vm344, %v574, 0.0
        %v577 = vld [vmem:[#allocation3 + $0x10] sm:$0xff]
        %v578 = vsel %vm333, %v558, 0.0
        %v579 = vsel %vm334, %v577, 0.0
        %v580 = vld [vmem:[#allocation3 + $0x11] sm:$0xff]
        %v581 = vld [vmem:[#allocation3 + $0x12] sm:$0xff]
        %v582 = vsel %vm343, %v564, 0.0
        %v583 = vsel %vm344, %v581, 0.0
        %586 = vrot.lane.b32.xlu0 %v561, 16
        %v587 = vpop.permute.xlu0 %586
        %588 = vrot.lane.b32.xlu0 %v562, 16
        %v589 = vpop.permute.xlu0 %588
        %594 = vrot.lane.b32.xlu0 %v565, 32
        %v595 = vpop.permute.xlu0 %594
        %596 = vrot.lane.b32.xlu0 %v566, 32
        %v597 = vpop.permute.xlu0 %596
        %602 = vrot.lane.b32.xlu0 %v569, 48
        %v603 = vpop.permute.xlu0 %602
        %604 = vrot.lane.b32.xlu0 %v570, 48
        %v605 = vpop.permute.xlu0 %604
        %610 = vrot.lane.b32.xlu0 %v571, 64
        %v611 = vpop.permute.xlu0 %610
        %612 = vrot.lane.b32.xlu0 %v572, 64
        %v613 = vpop.permute.xlu0 %612
        %618 = vrot.lane.b32.xlu0 %v575, 80
        %v619 = vpop.permute.xlu0 %618
        %620 = vrot.lane.b32.xlu0 %v576, 80
        %v621 = vpop.permute.xlu0 %620
        %626 = vrot.lane.b32.xlu0 %v578, 96
        %v627 = vpop.permute.xlu0 %626
        %628 = vrot.lane.b32.xlu0 %v579, 96
        %v629 = vpop.permute.xlu0 %628
        %633 = vrot.lane.b32.xlu0 %v562, 112
        %v634 = vpop.permute.xlu0 %633
        %635 = vrot.lane.b32.xlu0 %v580, 112
        %v636 = vpop.permute.xlu0 %635
        %v639 = vsel %vm429, %v559, %v587
        %v640 = vsel %vm429, %v560, %v589
        %v641 = vsel %vm435, %v639, %v595
        %v642 = vsel %vm435, %v640, %v597
        %v643 = vsel %vm441, %v641, %v603
        %v644 = vsel %vm441, %v642, %v605
        %v645 = vsel %vm447, %v643, %v611
        %v646 = vsel %vm447, %v644, %v613
        %vm647 = vcmask 654336
        %v648 = vsel %vm647, %v645, %v619
        %v649 = vsel %vm647, %v646, %v621
        %vm650 = vcmask 785408
        %v651 = vsel %vm650, %v648, %v627
        %v652 = vsel %vm650, %v649, %v629
        %vm653 = vcmask 916480
        %v654 = vsel %vm653, %v651, %v634
        %v655 = vsel %vm653, %v652, %v636
        %v656 = vld [vmem:[%s3] sm:$0xff]
        %v657 = vld [vmem:[%s3 + $0x8] sm:$0xff]
        %v658 = vld [vmem:[%s3 + $0x10] sm:$0xff]
        %v659 = vld [vmem:[%s3 + $0x18] sm:$0xff]
        %v660 = vld [vmem:[%s3 + $0x20] sm:$0xff]
        %v661 = vld [vmem:[%s3 + $0x28] sm:$0xff]
        %v662 = vld [vmem:[%s3 + $0x30] sm:$0xff]
        %v663 = vld [vmem:[%s3 + $0x38] sm:$0xff]
        %v664 = vld [vmem:[%s3 + $0x40] sm:$0xff]
        %v665 = vld [vmem:[%s3 + $0x48] sm:$0xff]
        %v666 = vld [vmem:[%s3 + $0x50] sm:$0xff]
        %v667 = vld [vmem:[%s3 + $0x58] sm:$0xff]
        %v668 = vld [vmem:[%s3 + $0x60] sm:$0xff]
        %v669 = vld [vmem:[%s3 + $0x68] sm:$0xff]
        %v670 = vld [vmem:[%s3 + $0x70] sm:$0xff]
        %v671 = vld [vmem:[%s3 + $0x78] sm:$0xff]
        %v672 = vld [vmem:[%s3 + $0x80] sm:$0xff]
        %v673 = vld [vmem:[%s3 + $0x88] sm:$0xff]
        %v674 = vld [vmem:[%s4] sm:$0x1]
        %v676 = vlaneseq
        %v677 = vshrl.u32 %v676, 7
        %v678 = vsub.s32 0, %v677
        %v679 = vrot.slane %v674, %v678
        %v682 = vsel %vm429, %v582, 0
        %v685 = vsel %vm429, %v583, 0
        %687 = vmatprep.subr.mxu0 0.0
        %688 = vmatpush1.msra.mxu0 %v671
        %689 = vmatprep.subr.mxu0 0.0
        %690 = vmatpush1.msra.mxu0 %v670
        %691 = vmatprep.subr.mxu0 0.0
        %692 = vmatpush1.msra.mxu0 %v669
        %693 = vmatprep.subr.mxu0 0.0
        %694 = vmatpush1.msra.mxu0 %v668
        %695 = vmatprep.subr.mxu0 0.0
        %696 = vmatpush1.msra.mxu0 %v667
        %697 = vmatprep.subr.mxu0 0.0
        %698 = vmatpush1.msra.mxu0 %v666
        %699 = vmatprep.subr.mxu0 0.0
        %700 = vmatpush1.msra.mxu0 %v665
        %701 = vmatprep.subr.mxu0 0.0
        %702 = vmatpush1.msra.mxu0 %v664
        %703 = vmatprep.subr.mxu0 0.0
        %704 = vmatpush1.msra.mxu0 %v663
        %705 = vmatprep.subr.mxu0 0.0
        %706 = vmatpush1.msra.mxu0 %v662
        %707 = vmatprep.subr.mxu0 0.0
        %708 = vmatpush1.msra.mxu0 %v661
        %709 = vmatprep.subr.mxu0 0.0
        %710 = vmatpush1.msra.mxu0 %v660
        %711 = vmatprep.subr.mxu0 0.0
        %712 = vmatpush1.msra.mxu0 %v659
        %713 = vmatprep.subr.mxu0 0.0
        %714 = vmatpush1.msra.mxu0 %v658
        %715 = vmatprep.subr.mxu0 0.0
        %716 = vmatpush1.msra.mxu0 %v657
        %717 = vmatprep.subr.mxu0 0.0
        %718 = vmatpush1.msra.mxu0 %v656
        %719 = vmatprep.subr.mxu0 0.0
        %720 = vmatpush2.msra.mxu0 0.0
        %721 = vmatprep.subr.mxu0 0.0
        %722 = vmatpush2.msra.mxu0 0.0
        %723 = vmatprep.subr.mxu0 0.0
        %724 = vmatpush2.msra.mxu0 0.0
        %725 = vmatprep.subr.mxu0 0.0
        %726 = vmatpush2.msra.mxu0 0.0
        %727 = vmatprep.subr.mxu0 0.0
        %728 = vmatpush2.msra.mxu0 0.0
        %729 = vmatprep.subr.mxu0 0.0
        %730 = vmatpush2.msra.mxu0 0.0
        %731 = vmatprep.subr.mxu0 0.0
        %732 = vmatpush2.msra.mxu0 0.0
        %733 = vmatprep.subr.mxu0 0.0
        %734 = vmatpush2.msra.mxu0 0.0
        %735 = vmatprep.subr.mxu0 0.0
        %736 = vmatpush2.msra.mxu0 0.0
        %737 = vmatprep.subr.mxu0 0.0
        %738 = vmatpush2.msra.mxu0 0.0
        %739 = vmatprep.subr.mxu0 0.0
        %740 = vmatpush2.msra.mxu0 0.0
        %741 = vmatprep.subr.mxu0 0.0
        %742 = vmatpush2.msra.mxu0 0.0
        %743 = vmatprep.subr.mxu0 0.0
        %744 = vmatpush2.msra.mxu0 0.0
        %745 = vmatprep.subr.mxu0 0.0
        %746 = vmatpush2.msra.mxu0 0.0
        %747 = vmatprep.subr.mxu0 0.0
        %748 = vmatpush2.msra.mxu0 %v673
        %749 = vmatprep.subr.mxu0 0.0
        %750 = vmatpush2.msra.mxu0 %v672
        %751 = vmatprep.mubr.f32.mxu0 %v682
        %752 = vmatmul.mubr.f32.gmra.mxu0 %v654
        %v753 = vpop.f32.mrf.mxu0
        %v754 = vadd.f32 %v679, %v753
        %v755 = vpop.f32.mrf.mxu0
        %756 = vmatprep.mubr.f32.mxu0 %v685
        %757 = vmatmul.mubr.f32.gmra.mxu0 %v655
        %v758 = vpop.f32.mrf.mxu0
        %v759 = vadd.f32 %v679, %v758
        %v760 = vpop.f32.mrf.mxu0
        %761 = vdwg.mxu0
        %v762 = vmax.f32 %v754, 0.0
        %v763 = vmax.f32 %v759, 0.0
        %764 = vst.msk [vmem:[%s275] sm:$0xff] %vm429, %v762
        %765 = vst.msk [vmem:[%s275 + $0x8] sm:$0xff] %vm429, %v763
        %v766 = vld [vmem:[%s5] sm:$0xf]
        %v768 = vsel %vm429, %v766, 0
        %770 = vmatprep.subr.mxu0 0.0
        %771 = vmatpush1.msra.mxu0 0.0
        %772 = vmatprep.subr.mxu0 0.0
        %773 = vmatpush1.msra.mxu0 0.0
        %774 = vmatprep.subr.mxu0 0.0
        %775 = vmatpush1.msra.mxu0 0.0
        %776 = vmatprep.subr.mxu0 0.0
        %777 = vmatpush1.msra.mxu0 0.0
        %778 = vmatprep.subr.mxu0 0.0
        %779 = vmatpush1.msra.mxu0 0.0
        %780 = vmatprep.subr.mxu0 0.0
        %781 = vmatpush1.msra.mxu0 0.0
        %782 = vmatprep.subr.mxu0 0.0
        %783 = vmatpush1.msra.mxu0 0.0
        %784 = vmatprep.subr.mxu0 0.0
        %785 = vmatpush1.msra.mxu0 0.0
        %786 = vmatprep.subr.mxu0 0.0
        %787 = vmatpush1.msra.mxu0 0.0
        %788 = vmatprep.subr.mxu0 0.0
        %789 = vmatpush1.msra.mxu0 0.0
        %790 = vmatprep.subr.mxu0 0.0
        %791 = vmatpush1.msra.mxu0 0.0
        %792 = vmatprep.subr.mxu0 0.0
        %793 = vmatpush1.msra.mxu0 0.0
        %794 = vmatprep.subr.mxu0 0.0
        %795 = vmatpush1.msra.mxu0 0.0
        %796 = vmatprep.subr.mxu0 0.0
        %797 = vmatpush1.msra.mxu0 0.0
        %798 = vmatprep.subr.mxu0 0.0
        %799 = vmatpush1.msra.mxu0 %v763
        %800 = vmatprep.subr.mxu0 0.0
        %801 = vmatpush1.msra.mxu0 %v762
        %802 = vmatprep.subr.mxu0 0.0
        %803 = vmatpush2.msra.mxu0 0.0
        %804 = vmatprep.subr.mxu0 0.0
        %805 = vmatpush2.msra.mxu0 0.0
        %806 = vmatprep.subr.mxu0 0.0
        %807 = vmatpush2.msra.mxu0 0.0
        %808 = vmatprep.subr.mxu0 0.0
        %809 = vmatpush2.msra.mxu0 0.0
        %810 = vmatprep.subr.mxu0 0.0
        %811 = vmatpush2.msra.mxu0 0.0
        %812 = vmatprep.subr.mxu0 0.0
        %813 = vmatpush2.msra.mxu0 0.0
        %814 = vmatprep.subr.mxu0 0.0
        %815 = vmatpush2.msra.mxu0 0.0
        %816 = vmatprep.subr.mxu0 0.0
        %817 = vmatpush2.msra.mxu0 0.0
        %818 = vmatprep.subr.mxu0 0.0
        %819 = vmatpush2.msra.mxu0 0.0
        %820 = vmatprep.subr.mxu0 0.0
        %821 = vmatpush2.msra.mxu0 0.0
        %822 = vmatprep.subr.mxu0 0.0
        %823 = vmatpush2.msra.mxu0 0.0
        %824 = vmatprep.subr.mxu0 0.0
        %825 = vmatpush2.msra.mxu0 0.0
        %826 = vmatprep.subr.mxu0 0.0
        %827 = vmatpush2.msra.mxu0 0.0
        %828 = vmatprep.subr.mxu0 0.0
        %829 = vmatpush2.msra.mxu0 0.0
        %830 = vmatprep.subr.mxu0 0.0
        %831 = vmatpush2.msra.mxu0 0.0
        %832 = vmatprep.subr.mxu0 0.0
        %833 = vmatpush2.msra.mxu0 0.0
        %834 = vmatprep.mubr.f32.mxu0 0.0
        %835 = vmatmul.mubr.f32.gmra.mxu0 %v768
        %v836 = vpop.f32.mrf.mxu0
        %v837 = vadd.f32 0.0, %v836
        %v838 = vpop.f32.mrf.mxu0
        %839 = vdwg.mxu0
        %s840 = scalar_lea.vmem %s5, 4
        %v841 = vld [vmem:[%s840] sm:$0xf]
        %v843 = vsel %vm429, %v841, 0
        %845 = vmatprep.subr.mxu0 0.0
        %846 = vmatpush1.msra.mxu0 0.0
        %847 = vmatprep.subr.mxu0 0.0
        %848 = vmatpush1.msra.mxu0 0.0
        %849 = vmatprep.subr.mxu0 0.0
        %850 = vmatpush1.msra.mxu0 0.0
        %851 = vmatprep.subr.mxu0 0.0
        %852 = vmatpush1.msra.mxu0 0.0
        %853 = vmatprep.subr.mxu0 0.0
        %854 = vmatpush1.msra.mxu0 0.0
        %855 = vmatprep.subr.mxu0 0.0
        %856 = vmatpush1.msra.mxu0 0.0
        %857 = vmatprep.subr.mxu0 0.0
        %858 = vmatpush1.msra.mxu0 0.0
        %859 = vmatprep.subr.mxu0 0.0
        %860 = vmatpush1.msra.mxu0 0.0
        %861 = vmatprep.subr.mxu0 0.0
        %862 = vmatpush1.msra.mxu0 0.0
        %863 = vmatprep.subr.mxu0 0.0
        %864 = vmatpush1.msra.mxu0 0.0
        %865 = vmatprep.subr.mxu0 0.0
        %866 = vmatpush1.msra.mxu0 0.0
        %867 = vmatprep.subr.mxu0 0.0
        %868 = vmatpush1.msra.mxu0 0.0
        %869 = vmatprep.subr.mxu0 0.0
        %870 = vmatpush1.msra.mxu0 0.0
        %871 = vmatprep.subr.mxu0 0.0
        %872 = vmatpush1.msra.mxu0 0.0
        %873 = vmatprep.subr.mxu0 0.0
        %874 = vmatpush1.msra.mxu0 %v763
        %875 = vmatprep.subr.mxu0 0.0
        %876 = vmatpush1.msra.mxu0 %v762
        %877 = vmatprep.subr.mxu0 0.0
        %878 = vmatpush2.msra.mxu0 0.0
        %879 = vmatprep.subr.mxu0 0.0
        %880 = vmatpush2.msra.mxu0 0.0
        %881 = vmatprep.subr.mxu0 0.0
        %882 = vmatpush2.msra.mxu0 0.0
        %883 = vmatprep.subr.mxu0 0.0
        %884 = vmatpush2.msra.mxu0 0.0
        %885 = vmatprep.subr.mxu0 0.0
        %886 = vmatpush2.msra.mxu0 0.0
        %887 = vmatprep.subr.mxu0 0.0
        %888 = vmatpush2.msra.mxu0 0.0
        %889 = vmatprep.subr.mxu0 0.0
        %890 = vmatpush2.msra.mxu0 0.0
        %891 = vmatprep.subr.mxu0 0.0
        %892 = vmatpush2.msra.mxu0 0.0
        %893 = vmatprep.subr.mxu0 0.0
        %894 = vmatpush2.msra.mxu0 0.0
        %895 = vmatprep.subr.mxu0 0.0
        %896 = vmatpush2.msra.mxu0 0.0
        %897 = vmatprep.subr.mxu0 0.0
        %898 = vmatpush2.msra.mxu0 0.0
        %899 = vmatprep.subr.mxu0 0.0
        %900 = vmatpush2.msra.mxu0 0.0
        %901 = vmatprep.subr.mxu0 0.0
        %902 = vmatpush2.msra.mxu0 0.0
        %903 = vmatprep.subr.mxu0 0.0
        %904 = vmatpush2.msra.mxu0 0.0
        %905 = vmatprep.subr.mxu0 0.0
        %906 = vmatpush2.msra.mxu0 0.0
        %907 = vmatprep.subr.mxu0 0.0
        %908 = vmatpush2.msra.mxu0 0.0
        %909 = vmatprep.mubr.f32.mxu0 0.0
        %910 = vmatmul.mubr.f32.gmra.mxu0 %v843
        %v911 = vpop.f32.mrf.mxu0
        %v912 = vadd.f32 0.0, %v911
        %v913 = vpop.f32.mrf.mxu0
        %914 = vdwg.mxu0
        %v915 = vmax.f32 %v837, %v912
        %s916 = scalar_lea.vmem %s5, 8
        %v917 = vld [vmem:[%s916] sm:$0xf]
        %v919 = vsel %vm429, %v917, 0
        %921 = vmatprep.subr.mxu0 0.0
        %922 = vmatpush1.msra.mxu0 0.0
        %923 = vmatprep.subr.mxu0 0.0
        %924 = vmatpush1.msra.mxu0 0.0
        %925 = vmatprep.subr.mxu0 0.0
        %926 = vmatpush1.msra.mxu0 0.0
        %927 = vmatprep.subr.mxu0 0.0
        %928 = vmatpush1.msra.mxu0 0.0
        %929 = vmatprep.subr.mxu0 0.0
        %930 = vmatpush1.msra.mxu0 0.0
        %931 = vmatprep.subr.mxu0 0.0
        %932 = vmatpush1.msra.mxu0 0.0
        %933 = vmatprep.subr.mxu0 0.0
        %934 = vmatpush1.msra.mxu0 0.0
        %935 = vmatprep.subr.mxu0 0.0
        %936 = vmatpush1.msra.mxu0 0.0
        %937 = vmatprep.subr.mxu0 0.0
        %938 = vmatpush1.msra.mxu0 0.0
        %939 = vmatprep.subr.mxu0 0.0
        %940 = vmatpush1.msra.mxu0 0.0
        %941 = vmatprep.subr.mxu0 0.0
        %942 = vmatpush1.msra.mxu0 0.0
        %943 = vmatprep.subr.mxu0 0.0
        %944 = vmatpush1.msra.mxu0 0.0
        %945 = vmatprep.subr.mxu0 0.0
        %946 = vmatpush1.msra.mxu0 0.0
        %947 = vmatprep.subr.mxu0 0.0
        %948 = vmatpush1.msra.mxu0 0.0
        %949 = vmatprep.subr.mxu0 0.0
        %950 = vmatpush1.msra.mxu0 %v763
        %951 = vmatprep.subr.mxu0 0.0
        %952 = vmatpush1.msra.mxu0 %v762
        %953 = vmatprep.subr.mxu0 0.0
        %954 = vmatpush2.msra.mxu0 0.0
        %955 = vmatprep.subr.mxu0 0.0
        %956 = vmatpush2.msra.mxu0 0.0
        %957 = vmatprep.subr.mxu0 0.0
        %958 = vmatpush2.msra.mxu0 0.0
        %959 = vmatprep.subr.mxu0 0.0
        %960 = vmatpush2.msra.mxu0 0.0
        %961 = vmatprep.subr.mxu0 0.0
        %962 = vmatpush2.msra.mxu0 0.0
        %963 = vmatprep.subr.mxu0 0.0
        %964 = vmatpush2.msra.mxu0 0.0
        %965 = vmatprep.subr.mxu0 0.0
        %966 = vmatpush2.msra.mxu0 0.0
        %967 = vmatprep.subr.mxu0 0.0
        %968 = vmatpush2.msra.mxu0 0.0
        %969 = vmatprep.subr.mxu0 0.0
        %970 = vmatpush2.msra.mxu0 0.0
        %971 = vmatprep.subr.mxu0 0.0
        %972 = vmatpush2.msra.mxu0 0.0
        %973 = vmatprep.subr.mxu0 0.0
        %974 = vmatpush2.msra.mxu0 0.0
        %975 = vmatprep.subr.mxu0 0.0
        %976 = vmatpush2.msra.mxu0 0.0
        %977 = vmatprep.subr.mxu0 0.0
        %978 = vmatpush2.msra.mxu0 0.0
        %979 = vmatprep.subr.mxu0 0.0
        %980 = vmatpush2.msra.mxu0 0.0
        %981 = vmatprep.subr.mxu0 0.0
        %982 = vmatpush2.msra.mxu0 0.0
        %983 = vmatprep.subr.mxu0 0.0
        %984 = vmatpush2.msra.mxu0 0.0
        %985 = vmatprep.mubr.f32.mxu0 0.0
        %986 = vmatmul.mubr.f32.gmra.mxu0 %v919
        %v987 = vpop.f32.mrf.mxu0
        %v988 = vadd.f32 0.0, %v987
        %v989 = vpop.f32.mrf.mxu0
        %990 = vdwg.mxu0
        %v991 = vmax.f32 %v915, %v988
        %s992 = scalar_lea.vmem %s5, 12
        %v993 = vld [vmem:[%s992] sm:$0xf]
        %v995 = vsel %vm429, %v993, 0
        %997 = vmatprep.subr.mxu0 0.0
        %998 = vmatpush1.msra.mxu0 0.0
        %999 = vmatprep.subr.mxu0 0.0
        %1000 = vmatpush1.msra.mxu0 0.0
        %1001 = vmatprep.subr.mxu0 0.0
        %1002 = vmatpush1.msra.mxu0 0.0
        %1003 = vmatprep.subr.mxu0 0.0
        %1004 = vmatpush1.msra.mxu0 0.0
        %1005 = vmatprep.subr.mxu0 0.0
        %1006 = vmatpush1.msra.mxu0 0.0
        %1007 = vmatprep.subr.mxu0 0.0
        %1008 = vmatpush1.msra.mxu0 0.0
        %1009 = vmatprep.subr.mxu0 0.0
        %1010 = vmatpush1.msra.mxu0 0.0
        %1011 = vmatprep.subr.mxu0 0.0
        %1012 = vmatpush1.msra.mxu0 0.0
        %1013 = vmatprep.subr.mxu0 0.0
        %1014 = vmatpush1.msra.mxu0 0.0
        %1015 = vmatprep.subr.mxu0 0.0
        %1016 = vmatpush1.msra.mxu0 0.0
        %1017 = vmatprep.subr.mxu0 0.0
        %1018 = vmatpush1.msra.mxu0 0.0
        %1019 = vmatprep.subr.mxu0 0.0
        %1020 = vmatpush1.msra.mxu0 0.0
        %1021 = vmatprep.subr.mxu0 0.0
        %1022 = vmatpush1.msra.mxu0 0.0
        %1023 = vmatprep.subr.mxu0 0.0
        %1024 = vmatpush1.msra.mxu0 0.0
        %1025 = vmatprep.subr.mxu0 0.0
        %1026 = vmatpush1.msra.mxu0 %v763
        %1027 = vmatprep.subr.mxu0 0.0
        %1028 = vmatpush1.msra.mxu0 %v762
        %1029 = vmatprep.subr.mxu0 0.0
        %1030 = vmatpush2.msra.mxu0 0.0
        %1031 = vmatprep.subr.mxu0 0.0
        %1032 = vmatpush2.msra.mxu0 0.0
        %1033 = vmatprep.subr.mxu0 0.0
        %1034 = vmatpush2.msra.mxu0 0.0
        %1035 = vmatprep.subr.mxu0 0.0
        %1036 = vmatpush2.msra.mxu0 0.0
        %1037 = vmatprep.subr.mxu0 0.0
        %1038 = vmatpush2.msra.mxu0 0.0
        %1039 = vmatprep.subr.mxu0 0.0
        %1040 = vmatpush2.msra.mxu0 0.0
        %1041 = vmatprep.subr.mxu0 0.0
        %1042 = vmatpush2.msra.mxu0 0.0
        %1043 = vmatprep.subr.mxu0 0.0
        %1044 = vmatpush2.msra.mxu0 0.0
        %1045 = vmatprep.subr.mxu0 0.0
        %1046 = vmatpush2.msra.mxu0 0.0
        %1047 = vmatprep.subr.mxu0 0.0
        %1048 = vmatpush2.msra.mxu0 0.0
        %1049 = vmatprep.subr.mxu0 0.0
        %1050 = vmatpush2.msra.mxu0 0.0
        %1051 = vmatprep.subr.mxu0 0.0
        %1052 = vmatpush2.msra.mxu0 0.0
        %1053 = vmatprep.subr.mxu0 0.0
        %1054 = vmatpush2.msra.mxu0 0.0
        %1055 = vmatprep.subr.mxu0 0.0
        %1056 = vmatpush2.msra.mxu0 0.0
        %1057 = vmatprep.subr.mxu0 0.0
        %1058 = vmatpush2.msra.mxu0 0.0
        %1059 = vmatprep.subr.mxu0 0.0
        %1060 = vmatpush2.msra.mxu0 0.0
        %1061 = vmatprep.mubr.f32.mxu0 0.0
        %1062 = vmatmul.mubr.f32.gmra.mxu0 %v995
        %v1063 = vpop.f32.mrf.mxu0
        %v1064 = vadd.f32 0.0, %v1063
        %v1065 = vpop.f32.mrf.mxu0
        %1066 = vdwg.mxu0
        %v1067 = vmax.f32 %v991, %v1064
        %vm1068 = vcmask 125952
        %1069 = vst.msk [vmem:[%s282] sm:$0xf] %vm1068, %v1067
        %s1070 = sand.u32 %s164, 1
        %s1071 = scalar_lea.sflag [#allocation5], %s1070
        %s1072 = sand.u32 %s164, 1
        %s1073 = smul.addr %s1072, 16
        %s1074 = scalar_lea.vmem [#allocation4], %s1073
        %s1075 = sand.u32 %s190, 1
        %s1076 = scalar_lea.sflag [#allocation7], %s1075
        %s1077 = sand.u32 %s190, 1
        %s1078 = smul.addr %s1077, 4
        %s1079 = scalar_lea.vmem [#allocation6], %s1078
        // Predicated region
        $region45: #{encoder_forward.5} parent=43 // pred_check
          %p1080 = pneg %p174
        $region46: #{encoder_forward.5} parent=43 // pred_check_branch
          %1082 = sbr.rel (%p1080) target = $region48
        $region47: #{encoder_forward.5} parent=43 // pred_region
          %s1084 = ssub.s32 256, 256
          %1085 = vsyncadd %s1071, %s1084
          %s1086 = smul.addr %s25, 2
          %s1087 = smul.addr %s1086, 128
          %s1088 = scalar_lea.hbm %s6, %s1087
          %s1089 = sshll.u32 %s1074, 4
          %s1090 = int_to_ptr.vmem [resolvable:$true] %s1089
          %1095 = dma.vmem_to_hbm [thread:$0]  %s1090, 256, %s1088, %s1071, 128, 128, 8
        $region48: #{encoder_forward.5} parent=43 // pred_fallthru
          _
        // Predicated region
        $region49: #{encoder_forward.5} parent=43 // pred_check
          %p1096 = pneg %p200
        $region50: #{encoder_forward.5} parent=43 // pred_check_branch
          %1098 = sbr.rel (%p1096) target = $region52
        $region51: #{encoder_forward.5} parent=43 // pred_region
          %s1100 = ssub.s32 64, 64
          %1101 = vsyncadd %s1076, %s1100
          %s1102 = smul.addr %s25, 64
          %s1103 = scalar_lea.hbm %s7, %s1102
          %s1105 = sshll.u32 %s1079, 4
          %s1106 = int_to_ptr.vmem [resolvable:$true] %s1105
          %1108 = dma.vmem_to_hbm [thread:$0]  %s1106, 64, %s1103, %s1076
        $region52: #{encoder_forward.5} parent=43 // pred_fallthru
          _
      $region44: #{encoder_forward.5} parent=5 // pred_fallthru
        _
      %p1109 = scmp.le.s32.totalorder 2, %s20
      // Predicated region
      $region53: #{encoder_forward.5} parent=5 // pred_check
        %p1110 = pneg %p1109
      $region54: #{encoder_forward.5} parent=5 // pred_check_branch
        %1112 = sbr.rel (%p1110) target = $region56
      $region55: #{encoder_forward.5} parent=5 // pred_region
        %s1113 = ssub.s32 %s20, 2
        // Predicated region
        $region57: #{encoder_forward.5} parent=55 // pred_check
          %p1114 = pneg %p180
        $region58: #{encoder_forward.5} parent=55 // pred_check_branch
          %1116 = sbr.rel (%p1114) target = $region60
        $region59: #{encoder_forward.5} parent=55 // pred_region
          %s1117 = sand.u32 %s165, 1
          %s1118 = scalar_lea.sflag [#allocation5], %s1117
          %s1119 = sand.u32 %s165, 1
          %s1120 = smul.addr %s1119, 16
          %s1121 = scalar_lea.vmem [#allocation4], %s1120
          %1122 = dma.done %s1118, 256
        $region60: #{encoder_forward.5} parent=55 // pred_fallthru
          _
        // Predicated region
        $region61: #{encoder_forward.5} parent=55 // pred_check
          %p1123 = pneg %p206
        $region62: #{encoder_forward.5} parent=55 // pred_check_branch
          %1125 = sbr.rel (%p1123) target = $region64
        $region63: #{encoder_forward.5} parent=55 // pred_region
          %s1126 = sand.u32 %s191, 1
          %s1127 = scalar_lea.sflag [#allocation7], %s1126
          %s1128 = sand.u32 %s191, 1
          %s1129 = smul.addr %s1128, 4
          %s1130 = scalar_lea.vmem [#allocation6], %s1129
          %1131 = dma.done %s1127, 64
        $region64: #{encoder_forward.5} parent=55 // pred_fallthru
          _
      $region56: #{encoder_forward.5} parent=5 // pred_fallthru
        _
    $region6: #{encoder_forward.5} parent=1 // loop_footer
      %s24 = sadd.s32 1, %s20
    $region7: #{encoder_forward.5} parent=1 // loop_footer_branch
      %19 = sbr.rel target = $region3
    $region8: #{encoder_forward.5} parent=1 // loop_exit
      _
    %1132 = vsyncpa [#allocation5], 1
    %s1133 = scalar_lea.sflag [#allocation5], 1
    %1134 = vsyncpa %s1133, 1
    %1135 = vsyncpa [#allocation7], 1
    %s1136 = scalar_lea.sflag [#allocation7], 1
    %1137 = vsyncpa %s1136, 1

// kernel: encoder_forward.4
$region0: #{encoder_forward.4}
  #allocation0 [shape = 'u32[]', space=smem, size = 0x4, offset = 0x4, fixed_abs, tag = 'smem constant byte address 0x4 - core index']
  #allocation1 [shape = 'u32[144,128]{1,0:T(1,128)}', space=vmem, size = 0x12000, scoped, tag = 'internal scratch']
  #allocation2 [shape = 'f32[82,4]{1,0:T(8,128)}', space=vmem, size = 0xb000, scoped, tag = 'scratch operand']
  #allocation3 [shape = 'f32[82,8]{1,0:T(8,128)}', space=vmem, size = 0xb000, scoped, tag = 'scratch operand']
  %s0 = inlined_call_operand.vmem [shape: f32[2,64,4], index: 0, kind: input, shape index: {}]
  %s1 = inlined_call_operand.vmem [shape: f32[36,8], index: 1, kind: input, shape index: {}]
  %s2 = inlined_call_operand.vmem [shape: f32[1,8], index: 2, kind: input, shape index: {}]
  %s3 = inlined_call_operand.vmem [shape: f32[72,8], index: 3, kind: input, shape index: {}]
  %s4 = inlined_call_operand.vmem [shape: f32[1,8], index: 4, kind: input, shape index: {}]
  %s5 = inlined_call_operand.vmem [shape: f32[4,16,64], index: 5, kind: input, shape index: {}]
  %s6 = inlined_call_operand.vmem [shape: f32[2,64,8], index: 6, kind: output, shape index: {0}]
  %s7 = inlined_call_operand.vmem [shape: f32[2,16,8], index: 7, kind: output, shape index: {1}]
  %8 = xla_tuple %s6, %s7
  %s9 = sld [smem:[#allocation0]]
  $region65: #{encoder_forward.4} parent=0
    _
  %s11 = ssub.s32 1, %s9
  %s12 = scalar_select 0, %s11, %s9
  loop: start=0, step=1, limit=4
  $region2: #{encoder_forward.4} parent=0 // loop_pre_header
    _
  $region3: #{encoder_forward.4} parent=0 // loop_header
    %s14 = sphi 0, %s18
    %p15 = scmp.ge.s32.totalorder %s14, 4
    %s24 = sphi 0, %s26
    %s27 = sphi 0, %s24
    %s28 = sphi 0, %s27
    %s44 = sphi 0, %s28
    %s48 = sphi 0, %s48
    %s50 = sphi 0, %s48
    %s51 = sphi 0, %s50
    %s65 = sphi 0, %s51
    %s69 = sphi 0, %s69
    %s71 = sphi 0, %s69
    %s72 = sphi 0, %s71
    %s86 = sphi 0, %s72
    %s90 = sphi 0, %s90
    %s92 = sphi 0, %s90
    %s93 = sphi 0, %s92
    %s107 = sphi 0, %s93
    %s111 = sphi 0, %s111
    %s113 = sphi 0, %s111
    %s114 = sphi 0, %s113
    %s128 = sphi 0, %s114
    %s132 = sphi 0, %s132
    %s134 = sphi 0, %s132
    %s135 = sphi 0, %s134
    %s149 = sphi 0, %s135
    %s155 = sphi 0, %s157
    %s158 = sphi 0, %s155
    %s159 = sphi 0, %s158
    %s175 = sphi 0, %s159
    %s181 = sphi 0, %s183
    %s184 = sphi 0, %s181
    %s185 = sphi 0, %s184
    %s201 = sphi 0, %s185
  $region4: #{encoder_forward.4} parent=0 // loop_header_branch
    %17 = sbr.rel (%p15) target = $region8
  $region5: #{encoder_forward.4} parent=0 // loop_body
    %s19 = ssub.s32 %s14, 1
    %s20 = ssub.s32 %s14, 2
    %s21 = sadd.s32 %s14, 1
    %s22 = ssub.s32 %s14, %s21
    %p23 = scmp.eq.s32.totalorder %s22, 0
    %s25 = sadd.s32 %s24, 1
    %s26 = scalar_select %p23, %s24, %s25
    %p29 = pneg %p23
    %p30 = scmp.eq.s32.totalorder %s14, 1
    %p31 = por %p29, %p30
    %p32 = scmp.ne.s32.totalorder %s24, %s27
    %p33 = scmp.eq.s32.totalorder %s14, 0
    %p34 = por %p32, %p33
    %p35 = scmp.ne.s32.totalorder %s24, %s27
    %p36 = scmp.eq.s32.totalorder %s19, 1
    %p37 = por %p35, %p36
    %p38 = scmp.ne.s32.totalorder %s27, %s28
    %p39 = scmp.eq.s32.totalorder %s19, 0
    %p40 = por %p38, %p39
    %p41 = scmp.ne.s32.totalorder %s27, %s28
    %p42 = scmp.eq.s32.totalorder %s20, 1
    %p43 = por %p41, %p42
    %p45 = scmp.ne.s32.totalorder %s28, %s44
    %p46 = scmp.eq.s32.totalorder %s20, 0
    %p47 = por %p45, %p46
    %s49 = sadd.s32 %s48, 1
    %p52 = scmp.eq.s32.totalorder %s14, 1
    %p53 = scmp.ne.s32.totalorder %s48, %s50
    %p54 = scmp.eq.s32.totalorder %s14, 0
    %p55 = por %p53, %p54
    %p56 = scmp.ne.s32.totalorder %s48, %s50
    %p57 = scmp.eq.s32.totalorder %s19, 1
    %p58 = por %p56, %p57
    %p59 = scmp.ne.s32.totalorder %s50, %s51
    %p60 = scmp.eq.s32.totalorder %s19, 0
    %p61 = por %p59, %p60
    %p62 = scmp.ne.s32.totalorder %s50, %s51
    %p63 = scmp.eq.s32.totalorder %s20, 1
    %p64 = por %p62, %p63
    %p66 = scmp.ne.s32.totalorder %s51, %s65
    %p67 = scmp.eq.s32.totalorder %s20, 0
    %p68 = por %p66, %p67
    %s70 = sadd.s32 %s69, 1
    %p73 = scmp.eq.s32.totalorder %s14, 1
    %p74 = scmp.ne.s32.totalorder %s69, %s71
    %p75 = scmp.eq.s32.totalorder %s14, 0
    %p76 = por %p74, %p75
    %p77 = scmp.ne.s32.totalorder %s69, %s71
    %p78 = scmp.eq.s32.totalorder %s19, 1
    %p79 = por %p77, %p78
    %p80 = scmp.ne.s32.totalorder %s71, %s72
    %p81 = scmp.eq.s32.totalorder %s19, 0
    %p82 = por %p80, %p81
    %p83 = scmp.ne.s32.totalorder %s71, %s72
    %p84 = scmp.eq.s32.totalorder %s20, 1
    %p85 = por %p83, %p84
    %p87 = scmp.ne.s32.totalorder %s72, %s86
    %p88 = scmp.eq.s32.totalorder %s20, 0
    %p89 = por %p87, %p88
    %s91 = sadd.s32 %s90, 1
    %p94 = scmp.eq.s32.totalorder %s14, 1
    %p95 = scmp.ne.s32.totalorder %s90, %s92
    %p96 = scmp.eq.s32.totalorder %s14, 0
    %p97 = por %p95, %p96
    %p98 = scmp.ne.s32.totalorder %s90, %s92
    %p99 = scmp.eq.s32.totalorder %s19, 1
    %p100 = por %p98, %p99
    %p101 = scmp.ne.s32.totalorder %s92, %s93
    %p102 = scmp.eq.s32.totalorder %s19, 0
    %p103 = por %p101, %p102
    %p104 = scmp.ne.s32.totalorder %s92, %s93
    %p105 = scmp.eq.s32.totalorder %s20, 1
    %p106 = por %p104, %p105
    %p108 = scmp.ne.s32.totalorder %s93, %s107
    %p109 = scmp.eq.s32.totalorder %s20, 0
    %p110 = por %p108, %p109
    %s112 = sadd.s32 %s111, 1
    %p115 = scmp.eq.s32.totalorder %s14, 1
    %p116 = scmp.ne.s32.totalorder %s111, %s113
    %p117 = scmp.eq.s32.totalorder %s14, 0
    %p118 = por %p116, %p117
    %p119 = scmp.ne.s32.totalorder %s111, %s113
    %p120 = scmp.eq.s32.totalorder %s19, 1
    %p121 = por %p119, %p120
    %p122 = scmp.ne.s32.totalorder %s113, %s114
    %p123 = scmp.eq.s32.totalorder %s19, 0
    %p124 = por %p122, %p123
    %p125 = scmp.ne.s32.totalorder %s113, %s114
    %p126 = scmp.eq.s32.totalorder %s20, 1
    %p127 = por %p125, %p126
    %p129 = scmp.ne.s32.totalorder %s114, %s128
    %p130 = scmp.eq.s32.totalorder %s20, 0
    %p131 = por %p129, %p130
    %s133 = sadd.s32 %s132, 1
    %p136 = scmp.eq.s32.totalorder %s14, 1
    %p137 = scmp.ne.s32.totalorder %s132, %s134
    %p138 = scmp.eq.s32.totalorder %s14, 0
    %p139 = por %p137, %p138
    %p140 = scmp.ne.s32.totalorder %s132, %s134
    %p141 = scmp.eq.s32.totalorder %s19, 1
    %p142 = por %p140, %p141
    %p143 = scmp.ne.s32.totalorder %s134, %s135
    %p144 = scmp.eq.s32.totalorder %s19, 0
    %p145 = por %p143, %p144
    %p146 = scmp.ne.s32.totalorder %s134, %s135
    %p147 = scmp.eq.s32.totalorder %s20, 1
    %p148 = por %p146, %p147
    %p150 = scmp.ne.s32.totalorder %s135, %s149
    %p151 = scmp.eq.s32.totalorder %s20, 0
    %p152 = por %p150, %p151
    %s153 = ssub.s32 %s14, %s21
    %p154 = scmp.eq.s32.totalorder %s153, 0
    %s156 = sadd.s32 %s155, 1
    %s157 = scalar_select %p154, %s155, %s156
    %p160 = pneg %p154
    %p161 = scmp.eq.s32.totalorder %s14, 1
    %p162 = por %p160, %p161
    %p163 = scmp.ne.s32.totalorder %s155, %s158
    %p164 = scmp.eq.s32.totalorder %s14, 0
    %p165 = por %p163, %p164
    %p166 = scmp.ne.s32.totalorder %s155, %s158
    %p167 = scmp.eq.s32.totalorder %s19, 1
    %p168 = por %p166, %p167
    %p169 = scmp.ne.s32.totalorder %s158, %s159
    %p170 = scmp.eq.s32.totalorder %s19, 0
    %p171 = por %p169, %p170
    %p172 = scmp.ne.s32.totalorder %s158, %s159
    %p173 = scmp.eq.s32.totalorder %s20, 1
    %p174 = por %p172, %p173
    %p176 = scmp.ne.s32.totalorder %s159, %s175
    %p177 = scmp.eq.s32.totalorder %s20, 0
    %p178 = por %p176, %p177
    %s179 = ssub.s32 %s14, %s21
    %p180 = scmp.eq.s32.totalorder %s179, 0
    %s182 = sadd.s32 %s181, 1
    %s183 = scalar_select %p180, %s181, %s182
    %p186 = pneg %p180
    %p187 = scmp.eq.s32.totalorder %s14, 1
    %p188 = por %p186, %p187
    %p189 = scmp.ne.s32.totalorder %s181, %s184
    %p190 = scmp.eq.s32.totalorder %s14, 0
    %p191 = por %p189, %p190
    %p192 = scmp.ne.s32.totalorder %s181, %s184
    %p193 = scmp.eq.s32.totalorder %s19, 1
    %p194 = por %p192, %p193
    %p195 = scmp.ne.s32.totalorder %s184, %s185
    %p196 = scmp.eq.s32.totalorder %s19, 0
    %p197 = por %p195, %p196
    %p198 = scmp.ne.s32.totalorder %s184, %s185
    %p199 = scmp.eq.s32.totalorder %s20, 1
    %p200 = por %p198, %p199
    %p202 = scmp.ne.s32.totalorder %s185, %s201
    %p203 = scmp.eq.s32.totalorder %s20, 0
    %p204 = por %p202, %p203
    %p205 = scmp.le.s32.totalorder 1, %s14
    %p206 = scmp.lt.s32.totalorder %s14, 3
    %p207 = pnand %p205, %p206
    %p208 = pneg %p207
    // Predicated region
    $region9: #{encoder_forward.4} parent=5 // pred_check
      _
    $region10: #{encoder_forward.4} parent=5 // pred_check_branch
      %210 = sbr.rel (%p207) target = $region12
    $region11: #{encoder_forward.4} parent=5 // pred_region
      %s211 = ssub.s32 %s14, 1
      // Predicated region
      $region13: #{encoder_forward.4} parent=11 // pred_check
        %p212 = pneg %p61
      $region14: #{encoder_forward.4} parent=11 // pred_check_branch
        %214 = sbr.rel (%p212) target = $region16
      $region15: #{encoder_forward.4} parent=11 // pred_region
        _
      $region16: #{encoder_forward.4} parent=11 // pred_fallthru
        _
      // Predicated region
      $region17: #{encoder_forward.4} parent=11 // pred_check
        %p215 = pneg %p82
      $region18: #{encoder_forward.4} parent=11 // pred_check_branch
        %217 = sbr.rel (%p215) target = $region20
      $region19: #{encoder_forward.4} parent=11 // pred_region
        _
      $region20: #{encoder_forward.4} parent=11 // pred_fallthru
        _
      // Predicated region
      $region21: #{encoder_forward.4} parent=11 // pred_check
        %p218 = pneg %p103
      $region22: #{encoder_forward.4} parent=11 // pred_check_branch
        %220 = sbr.rel (%p218) target = $region24
      $region23: #{encoder_forward.4} parent=11 // pred_region
        _
      $region24: #{encoder_forward.4} parent=11 // pred_fallthru
        _
      // Predicated region
      $region25: #{encoder_forward.4} parent=11 // pred_check
        %p221 = pneg %p124
      $region26: #{encoder_forward.4} parent=11 // pred_check_branch
        %223 = sbr.rel (%p221) target = $region28
      $region27: #{encoder_forward.4} parent=11 // pred_region
        _
      $region28: #{encoder_forward.4} parent=11 // pred_fallthru
        _
      // Predicated region
      $region29: #{encoder_forward.4} parent=11 // pred_check
        %p224 = pneg %p145
      $region30: #{encoder_forward.4} parent=11 // pred_check_branch
        %226 = sbr.rel (%p224) target = $region32
      $region31: #{encoder_forward.4} parent=11 // pred_region
        _
      $region32: #{encoder_forward.4} parent=11 // pred_fallthru
        _
    $region12: #{encoder_forward.4} parent=5 // pred_fallthru
      _
    %p227 = scmp.lt.s32.totalorder %s14, 2
    // Predicated region
    $region33: #{encoder_forward.4} parent=5 // pred_check
      %p228 = pneg %p227
    $region34: #{encoder_forward.4} parent=5 // pred_check_branch
      %230 = sbr.rel (%p228) target = $region36
    $region35: #{encoder_forward.4} parent=5 // pred_region
      // Predicated region
      $region37: #{encoder_forward.4} parent=35 // pred_check
        %p231 = pneg %p34
      $region38: #{encoder_forward.4} parent=35 // pred_check_branch
        %233 = sbr.rel (%p231) target = $region40
      $region39: #{encoder_forward.4} parent=35 // pred_region
        %p234 = scmp.lt.s32.totalorder %s14, 1
        %s235 = scalar_select %p234, %s14, 1
        %s236 = smul.addr %s235, 8
        %s237 = smul.addr %s236, 8
        %s238 = scalar_lea.vmem %s0, %s237
      $region40: #{encoder_forward.4} parent=35 // pred_fallthru
        _
    $region36: #{encoder_forward.4} parent=5 // pred_fallthru
      _
    %p239 = scmp.le.s32.totalorder 1, %s14
    %p240 = scmp.lt.s32.totalorder %s14, 3
    %p241 = pnand %p239, %p240
    %p242 = pneg %p241
    // Predicated region
    $region41: #{encoder_forward.4} parent=5 // pred_check
      _
    $region42: #{encoder_forward.4} parent=5 // pred_check_branch
      %244 = sbr.rel (%p241) target = $region44
    $region43: #{encoder_forward.4} parent=5 // pred_region
      %s245 = ssub.s32 %s14, 1
      %p246 = scmp.lt.s32.totalorder %s19, 1
      %s247 = scalar_select %p246, %s19, 1
      %s248 = smul.addr %s247, 8
      %s249 = smul.addr %s248, 8
      %s250 = scalar_lea.vmem %s0, %s249
      %p251 = pneg %p40
      %p252 = pneg %p37
      %p253 = pneg %p61
      %p254 = pneg %p58
      %p255 = pneg %p82
      %p256 = pneg %p79
      %p257 = pneg %p103
      %p258 = pneg %p100
      %p259 = pneg %p124
      %p260 = pneg %p121
      %p261 = pneg %p145
      %p262 = pneg %p142
      %p263 = pneg %p171
      %p264 = pneg %p168
      %p265 = scmp.lt.s32.totalorder %s19, 1
      %s266 = scalar_select %p265, %s19, 1
      %s267 = smul.addr %s266, 8
      %s268 = smul.addr %s267, 8
      %s269 = scalar_lea.vmem %s6, %s268
      %p270 = pneg %p197
      %p271 = pneg %p194
      %p272 = scmp.lt.s32.totalorder %s19, 1
      %s273 = scalar_select %p272, %s19, 1
      %s274 = smul.addr %s273, 2
      %s275 = smul.addr %s274, 8
      %s276 = scalar_lea.vmem %s7, %s275
      %p277 = scmp.lt.s32.totalorder %s19, 1
      %s278 = scalar_select %p277, %s19, 1
      %s279 = smul.addr %s278, 8
      %s280 = smul.addr %s279, 8
      %s281 = scalar_lea.vmem %s0, %s280
      %p282 = scmp.lt.s32.totalorder %s19, 1
      %s283 = scalar_select %p282, %s19, 1
      %s284 = smul.addr %s283, 8
      %s285 = smul.addr %s284, 8
      %s286 = scalar_lea.vmem %s6, %s285
      %p287 = scmp.lt.s32.totalorder %s19, 1
      %s288 = scalar_select %p287, %s19, 1
      %s289 = smul.addr %s288, 2
      %s290 = smul.addr %s289, 8
      %s291 = scalar_lea.vmem %s7, %s290
      %v292 = vlaneseq
      %v293 = vshrl.u32 %v292, 7
      %v294 = vadd.s32 %v293, 8
      %v295 = vadd.s32 %v293, 16
      %v296 = vadd.s32 %v293, 24
      %v297 = vadd.s32 %v293, 32
      %v298 = vadd.s32 %v293, 40
      %v299 = vadd.s32 %v293, 48
      %v300 = vadd.s32 %v293, 56
      %vm301 = vcmp.lt.s32.totalorder %v293, 0
      %v302 = vsub.s32 0, %v293
      %v303 = vsel %vm301, %v302, %v293
      %v304 = vshrl.u32 %v303, 3
      %v305 = vand.u32 %v303, 7
      %v306 = vsub.s32 0, %v305
      %v307 = vsel %vm301, %v306, %v305
      %vm308 = vcmp.lt.s32.totalorder %v294, 0
      %v309 = vsub.s32 0, %v294
      %v310 = vsel %vm308, %v309, %v294
      %v311 = vshrl.u32 %v310, 3
      %v312 = vand.u32 %v310, 7
      %v313 = vsub.s32 0, %v312
      %v314 = vsel %vm308, %v313, %v312
      %vm315 = vcmp.lt.s32.totalorder %v295, 0
      %v316 = vsub.s32 0, %v295
      %v317 = vsel %vm315, %v316, %v295
      %v318 = vshrl.u32 %v317, 3
      %v319 = vand.u32 %v317, 7
      %v320 = vsub.s32 0, %v319
      %v321 = vsel %vm315, %v320, %v319
      %vm322 = vcmp.lt.s32.totalorder %v296, 0
      %v323 = vsub.s32 0, %v296
      %v324 = vsel %vm322, %v323, %v296
      %v325 = vshrl.u32 %v324, 3
      %v326 = vand.u32 %v324, 7
      %v327 = vsub.s32 0, %v326
      %v328 = vsel %vm322, %v327, %v326
      %vm329 = vcmp.lt.s32.totalorder %v297, 0
      %v330 = vsub.s32 0, %v297
      %v331 = vsel %vm329, %v330, %v297
      %v332 = vshrl.u32 %v331, 3
      %v333 = vand.u32 %v331, 7
      %v334 = vsub.s32 0, %v333
      %v335 = vsel %vm329, %v334, %v333
      %vm336 = vcmp.lt.s32.totalorder %v298, 0
      %v337 = vsub.s32 0, %v298
      %v338 = vsel %vm336, %v337, %v298
      %v339 = vshrl.u32 %v338, 3
      %v340 = vand.u32 %v338, 7
      %v341 = vsub.s32 0, %v340
      %v342 = vsel %vm336, %v341, %v340
      %vm343 = vcmp.lt.s32.totalorder %v299, 0
      %v344 = vsub.s32 0, %v299
      %v345 = vsel %vm343, %v344, %v299
      %v346 = vshrl.u32 %v345, 3
      %v347 = vand.u32 %v345, 7
      %v348 = vsub.s32 0, %v347
      %v349 = vsel %vm343, %v348, %v347
      %vm350 = vcmp.lt.s32.totalorder %v300, 0
      %v351 = vsub.s32 0, %v300
      %v352 = vsel %vm350, %v351, %v300
      %v353 = vshrl.u32 %v352, 3
      %v354 = vand.u32 %v352, 7
      %v355 = vsub.s32 0, %v354
      %v356 = vsel %vm350, %v355, %v354
      %vm357 = vcmp.ne.s32.totalorder %v307, 0
      %vm358 = vcmp.ne.s32.totalorder %v314, 0
      %vm359 = vcmp.ne.s32.totalorder %v321, 0
      %vm360 = vcmp.ne.s32.totalorder %v328, 0
      %vm361 = vcmp.ne.s32.totalorder %v335, 0
      %vm362 = vcmp.ne.s32.totalorder %v342, 0
      %vm363 = vcmp.ne.s32.totalorder %v349, 0
      %vm364 = vcmp.ne.s32.totalorder %v356, 0
      %vm365 = vcmp.lt.s32.totalorder %v307, 0
      %vm366 = vcmp.lt.s32.totalorder %v314, 0
      %vm367 = vcmp.lt.s32.totalorder %v321, 0
      %vm368 = vcmp.lt.s32.totalorder %v328, 0
      %vm369 = vcmp.lt.s32.totalorder %v335, 0
      %vm370 = vcmp.lt.s32.totalorder %v342, 0
      %vm371 = vcmp.lt.s32.totalorder %v349, 0
      %vm372 = vcmp.lt.s32.totalorder %v356, 0
      %vm373 = vmand %vm365, %vm357
      %vm374 = vmand %vm366, %vm358
      %vm375 = vmand %vm367, %vm359
      %vm376 = vmand %vm368, %vm360
      %vm377 = vmand %vm369, %vm361
      %vm378 = vmand %vm370, %vm362
      %vm379 = vmand %vm371, %vm363
      %vm380 = vmand %vm372, %vm364
      %v381 = vadd.s32 %v307, 8
      %v382 = vadd.s32 %v314, 8
      %v383 = vadd.s32 %v321, 8
      %v384 = vadd.s32 %v328, 8
      %v385 = vadd.s32 %v335, 8
      %v386 = vadd.s32 %v342, 8
      %v387 = vadd.s32 %v349, 8
      %v388 = vadd.s32 %v356, 8
      %v389 = vsel %vm373, %v381, %v307
      %v390 = vsel %vm374, %v382, %v314
      %v391 = vsel %vm375, %v383, %v321
      %v392 = vsel %vm376, %v384, %v328
      %v393 = vsel %vm377, %v385, %v335
      %v394 = vsel %vm378, %v386, %v342
      %v395 = vsel %vm379, %v387, %v349
      %v396 = vsel %vm380, %v388, %v356
      %vm397 = vcmp.ge.s32.totalorder %v389, 1
      %vm398 = vcmp.ge.s32.totalorder %v390, 1
      %vm399 = vcmp.ge.s32.totalorder %v391, 1
      %vm400 = vcmp.ge.s32.totalorder %v392, 1
      %vm401 = vcmp.ge.s32.totalorder %v393, 1
      %vm402 = vcmp.ge.s32.totalorder %v394, 1
      %vm403 = vcmp.ge.s32.totalorder %v395, 1
      %vm404 = vcmp.ge.s32.totalorder %v396, 1
      %vm405 = vcmp.le.s32.totalorder %v389, 6
      %vm406 = vcmp.le.s32.totalorder %v390, 6
      %vm407 = vcmp.le.s32.totalorder %v391, 6
      %vm408 = vcmp.le.s32.totalorder %v392, 6
      %vm409 = vcmp.le.s32.totalorder %v393, 6
      %vm410 = vcmp.le.s32.totalorder %v394, 6
      %vm411 = vcmp.le.s32.totalorder %v395, 6
      %vm412 = vcmp.le.s32.totalorder %v396, 6
      %vm413 = vcmask 31744
      %414 = vst.msk [vmem:[#allocation2] sm:$0xff] %vm413, 0.0
      %415 = vst.msk [vmem:[#allocation2 + $0x8] sm:$0xff] %vm413, 0.0
      %416 = vst.msk [vmem:[#allocation2 + $0x10] sm:$0xff] %vm413, 0.0
      %417 = vst.msk [vmem:[#allocation2 + $0x18] sm:$0xff] %vm413, 0.0
      %418 = vst.msk [vmem:[#allocation2 + $0x20] sm:$0xff] %vm413, 0.0
      %419 = vst.msk [vmem:[#allocation2 + $0x28] sm:$0xff] %vm413, 0.0
      %420 = vst.msk [vmem:[#allocation2 + $0x30] sm:$0xff] %vm413, 0.0
      %421 = vst.msk [vmem:[#allocation2 + $0x38] sm:$0xff] %vm413, 0.0
      %422 = vst.msk [vmem:[#allocation2 + $0x40] sm:$0xff] %vm413, 0.0
      %423 = vst.msk [vmem:[#allocation2 + $0x48] sm:$0xff] %vm413, 0.0
      %vm424 = vcmask 25600
      %425 = vst.msk [vmem:[#allocation2 + $0x50] sm:$0x3] %vm424, 0.0
      %v426 = vld [vmem:[%s281] sm:$0xff]
      %v427 = vld [vmem:[%s281 + $0x8] sm:$0xff]
      %v428 = vld [vmem:[%s281 + $0x10] sm:$0xff]
      %v429 = vld [vmem:[%s281 + $0x18] sm:$0xff]
      %v430 = vld [vmem:[%s281 + $0x20] sm:$0xff]
      %v431 = vld [vmem:[%s281 + $0x28] sm:$0xff]
      %v432 = vld [vmem:[%s281 + $0x30] sm:$0xff]
      %v433 = vld [vmem:[%s281 + $0x38] sm:$0xff]
      %434 = vst.msk [vmem:[#allocation2 + $0x9] sm:$0xff] %vm413, %v426
      %435 = vst.msk [vmem:[#allocation2 + $0x11] sm:$0xff] %vm413, %v427
      %436 = vst.msk [vmem:[#allocation2 + $0x19] sm:$0xff] %vm413, %v428
      %437 = vst.msk [vmem:[#allocation2 + $0x21] sm:$0xff] %vm413, %v429
      %438 = vst.msk [vmem:[#allocation2 + $0x29] sm:$0xff] %vm413, %v430
      %439 = vst.msk [vmem:[#allocation2 + $0x31] sm:$0xff] %vm413, %v431
      %440 = vst.msk [vmem:[#allocation2 + $0x39] sm:$0xff] %vm413, %v432
      %441 = vst.msk [vmem:[#allocation2 + $0x41] sm:$0xff] %vm413, %v433
      %v442 = vld [vmem:[#allocation2] sm:$0xff]
      %v443 = vld [vmem:[#allocation2 + $0x8] sm:$0xff]
      %v444 = vld [vmem:[#allocation2 + $0x10] sm:$0xff]
      %v445 = vld [vmem:[#allocation2 + $0x18] sm:$0xff]
      %v446 = vld [vmem:[#allocation2 + $0x20] sm:$0xff]
      %v447 = vld [vmem:[#allocation2 + $0x28] sm:$0xff]
      %v448 = vld [vmem:[#allocation2 + $0x30] sm:$0xff]
      %v449 = vld [vmem:[#allocation2 + $0x38] sm:$0xff]
      %v450 = vsel %vm397, 1, 0
      %v451 = vsel %vm398, 1, 0
      %v452 = vsel %vm399, 1, 0
      %v453 = vsel %vm400, 1, 0
      %v454 = vsel %vm401, 1, 0
      %v455 = vsel %vm402, 1, 0
      %v456 = vsel %vm403, 1, 0
      %v457 = vsel %vm404, 1, 0
      %vm458 = vcmp.eq.s32.totalorder %v450, 1
      %vm459 = vcmp.eq.s32.totalorder %v451, 1
      %vm460 = vcmp.eq.s32.totalorder %v452, 1
      %vm461 = vcmp.eq.s32.totalorder %v453, 1
      %vm462 = vcmp.eq.s32.totalorder %v454, 1
      %vm463 = vcmp.eq.s32.totalorder %v455, 1
      %vm464 = vcmp.eq.s32.totalorder %v456, 1
      %vm465 = vcmp.eq.s32.totalorder %v457, 1
      %v466 = vsel %vm458, %v442, 0.0
      %v467 = vsel %vm459, %v443, 0.0
      %v468 = vsel %vm460, %v444, 0.0
      %v469 = vsel %vm461, %v445, 0.0
      %v470 = vsel %vm462, %v446, 0.0
      %v471 = vsel %vm463, %v447, 0.0
      %v472 = vsel %vm464, %v448, 0.0
      %v473 = vsel %vm465, %v449, 0.0
      %v474 = vld [vmem:[#allocation2 + $0x1] sm:$0xff]
      %v475 = vld [vmem:[#allocation2 + $0x9] sm:$0xff]
      %v476 = vld [vmem:[#allocation2 + $0x11] sm:$0xff]
      %v477 = vld [vmem:[#allocation2 + $0x19] sm:$0xff]
      %v478 = vld [vmem:[#allocation2 + $0x21] sm:$0xff]
      %v479 = vld [vmem:[#allocation2 + $0x29] sm:$0xff]
      %v480 = vld [vmem:[#allocation2 + $0x31] sm:$0xff]
      %v481 = vld [vmem:[#allocation2 + $0x39] sm:$0xff]
      %v482 = vld [vmem:[#allocation2 + $0x2] sm:$0xff]
      %v483 = vld [vmem:[#allocation2 + $0xa] sm:$0xff]
      %v484 = vld [vmem:[#allocation2 + $0x12] sm:$0xff]
      %v485 = vld [vmem:[#allocation2 + $0x1a] sm:$0xff]
      %v486 = vld [vmem:[#allocation2 + $0x22] sm:$0xff]
      %v487 = vld [vmem:[#allocation2 + $0x2a] sm:$0xff]
      %v488 = vld [vmem:[#allocation2 + $0x32] sm:$0xff]
      %v489 = vld [vmem:[#allocation2 + $0x3a] sm:$0xff]
      %v490 = vsel %vm405, 1, 0
      %v491 = vsel %vm406, 1, 0
      %v492 = vsel %vm407, 1, 0
      %v493 = vsel %vm408, 1, 0
      %v494 = vsel %vm409, 1, 0
      %v495 = vsel %vm410, 1, 0
      %v496 = vsel %vm411, 1, 0
      %v497 = vsel %vm412, 1, 0
      %vm498 = vcmp.eq.s32.totalorder %v490, 1
      %vm499 = vcmp.eq.s32.totalorder %v491, 1
      %vm500 = vcmp.eq.s32.totalorder %v492, 1
      %vm501 = vcmp.eq.s32.totalorder %v493, 1
      %vm502 = vcmp.eq.s32.totalorder %v494, 1
      %vm503 = vcmp.eq.s32.totalorder %v495, 1
      %vm504 = vcmp.eq.s32.totalorder %v496, 1
      %vm505 = vcmp.eq.s32.totalorder %v497, 1
      %v506 = vsel %vm498, %v482, 0.0
      %v507 = vsel %vm499, %v483, 0.0
      %v508 = vsel %vm500, %v484, 0.0
      %v509 = vsel %vm501, %v485, 0.0
      %v510 = vsel %vm502, %v486, 0.0
      %v511 = vsel %vm503, %v487, 0.0
      %v512 = vsel %vm504, %v488, 0.0
      %v513 = vsel %vm505, %v489, 0.0
      %v514 = vld [vmem:[#allocation2 + $0x40] sm:$0xff]
      %v515 = vsel %vm458, %v443, 0.0
      %v516 = vsel %vm459, %v444, 0.0
      %v517 = vsel %vm460, %v445, 0.0
      %v518 = vsel %vm461, %v446, 0.0
      %v519 = vsel %vm462, %v447, 0.0
      %v520 = vsel %vm463, %v448, 0.0
      %v521 = vsel %vm464, %v449, 0.0
      %v522 = vsel %vm465, %v514, 0.0
      %v523 = vld [vmem:[#allocation2 + $0x41] sm:$0xff]
      %v524 = vld [vmem:[#allocation2 + $0x42] sm:$0xff]
      %v525 = vsel %vm498, %v483, 0.0
      %v526 = vsel %vm499, %v484, 0.0
      %v527 = vsel %vm500, %v485, 0.0
      %v528 = vsel %vm501, %v486, 0.0
      %v529 = vsel %vm502, %v487, 0.0
      %v530 = vsel %vm503, %v488, 0.0
      %v531 = vsel %vm504, %v489, 0.0
      %v532 = vsel %vm505, %v524, 0.0
      %v533 = vld [vmem:[#allocation2 + $0x48] sm:$0xff]
      %v534 = vsel %vm458, %v444, 0.0
      %v535 = vsel %vm459, %v445, 0.0
      %v536 = vsel %vm460, %v446, 0.0
      %v537 = vsel %vm461, %v447, 0.0
      %v538 = vsel %vm462, %v448, 0.0
      %v539 = vsel %vm463, %v449, 0.0
      %v540 = vsel %vm464, %v514, 0.0
      %v541 = vsel %vm465, %v533, 0.0
      %v542 = vld [vmem:[#allocation2 + $0x49] sm:$0xff]
      %v543 = vld [vmem:[#allocation2 + $0x4a] sm:$0xff]
      %v544 = vsel %vm498, %v484, 0.0
      %v545 = vsel %vm499, %v485, 0.0
      %v546 = vsel %vm500, %v486, 0.0
      %v547 = vsel %vm501, %v487, 0.0
      %v548 = vsel %vm502, %v488, 0.0
      %v549 = vsel %vm503, %v489, 0.0
      %v550 = vsel %vm504, %v524, 0.0
      %v551 = vsel %vm505, %v543, 0.0
      %560 = vrot.lane.b32.xlu0 %v474, 4
      %v561 = vpop.permute.xlu0 %560
      %562 = vrot.lane.b32.xlu0 %v475, 4
      %v563 = vpop.permute.xlu0 %562
      %564 = vrot.lane.b32.xlu0 %v476, 4
      %v565 = vpop.permute.xlu0 %564
      %566 = vrot.lane.b32.xlu0 %v477, 4
      %v567 = vpop.permute.xlu0 %566
      %568 = vrot.lane.b32.xlu0 %v478, 4
      %v569 = vpop.permute.xlu0 %568
      %570 = vrot.lane.b32.xlu0 %v479, 4
      %v571 = vpop.permute.xlu0 %570
      %572 = vrot.lane.b32.xlu0 %v480, 4
      %v573 = vpop.permute.xlu0 %572
      %574 = vrot.lane.b32.xlu0 %v481, 4
      %v575 = vpop.permute.xlu0 %574
      %592 = vrot.lane.b32.xlu0 %v506, 8
      %v593 = vpop.permute.xlu0 %592
      %594 = vrot.lane.b32.xlu0 %v507, 8
      %v595 = vpop.permute.xlu0 %594
      %596 = vrot.lane.b32.xlu0 %v508, 8
      %v597 = vpop.permute.xlu0 %596
      %598 = vrot.lane.b32.xlu0 %v509, 8
      %v599 = vpop.permute.xlu0 %598
      %600 = vrot.lane.b32.xlu0 %v510, 8
      %v601 = vpop.permute.xlu0 %600
      %602 = vrot.lane.b32.xlu0 %v511, 8
      %v603 = vpop.permute.xlu0 %602
      %604 = vrot.lane.b32.xlu0 %v512, 8
      %v605 = vpop.permute.xlu0 %604
      %606 = vrot.lane.b32.xlu0 %v513, 8
      %v607 = vpop.permute.xlu0 %606
      %624 = vrot.lane.b32.xlu0 %v515, 12
      %v625 = vpop.permute.xlu0 %624
      %626 = vrot.lane.b32.xlu0 %v516, 12
      %v627 = vpop.permute.xlu0 %626
      %628 = vrot.lane.b32.xlu0 %v517, 12
      %v629 = vpop.permute.xlu0 %628
      %630 = vrot.lane.b32.xlu0 %v518, 12
      %v631 = vpop.permute.xlu0 %630
      %632 = vrot.lane.b32.xlu0 %v519, 12
      %v633 = vpop.permute.xlu0 %632
      %634 = vrot.lane.b32.xlu0 %v520, 12
      %v635 = vpop.permute.xlu0 %634
      %636 = vrot.lane.b32.xlu0 %v521, 12
      %v637 = vpop.permute.xlu0 %636
      %638 = vrot.lane.b32.xlu0 %v522, 12
      %v639 = vpop.permute.xlu0 %638
      %649 = vrot.lane.b32.xlu0 %v475, 16
      %v650 = vpop.permute.xlu0 %649
      %651 = vrot.lane.b32.xlu0 %v476, 16
      %v652 = vpop.permute.xlu0 %651
      %653 = vrot.lane.b32.xlu0 %v477, 16
      %v654 = vpop.permute.xlu0 %653
      %655 = vrot.lane.b32.xlu0 %v478, 16
      %v656 = vpop.permute.xlu0 %655
      %657 = vrot.lane.b32.xlu0 %v479, 16
      %v658 = vpop.permute.xlu0 %657
      %659 = vrot.lane.b32.xlu0 %v480, 16
      %v660 = vpop.permute.xlu0 %659
      %661 = vrot.lane.b32.xlu0 %v481, 16
      %v662 = vpop.permute.xlu0 %661
      %663 = vrot.lane.b32.xlu0 %v523, 16
      %v664 = vpop.permute.xlu0 %663
      %681 = vrot.lane.b32.xlu0 %v525, 20
      %v682 = vpop.permute.xlu0 %681
      %683 = vrot.lane.b32.xlu0 %v526, 20
      %v684 = vpop.permute.xlu0 %683
      %685 = vrot.lane.b32.xlu0 %v527, 20
      %v686 = vpop.permute.xlu0 %685
      %687 = vrot.lane.b32.xlu0 %v528, 20
      %v688 = vpop.permute.xlu0 %687
      %689 = vrot.lane.b32.xlu0 %v529, 20
      %v690 = vpop.permute.xlu0 %689
      %691 = vrot.lane.b32.xlu0 %v530, 20
      %v692 = vpop.permute.xlu0 %691
      %693 = vrot.lane.b32.xlu0 %v531, 20
      %v694 = vpop.permute.xlu0 %693
      %695 = vrot.lane.b32.xlu0 %v532, 20
      %v696 = vpop.permute.xlu0 %695
      %713 = vrot.lane.b32.xlu0 %v534, 24
      %v714 = vpop.permute.xlu0 %713
      %715 = vrot.lane.b32.xlu0 %v535, 24
      %v716 = vpop.permute.xlu0 %715
      %717 = vrot.lane.b32.xlu0 %v536, 24
      %v718 = vpop.permute.xlu0 %717
      %719 = vrot.lane.b32.xlu0 %v537, 24
      %v720 = vpop.permute.xlu0 %719
      %721 = vrot.lane.b32.xlu0 %v538, 24
      %v722 = vpop.permute.xlu0 %721
      %723 = vrot.lane.b32.xlu0 %v539, 24
      %v724 = vpop.permute.xlu0 %723
      %725 = vrot.lane.b32.xlu0 %v540, 24
      %v726 = vpop.permute.xlu0 %725
      %727 = vrot.lane.b32.xlu0 %v541, 24
      %v728 = vpop.permute.xlu0 %727
      %738 = vrot.lane.b32.xlu0 %v476, 28
      %v739 = vpop.permute.xlu0 %738
      %740 = vrot.lane.b32.xlu0 %v477, 28
      %v741 = vpop.permute.xlu0 %740
      %742 = vrot.lane.b32.xlu0 %v478, 28
      %v743 = vpop.permute.xlu0 %742
      %744 = vrot.lane.b32.xlu0 %v479, 28
      %v745 = vpop.permute.xlu0 %744
      %746 = vrot.lane.b32.xlu0 %v480, 28
      %v747 = vpop.permute.xlu0 %746
      %748 = vrot.lane.b32.xlu0 %v481, 28
      %v749 = vpop.permute.xlu0 %748
      %750 = vrot.lane.b32.xlu0 %v523, 28
      %v751 = vpop.permute.xlu0 %750
      %752 = vrot.lane.b32.xlu0 %v542, 28
      %v753 = vpop.permute.xlu0 %752
      %770 = vrot.lane.b32.xlu0 %v544, 32
      %v771 = vpop.permute.xlu0 %770
      %772 = vrot.lane.b32.xlu0 %v545, 32
      %v773 = vpop.permute.xlu0 %772
      %774 = vrot.lane.b32.xlu0 %v546, 32
      %v775 = vpop.permute.xlu0 %774
      %776 = vrot.lane.b32.xlu0 %v547, 32
      %v777 = vpop.permute.xlu0 %776
      %778 = vrot.lane.b32.xlu0 %v548, 32
      %v779 = vpop.permute.xlu0 %778
      %780 = vrot.lane.b32.xlu0 %v549, 32
      %v781 = vpop.permute.xlu0 %780
      %782 = vrot.lane.b32.xlu0 %v550, 32
      %v783 = vpop.permute.xlu0 %782
      %784 = vrot.lane.b32.xlu0 %v551, 32
      %v785 = vpop.permute.xlu0 %784
      %v794 = vsel %vm413, %v466, %v561
      %v795 = vsel %vm413, %v467, %v563
      %v796 = vsel %vm413, %v468, %v565
      %v797 = vsel %vm413, %v469, %v567
      %v798 = vsel %vm413, %v470, %v569
      %v799 = vsel %vm413, %v471, %v571
      %v800 = vsel %vm413, %v472, %v573
      %v801 = vsel %vm413, %v473, %v575
      %vm802 = vcmask 64512
      %v803 = vsel %vm802, %v794, %v593
      %v804 = vsel %vm802, %v795, %v595
      %v805 = vsel %vm802, %v796, %v597
      %v806 = vsel %vm802, %v797, %v599
      %v807 = vsel %vm802, %v798, %v601
      %v808 = vsel %vm802, %v799, %v603
      %v809 = vsel %vm802, %v800, %v605
      %v810 = vsel %vm802, %v801, %v607
      %vm811 = vcmask 97280
      %v812 = vsel %vm811, %v803, %v625
      %v813 = vsel %vm811, %v804, %v627
      %v814 = vsel %vm811, %v805, %v629
      %v815 = vsel %vm811, %v806, %v631
      %v816 = vsel %vm811, %v807, %v633
      %v817 = vsel %vm811, %v808, %v635
      %v818 = vsel %vm811, %v809, %v637
      %v819 = vsel %vm811, %v810, %v639
      %vm820 = vcmask 130048
      %v821 = vsel %vm820, %v812, %v650
      %v822 = vsel %vm820, %v813, %v652
      %v823 = vsel %vm820, %v814, %v654
      %v824 = vsel %vm820, %v815, %v656
      %v825 = vsel %vm820, %v816, %v658
      %v826 = vsel %vm820, %v817, %v660
      %v827 = vsel %vm820, %v818, %v662
      %v828 = vsel %vm820, %v819, %v664
      %vm829 = vcmask 162816
      %v830 = vsel %vm829, %v821, %v682
      %v831 = vsel %vm829, %v822, %v684
      %v832 = vsel %vm829, %v823, %v686
      %v833 = vsel %vm829, %v824, %v688
      %v834 = vsel %vm829, %v825, %v690
      %v835 = vsel %vm829, %v826, %v692
      %v836 = vsel %vm829, %v827, %v694
      %v837 = vsel %vm829, %v828, %v696
      %vm838 = vcmask 195584
      %v839 = vsel %vm838, %v830, %v714
      %v840 = vsel %vm838, %v831, %v716
      %v841 = vsel %vm838, %v832, %v718
      %v842 = vsel %vm838, %v833, %v720
      %v843 = vsel %vm838, %v834, %v722
      %v844 = vsel %vm838, %v835, %v724
      %v845 = vsel %vm838, %v836, %v726
      %v846 = vsel %vm838, %v837, %v728
      %vm847 = vcmask 228352
      %v848 = vsel %vm847, %v839, %v739
      %v849 = vsel %vm847, %v840, %v741
      %v850 = vsel %vm847, %v841, %v743
      %v851 = vsel %vm847, %v842, %v745
      %v852 = vsel %vm847, %v843, %v747
      %v853 = vsel %vm847, %v844, %v749
      %v854 = vsel %vm847, %v845, %v751
      %v855 = vsel %vm847, %v846, %v753
      %vm856 = vcmask 261120
      %v857 = vsel %vm856, %v848, %v771
      %v858 = vsel %vm856, %v849, %v773
      %v859 = vsel %vm856, %v850, %v775
      %v860 = vsel %vm856, %v851, %v777
      %v861 = vsel %vm856, %v852, %v779
      %v862 = vsel %vm856, %v853, %v781
      %v863 = vsel %vm856, %v854, %v783
      %v864 = vsel %vm856, %v855, %v785
      %v865 = vld [vmem:[%s1] sm:$0xff]
      %v866 = vld [vmem:[%s1 + $0x8] sm:$0xff]
      %v867 = vld [vmem:[%s1 + $0x10] sm:$0xff]
      %v868 = vld [vmem:[%s1 + $0x18] sm:$0xff]
      %v869 = vld [vmem:[%s1 + $0x20] sm:$0xf]
      %v870 = vld [vmem:[%s2] sm:$0x1]
      %v872 = vlaneseq
      %v873 = vshrl.u32 %v872, 7
      %v874 = vsub.s32 0, %v873
      %v875 = vrot.slane %v870, %v874
      %vm877 = vcmask 293888
      %v879 = vsel %vm877, %v857, 0
      %v882 = vsel %vm877, %v858, 0
      %v885 = vsel %vm877, %v859, 0
      %v888 = vsel %vm877, %v860, 0
      %v891 = vsel %vm877, %v861, 0
      %v894 = vsel %vm877, %v862, 0
      %v897 = vsel %vm877, %v863, 0
      %v900 = vsel %vm877, %v864, 0
      %vm902 = vcmask 1043456
      %v904 = vsel %vm902, %v869, 0
      %906 = vmatprep.subr.mxu0 0.0
      %907 = vmatpush1.msra.mxu0 0.0
      %908 = vmatprep.subr.mxu0 0.0
      %909 = vmatpush1.msra.mxu0 0.0
      %910 = vmatprep.subr.mxu0 0.0
      %911 = vmatpush1.msra.mxu0 0.0
      %912 = vmatprep.subr.mxu0 0.0
      %913 = vmatpush1.msra.mxu0 0.0
      %914 = vmatprep.subr.mxu0 0.0
      %915 = vmatpush1.msra.mxu0 0.0
      %916 = vmatprep.subr.mxu0 0.0
      %917 = vmatpush1.msra.mxu0 0.0
      %918 = vmatprep.subr.mxu0 0.0
      %919 = vmatpush1.msra.mxu0 0.0
      %920 = vmatprep.subr.mxu0 0.0
      %921 = vmatpush1.msra.mxu0 0.0
      %922 = vmatprep.subr.mxu0 0.0
      %923 = vmatpush1.msra.mxu0 0.0
      %924 = vmatprep.subr.mxu0 0.0
      %925 = vmatpush1.msra.mxu0 0.0
      %926 = vmatprep.subr.mxu0 0.0
      %927 = vmatpush1.msra.mxu0 0.0
      %928 = vmatprep.subr.mxu0 0.0
      %929 = vmatpush1.msra.mxu0 %v904
      %930 = vmatprep.subr.mxu0 0.0
      %931 = vmatpush1.msra.mxu0 %v868
      %932 = vmatprep.subr.mxu0 0.0
      %933 = vmatpush1.msra.mxu0 %v867
      %934 = vmatprep.subr.mxu0 0.0
      %935 = vmatpush1.msra.mxu0 %v866
      %936 = vmatprep.subr.mxu0 0.0
      %937 = vmatpush1.msra.mxu0 %v865
      %938 = vmatprep.subr.mxu0 0.0
      %939 = vmatpush2.msra.mxu0 0.0
      %940 = vmatprep.subr.mxu0 0.0
      %941 = vmatpush2.msra.mxu0 0.0
      %942 = vmatprep.subr.mxu0 0.0
      %943 = vmatpush2.msra.mxu0 0.0
      %944 = vmatprep.subr.mxu0 0.0
      %945 = vmatpush2.msra.mxu0 0.0
      %946 = vmatprep.subr.mxu0 0.0
      %947 = vmatpush2.msra.mxu0 0.0
      %948 = vmatprep.subr.mxu0 0.0
      %949 = vmatpush2.msra.mxu0 0.0
      %950 = vmatprep.subr.mxu0 0.0
      %951 = vmatpush2.msra.mxu0 0.0
      %952 = vmatprep.subr.mxu0 0.0
      %953 = vmatpush2.msra.mxu0 0.0
      %954 = vmatprep.subr.mxu0 0.0
      %955 = vmatpush2.msra.mxu0 0.0
      %956 = vmatprep.subr.mxu0 0.0
      %957 = vmatpush2.msra.mxu0 0.0
      %958 = vmatprep.subr.mxu0 0.0
      %959 = vmatpush2.msra.mxu0 0.0
      %960 = vmatprep.subr.mxu0 0.0
      %961 = vmatpush2.msra.mxu0 0.0
      %962 = vmatprep.subr.mxu0 0.0
      %963 = vmatpush2.msra.mxu0 0.0
      %964 = vmatprep.subr.mxu0 0.0
      %965 = vmatpush2.msra.mxu0 0.0
      %966 = vmatprep.subr.mxu0 0.0
      %967 = vmatpush2.msra.mxu0 0.0
      %968 = vmatprep.subr.mxu0 0.0
      %969 = vmatpush2.msra.mxu0 0.0
      %970 = vmatprep.mubr.f32.mxu0 0.0
      %971 = vmatmul.mubr.f32.gmra.mxu0 %v879
      %v972 = vpop.f32.mrf.mxu0
      %v973 = vadd.f32 %v875, %v972
      %v974 = vpop.f32.mrf.mxu0
      %975 = vmatprep.mubr.f32.mxu0 0.0
      %976 = vmatmul.mubr.f32.gmra.mxu0 %v882
      %v977 = vpop.f32.mrf.mxu0
      %v978 = vadd.f32 %v875, %v977
      %v979 = vpop.f32.mrf.mxu0
      %980 = vmatprep.mubr.f32.mxu0 0.0
      %981 = vmatmul.mubr.f32.gmra.mxu0 %v885
      %v982 = vpop.f32.mrf.mxu0
      %v983 = vadd.f32 %v875, %v982
      %v984 = vpop.f32.mrf.mxu0
      %985 = vmatprep.mubr.f32.mxu0 0.0
      %986 = vmatmul.mubr.f32.gmra.mxu0 %v888
      %v987 = vpop.f32.mrf.mxu0
      %v988 = vadd.f32 %v875, %v987
      %v989 = vpop.f32.mrf.mxu0
      %990 = vmatprep.mubr.f32.mxu0 0.0
      %991 = vmatmul.mubr.f32.gmra.mxu0 %v891
      %v992 = vpop.f32.mrf.mxu0
      %v993 = vadd.f32 %v875, %v992
      %v994 = vpop.f32.mrf.mxu0
      %995 = vmatprep.mubr.f32.mxu0 0.0
      %996 = vmatmul.mubr.f32.gmra.mxu0 %v894
      %v997 = vpop.f32.mrf.mxu0
      %v998 = vadd.f32 %v875, %v997
      %v999 = vpop.f32.mrf.mxu0
      %1000 = vmatprep.mubr.f32.mxu0 0.0
      %1001 = vmatmul.mubr.f32.gmra.mxu0 %v897
      %v1002 = vpop.f32.mrf.mxu0
      %v1003 = vadd.f32 %v875, %v1002
      %v1004 = vpop.f32.mrf.mxu0
      %1005 = vmatprep.mubr.f32.mxu0 0.0
      %1006 = vmatmul.mubr.f32.gmra.mxu0 %v900
      %v1007 = vpop.f32.mrf.mxu0
      %v1008 = vadd.f32 %v875, %v1007
      %v1009 = vpop.f32.mrf.mxu0
      %1010 = vdwg.mxu0
      %v1011 = vmax.f32 %v973, 0.0
      %v1012 = vmax.f32 %v978, 0.0
      %v1013 = vmax.f32 %v983, 0.0
      %v1014 = vmax.f32 %v988, 0.0
      %v1015 = vmax.f32 %v993, 0.0
      %v1016 = vmax.f32 %v998, 0.0
      %v1017 = vmax.f32 %v1003, 0.0
      %v1018 = vmax.f32 %v1008, 0.0
      %1019 = vst.msk [vmem:[#allocation3] sm:$0xff] %vm802, 0.0
      %1020 = vst.msk [vmem:[#allocation3 + $0x8] sm:$0xff] %vm802, 0.0
      %1021 = vst.msk [vmem:[#allocation3 + $0x10] sm:$0xff] %vm802, 0.0
      %1022 = vst.msk [vmem:[#allocation3 + $0x18] sm:$0xff] %vm802, 0.0
      %1023 = vst.msk [vmem:[#allocation3 + $0x20] sm:$0xff] %vm802, 0.0
      %1024 = vst.msk [vmem:[#allocation3 + $0x28] sm:$0xff] %vm802, 0.0
      %1025 = vst.msk [vmem:[#allocation3 + $0x30] sm:$0xff] %vm802, 0.0
      %1026 = vst.msk [vmem:[#allocation3 + $0x38] sm:$0xff] %vm802, 0.0
      %1027 = vst.msk [vmem:[#allocation3 + $0x40] sm:$0xff] %vm802, 0.0
      %1028 = vst.msk [vmem:[#allocation3 + $0x48] sm:$0xff] %vm802, 0.0
      %vm1029 = vcmask 58368
      %1030 = vst.msk [vmem:[#allocation3 + $0x50] sm:$0x3] %vm1029, 0.0
      %1031 = vst.msk [vmem:[#allocation3 + $0x9] sm:$0xff] %vm802, %v1011
      %1032 = vst.msk [vmem:[#allocation3 + $0x11] sm:$0xff] %vm802, %v1012
      %1033 = vst.msk [vmem:[#allocation3 + $0x19] sm:$0xff] %vm802, %v1013
      %1034 = vst.msk [vmem:[#allocation3 + $0x21] sm:$0xff] %vm802, %v1014
      %1035 = vst.msk [vmem:[#allocation3 + $0x29] sm:$0xff] %vm802, %v1015
      %1036 = vst.msk [vmem:[#allocation3 + $0x31] sm:$0xff] %vm802, %v1016
      %1037 = vst.msk [vmem:[#allocation3 + $0x39] sm:$0xff] %vm802, %v1017
      %1038 = vst.msk [vmem:[#allocation3 + $0x41] sm:$0xff] %vm802, %v1018
      %v1039 = vld [vmem:[#allocation3] sm:$0xff]
      %v1040 = vld [vmem:[#allocation3 + $0x8] sm:$0xff]
      %v1041 = vld [vmem:[#allocation3 + $0x10] sm:$0xff]
      %v1042 = vld [vmem:[#allocation3 + $0x18] sm:$0xff]
      %v1043 = vld [vmem:[#allocation3 + $0x20] sm:$0xff]
      %v1044 = vld [vmem:[#allocation3 + $0x28] sm:$0xff]
      %v1045 = vld [vmem:[#allocation3 + $0x30] sm:$0xff]
      %v1046 = vld [vmem:[#allocation3 + $0x38] sm:$0xff]
      %v1047 = vsel %vm458, %v1039, 0.0
      %v1048 = vsel %vm459, %v1040, 0.0
      %v1049 = vsel %vm460, %v1041, 0.0
      %v1050 = vsel %vm461, %v1042, 0.0
      %v1051 = vsel %vm462, %v1043, 0.0
      %v1052 = vsel %vm463, %v1044, 0.0
      %v1053 = vsel %vm464, %v1045, 0.0
      %v1054 = vsel %vm465, %v1046, 0.0
      %v1055 = vld [vmem:[#allocation3 + $0x1] sm:$0xff]
      %v1056 = vld [vmem:[#allocation3 + $0x9] sm:$0xff]
      %v1057 = vld [vmem:[#allocation3 + $0x11] sm:$0xff]
      %v1058 = vld [vmem:[#allocation3 + $0x19] sm:$0xff]
      %v1059 = vld [vmem:[#allocation3 + $0x21] sm:$0xff]
      %v1060 = vld [vmem:[#allocation3 + $0x29] sm:$0xff]
      %v1061 = vld [vmem:[#allocation3 + $0x31] sm:$0xff]
      %v1062 = vld [vmem:[#allocation3 + $0x39] sm:$0xff]
      %v1063 = vld [vmem:[#allocation3 + $0x2] sm:$0xff]
      %v1064 = vld [vmem:[#allocation3 + $0xa] sm:$0xff]
      %v1065 = vld [vmem:[#allocation3 + $0x12] sm:$0xff]
      %v1066 = vld [vmem:[#allocation3 + $0x1a] sm:$0xff]
      %v1067 = vld [vmem:[#allocation3 + $0x22] sm:$0xff]
      %v1068 = vld [vmem:[#allocation3 + $0x2a] sm:$0xff]
      %v1069 = vld [vmem:[#allocation3 + $0x32] sm:$0xff]
      %v1070 = vld [vmem:[#allocation3 + $0x3a] sm:$0xff]
      %v1071 = vsel %vm498, %v1063, 0.0
      %v1072 = vsel %vm499, %v1064, 0.0
      %v1073 = vsel %vm500, %v1065, 0.0
      %v1074 = vsel %vm501, %v1066, 0.0
      %v1075 = vsel %vm502, %v1067, 0.0
      %v1076 = vsel %vm503, %v1068, 0.0
      %v1077 = vsel %vm504, %v1069, 0.0
      %v1078 = vsel %vm505, %v1070, 0.0
      %v1079 = vld [vmem:[#allocation3 + $0x40] sm:$0xff]
      %v1080 = vsel %vm458, %v1040, 0.0
      %v1081 = vsel %vm459, %v1041, 0.0
      %v1082 = vsel %vm460, %v1042, 0.0
      %v1083 = vsel %vm461, %v1043, 0.0
      %v1084 = vsel %vm462, %v1044, 0.0
      %v1085 = vsel %vm463, %v1045, 0.0
      %v1086 = vsel %vm464, %v1046, 0.0
      %v1087 = vsel %vm465, %v1079, 0.0
      %v1088 = vld [vmem:[#allocation3 + $0x41] sm:$0xff]
      %v1089 = vld [vmem:[#allocation3 + $0x42] sm:$0xff]
      %v1090 = vsel %vm498, %v1064, 0.0
      %v1091 = vsel %vm499, %v1065, 0.0
      %v1092 = vsel %vm500, %v1066, 0.0
      %v1093 = vsel %vm501, %v1067, 0.0
      %v1094 = vsel %vm502, %v1068, 0.0
      %v1095 = vsel %vm503, %v1069, 0.0
      %v1096 = vsel %vm504, %v1070, 0.0
      %v1097 = vsel %vm505, %v1089, 0.0
      %v1098 = vld [vmem:[#allocation3 + $0x48] sm:$0xff]
      %v1099 = vsel %vm458, %v1041, 0.0
      %v1100 = vsel %vm459, %v1042, 0.0
      %v1101 = vsel %vm460, %v1043, 0.0
      %v1102 = vsel %vm461, %v1044, 0.0
      %v1103 = vsel %vm462, %v1045, 0.0
      %v1104 = vsel %vm463, %v1046, 0.0
      %v1105 = vsel %vm464, %v1079, 0.0
      %v1106 = vsel %vm465, %v1098, 0.0
      %v1107 = vld [vmem:[#allocation3 + $0x49] sm:$0xff]
      %v1108 = vld [vmem:[#allocation3 + $0x4a] sm:$0xff]
      %v1109 = vsel %vm498, %v1065, 0.0
      %v1110 = vsel %vm499, %v1066, 0.0
      %v1111 = vsel %vm500, %v1067, 0.0
      %v1112 = vsel %vm501, %v1068, 0.0
      %v1113 = vsel %vm502, %v1069, 0.0
      %v1114 = vsel %vm503, %v1070, 0.0
      %v1115 = vsel %vm504, %v1089, 0.0
      %v1116 = vsel %vm505, %v1108, 0.0
      %1125 = vrot.lane.b32.xlu0 %v1055, 8
      %v1126 = vpop.permute.xlu0 %1125
      %1127 = vrot.lane.b32.xlu0 %v1056, 8
      %v1128 = vpop.permute.xlu0 %1127
      %1129 = vrot.lane.b32.xlu0 %v1057, 8
      %v1130 = vpop.permute.xlu0 %1129
      %1131 = vrot.lane.b32.xlu0 %v1058, 8
      %v1132 = vpop.permute.xlu0 %1131
      %1133 = vrot.lane.b32.xlu0 %v1059, 8
      %v1134 = vpop.permute.xlu0 %1133
      %1135 = vrot.lane.b32.xlu0 %v1060, 8
      %v1136 = vpop.permute.xlu0 %1135
      %1137 = vrot.lane.b32.xlu0 %v1061, 8
      %v1138 = vpop.permute.xlu0 %1137
      %1139 = vrot.lane.b32.xlu0 %v1062, 8
      %v1140 = vpop.permute.xlu0 %1139
      %1157 = vrot.lane.b32.xlu0 %v1071, 16
      %v1158 = vpop.permute.xlu0 %1157
      %1159 = vrot.lane.b32.xlu0 %v1072, 16
      %v1160 = vpop.permute.xlu0 %1159
      %1161 = vrot.lane.b32.xlu0 %v1073, 16
      %v1162 = vpop.permute.xlu0 %1161
      %1163 = vrot.lane.b32.xlu0 %v1074, 16
      %v1164 = vpop.permute.xlu0 %1163
      %1165 = vrot.lane.b32.xlu0 %v1075, 16
      %v1166 = vpop.permute.xlu0 %1165
      %1167 = vrot.lane.b32.xlu0 %v1076, 16
      %v1168 = vpop.permute.xlu0 %1167
      %1169 = vrot.lane.b32.xlu0 %v1077, 16
      %v1170 = vpop.permute.xlu0 %1169
      %1171 = vrot.lane.b32.xlu0 %v1078, 16
      %v1172 = vpop.permute.xlu0 %1171
      %1189 = vrot.lane.b32.xlu0 %v1080, 24
      %v1190 = vpop.permute.xlu0 %1189
      %1191 = vrot.lane.b32.xlu0 %v1081, 24
      %v1192 = vpop.permute.xlu0 %1191
      %1193 = vrot.lane.b32.xlu0 %v1082, 24
      %v1194 = vpop.permute.xlu0 %1193
      %1195 = vrot.lane.b32.xlu0 %v1083, 24
      %v1196 = vpop.permute.xlu0 %1195
      %1197 = vrot.lane.b32.xlu0 %v1084, 24
      %v1198 = vpop.permute.xlu0 %1197
      %1199 = vrot.lane.b32.xlu0 %v1085, 24
      %v1200 = vpop.permute.xlu0 %1199
      %1201 = vrot.lane.b32.xlu0 %v1086, 24
      %v1202 = vpop.permute.xlu0 %1201
      %1203 = vrot.lane.b32.xlu0 %v1087, 24
      %v1204 = vpop.permute.xlu0 %1203
      %1214 = vrot.lane.b32.xlu0 %v1056, 32
      %v1215 = vpop.permute.xlu0 %1214
      %1216 = vrot.lane.b32.xlu0 %v1057, 32
      %v1217 = vpop.permute.xlu0 %1216
      %1218 = vrot.lane.b32.xlu0 %v1058, 32
      %v1219 = vpop.permute.xlu0 %1218
      %1220 = vrot.lane.b32.xlu0 %v1059, 32
      %v1221 = vpop.permute.xlu0 %1220
      %1222 = vrot.lane.b32.xlu0 %v1060, 32
      %v1223 = vpop.permute.xlu0 %1222
      %1224 = vrot.lane.b32.xlu0 %v1061, 32
      %v1225 = vpop.permute.xlu0 %1224
      %1226 = vrot.lane.b32.xlu0 %v1062, 32
      %v1227 = vpop.permute.xlu0 %1226
      %1228 = vrot.lane.b32.xlu0 %v1088, 32
      %v1229 = vpop.permute.xlu0 %1228
      %1246 = vrot.lane.b32.xlu0 %v1090, 40
      %v1247 = vpop.permute.xlu0 %1246
      %1248 = vrot.lane.b32.xlu0 %v1091, 40
      %v1249 = vpop.permute.xlu0 %1248
      %1250 = vrot.lane.b32.xlu0 %v1092, 40
      %v1251 = vpop.permute.xlu0 %1250
      %1252 = vrot.lane.b32.xlu0 %v1093, 40
      %v1253 = vpop.permute.xlu0 %1252
      %1254 = vrot.lane.b32.xlu0 %v1094, 40
      %v1255 = vpop.permute.xlu0 %1254
      %1256 = vrot.lane.b32.xlu0 %v1095, 40
      %v1257 = vpop.permute.xlu0 %1256
      %1258 = vrot.lane.b32.xlu0 %v1096, 40
      %v1259 = vpop.permute.xlu0 %1258
      %1260 = vrot.lane.b32.xlu0 %v1097, 40
      %v1261 = vpop.permute.xlu0 %1260
      %1278 = vrot.lane.b32.xlu0 %v1099, 48
      %v1279 = vpop.permute.xlu0 %1278
      %1280 = vrot.lane.b32.xlu0 %v1100, 48
      %v1281 = vpop.permute.xlu0 %1280
      %1282 = vrot.lane.b32.xlu0 %v1101, 48
      %v1283 = vpop.permute.xlu0 %1282
      %1284 = vrot.lane.b32.xlu0 %v1102, 48
      %v1285 = vpop.permute.xlu0 %1284
      %1286 = vrot.lane.b32.xlu0 %v1103, 48
      %v1287 = vpop.permute.xlu0 %1286
      %1288 = vrot.lane.b32.xlu0 %v1104, 48
      %v1289 = vpop.permute.xlu0 %1288
      %1290 = vrot.lane.b32.xlu0 %v1105, 48
      %v1291 = vpop.permute.xlu0 %1290
      %1292 = vrot.lane.b32.xlu0 %v1106, 48
      %v1293 = vpop.permute.xlu0 %1292
      %1303 = vrot.lane.b32.xlu0 %v1057, 56
      %v1304 = vpop.permute.xlu0 %1303
      %1305 = vrot.lane.b32.xlu0 %v1058, 56
      %v1306 = vpop.permute.xlu0 %1305
      %1307 = vrot.lane.b32.xlu0 %v1059, 56
      %v1308 = vpop.permute.xlu0 %1307
      %1309 = vrot.lane.b32.xlu0 %v1060, 56
      %v1310 = vpop.permute.xlu0 %1309
      %1311 = vrot.lane.b32.xlu0 %v1061, 56
      %v1312 = vpop.permute.xlu0 %1311
      %1313 = vrot.lane.b32.xlu0 %v1062, 56
      %v1314 = vpop.permute.xlu0 %1313
      %1315 = vrot.lane.b32.xlu0 %v1088, 56
      %v1316 = vpop.permute.xlu0 %1315
      %1317 = vrot.lane.b32.xlu0 %v1107, 56
      %v1318 = vpop.permute.xlu0 %1317
      %1335 = vrot.lane.b32.xlu0 %v1109, 64
      %v1336 = vpop.permute.xlu0 %1335
      %1337 = vrot.lane.b32.xlu0 %v1110, 64
      %v1338 = vpop.permute.xlu0 %1337
      %1339 = vrot.lane.b32.xlu0 %v1111, 64
      %v1340 = vpop.permute.xlu0 %1339
      %1341 = vrot.lane.b32.xlu0 %v1112, 64
      %v1342 = vpop.permute.xlu0 %1341
      %1343 = vrot.lane.b32.xlu0 %v1113, 64
      %v1344 = vpop.permute.xlu0 %1343
      %1345 = vrot.lane.b32.xlu0 %v1114, 64
      %v1346 = vpop.permute.xlu0 %1345
      %1347 = vrot.lane.b32.xlu0 %v1115, 64
      %v1348 = vpop.permute.xlu0 %1347
      %1349 = vrot.lane.b32.xlu0 %v1116, 64
      %v1350 = vpop.permute.xlu0 %1349
      %v1359 = vsel %vm802, %v1047, %v1126
      %v1360 = vsel %vm802, %v1048, %v1128
      %v1361 = vsel %vm802, %v1049, %v1130
      %v1362 = vsel %vm802, %v1050, %v1132
      %v1363 = vsel %vm802, %v1051, %v1134
      %v1364 = vsel %vm802, %v1052, %v1136
      %v1365 = vsel %vm802, %v1053, %v1138
      %v1366 = vsel %vm802, %v1054, %v1140
      %v1367 = vsel %vm820, %v1359, %v1158
      %v1368 = vsel %vm820, %v1360, %v1160
      %v1369 = vsel %vm820, %v1361, %v1162
      %v1370 = vsel %vm820, %v1362, %v1164
      %v1371 = vsel %vm820, %v1363, %v1166
      %v1372 = vsel %vm820, %v1364, %v1168
      %v1373 = vsel %vm820, %v1365, %v1170
      %v1374 = vsel %vm820, %v1366, %v1172
      %v1375 = vsel %vm838, %v1367, %v1190
      %v1376 = vsel %vm838, %v1368, %v1192
      %v1377 = vsel %vm838, %v1369, %v1194
      %v1378 = vsel %vm838, %v1370, %v1196
      %v1379 = vsel %vm838, %v1371, %v1198
      %v1380 = vsel %vm838, %v1372, %v1200
      %v1381 = vsel %vm838, %v1373, %v1202
      %v1382 = vsel %vm838, %v1374, %v1204
      %v1383 = vsel %vm856, %v1375, %v1215
      %v1384 = vsel %vm856, %v1376, %v1217
      %v1385 = vsel %vm856, %v1377, %v1219
      %v1386 = vsel %vm856, %v1378, %v1221
      %v1387 = vsel %vm856, %v1379, %v1223
      %v1388 = vsel %vm856, %v1380, %v1225
      %v1389 = vsel %vm856, %v1381, %v1227
      %v1390 = vsel %vm856, %v1382, %v1229
      %vm1391 = vcmask 326656
      %v1392 = vsel %vm1391, %v1383, %v1247
      %v1393 = vsel %vm1391, %v1384, %v1249
      %v1394 = vsel %vm1391, %v1385, %v1251
      %v1395 = vsel %vm1391, %v1386, %v1253
      %v1396 = vsel %vm1391, %v1387, %v1255
      %v1397 = vsel %vm1391, %v1388, %v1257
      %v1398 = vsel %vm1391, %v1389, %v1259
      %v1399 = vsel %vm1391, %v1390, %v1261
      %vm1400 = vcmask 392192
      %v1401 = vsel %vm1400, %v1392, %v1279
      %v1402 = vsel %vm1400, %v1393, %v1281
      %v1403 = vsel %vm1400, %v1394, %v1283
      %v1404 = vsel %vm1400, %v1395, %v1285
      %v1405 = vsel %vm1400, %v1396, %v1287
      %v1406 = vsel %vm1400, %v1397, %v1289
      %v1407 = vsel %vm1400, %v1398, %v1291
      %v1408 = vsel %vm1400, %v1399, %v1293
      %vm1409 = vcmask 457728
      %v1410 = vsel %vm1409, %v1401, %v1304
      %v1411 = vsel %vm1409, %v1402, %v1306
      %v1412 = vsel %vm1409, %v1403, %v1308
      %v1413 = vsel %vm1409, %v1404, %v1310
      %v1414 = vsel %vm1409, %v1405, %v1312
      %v1415 = vsel %vm1409, %v1406, %v1314
      %v1416 = vsel %vm1409, %v1407, %v1316
      %v1417 = vsel %vm1409, %v1408, %v1318
      %vm1418 = vcmask 523264
      %v1419 = vsel %vm1418, %v1410, %v1336
      %v1420 = vsel %vm1418, %v1411, %v1338
      %v1421 = vsel %vm1418, %v1412, %v1340
      %v1422 = vsel %vm1418, %v1413, %v1342
      %v1423 = vsel %vm1418, %v1414, %v1344
      %v1424 = vsel %vm1418, %v1415, %v1346
      %v1425 = vsel %vm1418, %v1416, %v1348
      %v1426 = vsel %vm1418, %v1417, %v1350
      %v1427 = vld [vmem:[%s3] sm:$0xff]
      %v1428 = vld [vmem:[%s3 + $0x8] sm:$0xff]
      %v1429 = vld [vmem:[%s3 + $0x10] sm:$0xff]
      %v1430 = vld [vmem:[%s3 + $0x18] sm:$0xff]
      %v1431 = vld [vmem:[%s3 + $0x20] sm:$0xff]
      %v1432 = vld [vmem:[%s3 + $0x28] sm:$0xff]
      %v1433 = vld [vmem:[%s3 + $0x30] sm:$0xff]
      %v1434 = vld [vmem:[%s3 + $0x38] sm:$0xff]
      %v1435 = vld [vmem:[%s3 + $0x40] sm:$0xff]
      %v1436 = vld [vmem:[%s4] sm:$0x1]
      %v1438 = vlaneseq
      %v1439 = vshrl.u32 %v1438, 7
      %v1440 = vsub.s32 0, %v1439
      %v1441 = vrot.slane %v1436, %v1440
      %vm1443 = vcmask 588800
      %v1445 = vsel %vm1443, %v1419, 0
      %v1448 = vsel %vm1443, %v1420, 0
      %v1451 = vsel %vm1443, %v1421, 0
      %v1454 = vsel %vm1443, %v1422, 0
      %v1457 = vsel %vm1443, %v1423, 0
      %v1460 = vsel %vm1443, %v1424, 0
      %v1463 = vsel %vm1443, %v1425, 0
      %v1466 = vsel %vm1443, %v1426, 0
      %1468 = vmatprep.subr.mxu0 0.0
      %1469 = vmatpush1.msra.mxu0 0.0
      %1470 = vmatprep.subr.mxu0 0.0
      %1471 = vmatpush1.msra.mxu0 0.0
      %1472 = vmatprep.subr.mxu0 0.0
      %1473 = vmatpush1.msra.mxu0 0.0
      %1474 = vmatprep.subr.mxu0 0.0
      %1475 = vmatpush1.msra.mxu0 0.0
      %1476 = vmatprep.subr.mxu0 0.0
      %1477 = vmatpush1.msra.mxu0 0.0
      %1478 = vmatprep.subr.mxu0 0.0
      %1479 = vmatpush1.msra.mxu0 0.0
      %1480 = vmatprep.subr.mxu0 0.0
      %1481 = vmatpush1.msra.mxu0 0.0
      %1482 = vmatprep.subr.mxu0 0.0
      %1483 = vmatpush1.msra.mxu0 %v1435
      %1484 = vmatprep.subr.mxu0 0.0
      %1485 = vmatpush1.msra.mxu0 %v1434
      %1486 = vmatprep.subr.mxu0 0.0
      %1487 = vmatpush1.msra.mxu0 %v1433
      %1488 = vmatprep.subr.mxu0 0.0
      %1489 = vmatpush1.msra.mxu0 %v1432
      %1490 = vmatprep.subr.mxu0 0.0
      %1491 = vmatpush1.msra.mxu0 %v1431
      %1492 = vmatprep.subr.mxu0 0.0
      %1493 = vmatpush1.msra.mxu0 %v1430
      %1494 = vmatprep.subr.mxu0 0.0
      %1495 = vmatpush1.msra.mxu0 %v1429
      %1496 = vmatprep.subr.mxu0 0.0
      %1497 = vmatpush1.msra.mxu0 %v1428
      %1498 = vmatprep.subr.mxu0 0.0
      %1499 = vmatpush1.msra.mxu0 %v1427
      %1500 = vmatprep.subr.mxu0 0.0
      %1501 = vmatpush2.msra.mxu0 0.0
      %1502 = vmatprep.subr.mxu0 0.0
      %1503 = vmatpush2.msra.mxu0 0.0
      %1504 = vmatprep.subr.mxu0 0.0
      %1505 = vmatpush2.msra.mxu0 0.0
      %1506 = vmatprep.subr.mxu0 0.0
      %1507 = vmatpush2.msra.mxu0 0.0
      %1508 = vmatprep.subr.mxu0 0.0
      %1509 = vmatpush2.msra.mxu0 0.0
      %1510 = vmatprep.subr.mxu0 0.0
      %1511 = vmatpush2.msra.mxu0 0.0
      %1512 = vmatprep.subr.mxu0 0.0
      %1513 = vmatpush2.msra.mxu0 0.0
      %1514 = vmatprep.subr.mxu0 0.0
      %1515 = vmatpush2.msra.mxu0 0.0
      %1516 = vmatprep.subr.mxu0 0.0
      %1517 = vmatpush2.msra.mxu0 0.0
      %1518 = vmatprep.subr.mxu0 0.0
      %1519 = vmatpush2.msra.mxu0 0.0
      %1520 = vmatprep.subr.mxu0 0.0
      %1521 = vmatpush2.msra.mxu0 0.0
      %1522 = vmatprep.subr.mxu0 0.0
      %1523 = vmatpush2.msra.mxu0 0.0
      %1524 = vmatprep.subr.mxu0 0.0
      %1525 = vmatpush2.msra.mxu0 0.0
      %1526 = vmatprep.subr.mxu0 0.0
      %1527 = vmatpush2.msra.mxu0 0.0
      %1528 = vmatprep.subr.mxu0 0.0
      %1529 = vmatpush2.msra.mxu0 0.0
      %1530 = vmatprep.subr.mxu0 0.0
      %1531 = vmatpush2.msra.mxu0 0.0
      %1532 = vmatprep.mubr.f32.mxu0 0.0
      %1533 = vmatmul.mubr.f32.gmra.mxu0 %v1445
      %v1534 = vpop.f32.mrf.mxu0
      %v1535 = vadd.f32 %v1441, %v1534
      %v1536 = vpop.f32.mrf.mxu0
      %1537 = vmatprep.mubr.f32.mxu0 0.0
      %1538 = vmatmul.mubr.f32.gmra.mxu0 %v1448
      %v1539 = vpop.f32.mrf.mxu0
      %v1540 = vadd.f32 %v1441, %v1539
      %v1541 = vpop.f32.mrf.mxu0
      %1542 = vmatprep.mubr.f32.mxu0 0.0
      %1543 = vmatmul.mubr.f32.gmra.mxu0 %v1451
      %v1544 = vpop.f32.mrf.mxu0
      %v1545 = vadd.f32 %v1441, %v1544
      %v1546 = vpop.f32.mrf.mxu0
      %1547 = vmatprep.mubr.f32.mxu0 0.0
      %1548 = vmatmul.mubr.f32.gmra.mxu0 %v1454
      %v1549 = vpop.f32.mrf.mxu0
      %v1550 = vadd.f32 %v1441, %v1549
      %v1551 = vpop.f32.mrf.mxu0
      %1552 = vmatprep.mubr.f32.mxu0 0.0
      %1553 = vmatmul.mubr.f32.gmra.mxu0 %v1457
      %v1554 = vpop.f32.mrf.mxu0
      %v1555 = vadd.f32 %v1441, %v1554
      %v1556 = vpop.f32.mrf.mxu0
      %1557 = vmatprep.mubr.f32.mxu0 0.0
      %1558 = vmatmul.mubr.f32.gmra.mxu0 %v1460
      %v1559 = vpop.f32.mrf.mxu0
      %v1560 = vadd.f32 %v1441, %v1559
      %v1561 = vpop.f32.mrf.mxu0
      %1562 = vmatprep.mubr.f32.mxu0 0.0
      %1563 = vmatmul.mubr.f32.gmra.mxu0 %v1463
      %v1564 = vpop.f32.mrf.mxu0
      %v1565 = vadd.f32 %v1441, %v1564
      %v1566 = vpop.f32.mrf.mxu0
      %1567 = vmatprep.mubr.f32.mxu0 0.0
      %1568 = vmatmul.mubr.f32.gmra.mxu0 %v1466
      %v1569 = vpop.f32.mrf.mxu0
      %v1570 = vadd.f32 %v1441, %v1569
      %v1571 = vpop.f32.mrf.mxu0
      %1572 = vdwg.mxu0
      %v1573 = vmax.f32 %v1535, 0.0
      %v1574 = vmax.f32 %v1540, 0.0
      %v1575 = vmax.f32 %v1545, 0.0
      %v1576 = vmax.f32 %v1550, 0.0
      %v1577 = vmax.f32 %v1555, 0.0
      %v1578 = vmax.f32 %v1560, 0.0
      %v1579 = vmax.f32 %v1565, 0.0
      %v1580 = vmax.f32 %v1570, 0.0
      %1581 = vst.msk [vmem:[%s286] sm:$0xff] %vm802, %v1573
      %1582 = vst.msk [vmem:[%s286 + $0x8] sm:$0xff] %vm802, %v1574
      %1583 = vst.msk [vmem:[%s286 + $0x10] sm:$0xff] %vm802, %v1575
      %1584 = vst.msk [vmem:[%s286 + $0x18] sm:$0xff] %vm802, %v1576
      %1585 = vst.msk [vmem:[%s286 + $0x20] sm:$0xff] %vm802, %v1577
      %1586 = vst.msk [vmem:[%s286 + $0x28] sm:$0xff] %vm802, %v1578
      %1587 = vst.msk [vmem:[%s286 + $0x30] sm:$0xff] %vm802, %v1579
      %1588 = vst.msk [vmem:[%s286 + $0x38] sm:$0xff] %vm802, %v1580
      %v1589 = vld [vmem:[%s5] sm:$0xff]
      %v1590 = vld [vmem:[%s5 + $0x8] sm:$0xff]
      %v1592 = vsel %vm1418, %v1589, 0
      %v1595 = vsel %vm1418, %v1590, 0
      %1597 = vmatprep.subr.mxu0 0.0
      %1598 = vmatpush1.msra.mxu0 0.0
      %1599 = vmatprep.subr.mxu0 0.0
      %1600 = vmatpush1.msra.mxu0 0.0
      %1601 = vmatprep.subr.mxu0 0.0
      %1602 = vmatpush1.msra.mxu0 0.0
      %1603 = vmatprep.subr.mxu0 0.0
      %1604 = vmatpush1.msra.mxu0 0.0
      %1605 = vmatprep.subr.mxu0 0.0
      %1606 = vmatpush1.msra.mxu0 0.0
      %1607 = vmatprep.subr.mxu0 0.0
      %1608 = vmatpush1.msra.mxu0 0.0
      %1609 = vmatprep.subr.mxu0 0.0
      %1610 = vmatpush1.msra.mxu0 0.0
      %1611 = vmatprep.subr.mxu0 0.0
      %1612 = vmatpush1.msra.mxu0 0.0
      %1613 = vmatprep.subr.mxu0 0.0
      %1614 = vmatpush1.msra.mxu0 %v1580
      %1615 = vmatprep.subr.mxu0 0.0
      %1616 = vmatpush1.msra.mxu0 %v1579
      %1617 = vmatprep.subr.mxu0 0.0
      %1618 = vmatpush1.msra.mxu0 %v1578
      %1619 = vmatprep.subr.mxu0 0.0
      %1620 = vmatpush1.msra.mxu0 %v1577
      %1621 = vmatprep.subr.mxu0 0.0
      %1622 = vmatpush1.msra.mxu0 %v1576
      %1623 = vmatprep.subr.mxu0 0.0
      %1624 = vmatpush1.msra.mxu0 %v1575
      %1625 = vmatprep.subr.mxu0 0.0
      %1626 = vmatpush1.msra.mxu0 %v1574
      %1627 = vmatprep.subr.mxu0 0.0
      %1628 = vmatpush1.msra.mxu0 %v1573
      %1629 = vmatprep.subr.mxu0 0.0
      %1630 = vmatpush2.msra.mxu0 0.0
      %1631 = vmatprep.subr.mxu0 0.0
      %1632 = vmatpush2.msra.mxu0 0.0
      %1633 = vmatprep.subr.mxu0 0.0
      %1634 = vmatpush2.msra.mxu0 0.0
      %1635 = vmatprep.subr.mxu0 0.0
      %1636 = vmatpush2.msra.mxu0 0.0
      %1637 = vmatprep.subr.mxu0 0.0
      %1638 = vmatpush2.msra.mxu0 0.0
      %1639 = vmatprep.subr.mxu0 0.0
      %1640 = vmatpush2.msra.mxu0 0.0
      %1641 = vmatprep.subr.mxu0 0.0
      %1642 = vmatpush2.msra.mxu0 0.0
      %1643 = vmatprep.subr.mxu0 0.0
      %1644 = vmatpush2.msra.mxu0 0.0
      %1645 = vmatprep.subr.mxu0 0.0
      %1646 = vmatpush2.msra.mxu0 0.0
      %1647 = vmatprep.subr.mxu0 0.0
      %1648 = vmatpush2.msra.mxu0 0.0
      %1649 = vmatprep.subr.mxu0 0.0
      %1650 = vmatpush2.msra.mxu0 0.0
      %1651 = vmatprep.subr.mxu0 0.0
      %1652 = vmatpush2.msra.mxu0 0.0
      %1653 = vmatprep.subr.mxu0 0.0
      %1654 = vmatpush2.msra.mxu0 0.0
      %1655 = vmatprep.subr.mxu0 0.0
      %1656 = vmatpush2.msra.mxu0 0.0
      %1657 = vmatprep.subr.mxu0 0.0
      %1658 = vmatpush2.msra.mxu0 0.0
      %1659 = vmatprep.subr.mxu0 0.0
      %1660 = vmatpush2.msra.mxu0 0.0
      %1661 = vmatprep.mubr.f32.mxu0 0.0
      %1662 = vmatmul.mubr.f32.gmra.mxu0 %v1592
      %v1663 = vpop.f32.mrf.mxu0
      %v1664 = vadd.f32 0.0, %v1663
      %v1665 = vpop.f32.mrf.mxu0
      %1666 = vmatprep.mubr.f32.mxu0 0.0
      %1667 = vmatmul.mubr.f32.gmra.mxu0 %v1595
      %v1668 = vpop.f32.mrf.mxu0
      %v1669 = vadd.f32 0.0, %v1668
      %v1670 = vpop.f32.mrf.mxu0
      %1671 = vdwg.mxu0
      %s1672 = scalar_lea.vmem %s5, 16
      %v1673 = vld [vmem:[%s1672] sm:$0xff]
      %v1674 = vld [vmem:[%s1672 + $0x8] sm:$0xff]
      %v1676 = vsel %vm1418, %v1673, 0
      %v1679 = vsel %vm1418, %v1674, 0
      %1681 = vmatprep.subr.mxu0 0.0
      %1682 = vmatpush1.msra.mxu0 0.0
      %1683 = vmatprep.subr.mxu0 0.0
      %1684 = vmatpush1.msra.mxu0 0.0
      %1685 = vmatprep.subr.mxu0 0.0
      %1686 = vmatpush1.msra.mxu0 0.0
      %1687 = vmatprep.subr.mxu0 0.0
      %1688 = vmatpush1.msra.mxu0 0.0
      %1689 = vmatprep.subr.mxu0 0.0
      %1690 = vmatpush1.msra.mxu0 0.0
      %1691 = vmatprep.subr.mxu0 0.0
      %1692 = vmatpush1.msra.mxu0 0.0
      %1693 = vmatprep.subr.mxu0 0.0
      %1694 = vmatpush1.msra.mxu0 0.0
      %1695 = vmatprep.subr.mxu0 0.0
      %1696 = vmatpush1.msra.mxu0 0.0
      %1697 = vmatprep.subr.mxu0 0.0
      %1698 = vmatpush1.msra.mxu0 %v1580
      %1699 = vmatprep.subr.mxu0 0.0
      %1700 = vmatpush1.msra.mxu0 %v1579
      %1701 = vmatprep.subr.mxu0 0.0
      %1702 = vmatpush1.msra.mxu0 %v1578
      %1703 = vmatprep.subr.mxu0 0.0
      %1704 = vmatpush1.msra.mxu0 %v1577
      %1705 = vmatprep.subr.mxu0 0.0
      %1706 = vmatpush1.msra.mxu0 %v1576
      %1707 = vmatprep.subr.mxu0 0.0
      %1708 = vmatpush1.msra.mxu0 %v1575
      %1709 = vmatprep.subr.mxu0 0.0
      %1710 = vmatpush1.msra.mxu0 %v1574
      %1711 = vmatprep.subr.mxu0 0.0
      %1712 = vmatpush1.msra.mxu0 %v1573
      %1713 = vmatprep.subr.mxu0 0.0
      %1714 = vmatpush2.msra.mxu0 0.0
      %1715 = vmatprep.subr.mxu0 0.0
      %1716 = vmatpush2.msra.mxu0 0.0
      %1717 = vmatprep.subr.mxu0 0.0
      %1718 = vmatpush2.msra.mxu0 0.0
      %1719 = vmatprep.subr.mxu0 0.0
      %1720 = vmatpush2.msra.mxu0 0.0
      %1721 = vmatprep.subr.mxu0 0.0
      %1722 = vmatpush2.msra.mxu0 0.0
      %1723 = vmatprep.subr.mxu0 0.0
      %1724 = vmatpush2.msra.mxu0 0.0
      %1725 = vmatprep.subr.mxu0 0.0
      %1726 = vmatpush2.msra.mxu0 0.0
      %1727 = vmatprep.subr.mxu0 0.0
      %1728 = vmatpush2.msra.mxu0 0.0
      %1729 = vmatprep.subr.mxu0 0.0
      %1730 = vmatpush2.msra.mxu0 0.0
      %1731 = vmatprep.subr.mxu0 0.0
      %1732 = vmatpush2.msra.mxu0 0.0
      %1733 = vmatprep.subr.mxu0 0.0
      %1734 = vmatpush2.msra.mxu0 0.0
      %1735 = vmatprep.subr.mxu0 0.0
      %1736 = vmatpush2.msra.mxu0 0.0
      %1737 = vmatprep.subr.mxu0 0.0
      %1738 = vmatpush2.msra.mxu0 0.0
      %1739 = vmatprep.subr.mxu0 0.0
      %1740 = vmatpush2.msra.mxu0 0.0
      %1741 = vmatprep.subr.mxu0 0.0
      %1742 = vmatpush2.msra.mxu0 0.0
      %1743 = vmatprep.subr.mxu0 0.0
      %1744 = vmatpush2.msra.mxu0 0.0
      %1745 = vmatprep.mubr.f32.mxu0 0.0
      %1746 = vmatmul.mubr.f32.gmra.mxu0 %v1676
      %v1747 = vpop.f32.mrf.mxu0
      %v1748 = vadd.f32 0.0, %v1747
      %v1749 = vpop.f32.mrf.mxu0
      %1750 = vmatprep.mubr.f32.mxu0 0.0
      %1751 = vmatmul.mubr.f32.gmra.mxu0 %v1679
      %v1752 = vpop.f32.mrf.mxu0
      %v1753 = vadd.f32 0.0, %v1752
      %v1754 = vpop.f32.mrf.mxu0
      %1755 = vdwg.mxu0
      %v1756 = vmax.f32 %v1664, %v1748
      %v1757 = vmax.f32 %v1669, %v1753
      %s1758 = scalar_lea.vmem %s5, 32
      %v1759 = vld [vmem:[%s1758] sm:$0xff]
      %v1760 = vld [vmem:[%s1758 + $0x8] sm:$0xff]
      %v1762 = vsel %vm1418, %v1759, 0
      %v1765 = vsel %vm1418, %v1760, 0
      %1767 = vmatprep.subr.mxu0 0.0
      %1768 = vmatpush1.msra.mxu0 0.0
      %1769 = vmatprep.subr.mxu0 0.0
      %1770 = vmatpush1.msra.mxu0 0.0
      %1771 = vmatprep.subr.mxu0 0.0
      %1772 = vmatpush1.msra.mxu0 0.0
      %1773 = vmatprep.subr.mxu0 0.0
      %1774 = vmatpush1.msra.mxu0 0.0
      %1775 = vmatprep.subr.mxu0 0.0
      %1776 = vmatpush1.msra.mxu0 0.0
      %1777 = vmatprep.subr.mxu0 0.0
      %1778 = vmatpush1.msra.mxu0 0.0
      %1779 = vmatprep.subr.mxu0 0.0
      %1780 = vmatpush1.msra.mxu0 0.0
      %1781 = vmatprep.subr.mxu0 0.0
      %1782 = vmatpush1.msra.mxu0 0.0
      %1783 = vmatprep.subr.mxu0 0.0
      %1784 = vmatpush1.msra.mxu0 %v1580
      %1785 = vmatprep.subr.mxu0 0.0
      %1786 = vmatpush1.msra.mxu0 %v1579
      %1787 = vmatprep.subr.mxu0 0.0
      %1788 = vmatpush1.msra.mxu0 %v1578
      %1789 = vmatprep.subr.mxu0 0.0
      %1790 = vmatpush1.msra.mxu0 %v1577
      %1791 = vmatprep.subr.mxu0 0.0
      %1792 = vmatpush1.msra.mxu0 %v1576
      %1793 = vmatprep.subr.mxu0 0.0
      %1794 = vmatpush1.msra.mxu0 %v1575
      %1795 = vmatprep.subr.mxu0 0.0
      %1796 = vmatpush1.msra.mxu0 %v1574
      %1797 = vmatprep.subr.mxu0 0.0
      %1798 = vmatpush1.msra.mxu0 %v1573
      %1799 = vmatprep.subr.mxu0 0.0
      %1800 = vmatpush2.msra.mxu0 0.0
      %1801 = vmatprep.subr.mxu0 0.0
      %1802 = vmatpush2.msra.mxu0 0.0
      %1803 = vmatprep.subr.mxu0 0.0
      %1804 = vmatpush2.msra.mxu0 0.0
      %1805 = vmatprep.subr.mxu0 0.0
      %1806 = vmatpush2.msra.mxu0 0.0
      %1807 = vmatprep.subr.mxu0 0.0
      %1808 = vmatpush2.msra.mxu0 0.0
      %1809 = vmatprep.subr.mxu0 0.0
      %1810 = vmatpush2.msra.mxu0 0.0
      %1811 = vmatprep.subr.mxu0 0.0
      %1812 = vmatpush2.msra.mxu0 0.0
      %1813 = vmatprep.subr.mxu0 0.0
      %1814 = vmatpush2.msra.mxu0 0.0
      %1815 = vmatprep.subr.mxu0 0.0
      %1816 = vmatpush2.msra.mxu0 0.0
      %1817 = vmatprep.subr.mxu0 0.0
      %1818 = vmatpush2.msra.mxu0 0.0
      %1819 = vmatprep.subr.mxu0 0.0
      %1820 = vmatpush2.msra.mxu0 0.0
      %1821 = vmatprep.subr.mxu0 0.0
      %1822 = vmatpush2.msra.mxu0 0.0
      %1823 = vmatprep.subr.mxu0 0.0
      %1824 = vmatpush2.msra.mxu0 0.0
      %1825 = vmatprep.subr.mxu0 0.0
      %1826 = vmatpush2.msra.mxu0 0.0
      %1827 = vmatprep.subr.mxu0 0.0
      %1828 = vmatpush2.msra.mxu0 0.0
      %1829 = vmatprep.subr.mxu0 0.0
      %1830 = vmatpush2.msra.mxu0 0.0
      %1831 = vmatprep.mubr.f32.mxu0 0.0
      %1832 = vmatmul.mubr.f32.gmra.mxu0 %v1762
      %v1833 = vpop.f32.mrf.mxu0
      %v1834 = vadd.f32 0.0, %v1833
      %v1835 = vpop.f32.mrf.mxu0
      %1836 = vmatprep.mubr.f32.mxu0 0.0
      %1837 = vmatmul.mubr.f32.gmra.mxu0 %v1765
      %v1838 = vpop.f32.mrf.mxu0
      %v1839 = vadd.f32 0.0, %v1838
      %v1840 = vpop.f32.mrf.mxu0
      %1841 = vdwg.mxu0
      %v1842 = vmax.f32 %v1756, %v1834
      %v1843 = vmax.f32 %v1757, %v1839
      %s1844 = scalar_lea.vmem %s5, 48
      %v1845 = vld [vmem:[%s1844] sm:$0xff]
      %v1846 = vld [vmem:[%s1844 + $0x8] sm:$0xff]
      %v1848 = vsel %vm1418, %v1845, 0
      %v1851 = vsel %vm1418, %v1846, 0
      %1853 = vmatprep.subr.mxu0 0.0
      %1854 = vmatpush1.msra.mxu0 0.0
      %1855 = vmatprep.subr.mxu0 0.0
      %1856 = vmatpush1.msra.mxu0 0.0
      %1857 = vmatprep.subr.mxu0 0.0
      %1858 = vmatpush1.msra.mxu0 0.0
      %1859 = vmatprep.subr.mxu0 0.0
      %1860 = vmatpush1.msra.mxu0 0.0
      %1861 = vmatprep.subr.mxu0 0.0
      %1862 = vmatpush1.msra.mxu0 0.0
      %1863 = vmatprep.subr.mxu0 0.0
      %1864 = vmatpush1.msra.mxu0 0.0
      %1865 = vmatprep.subr.mxu0 0.0
      %1866 = vmatpush1.msra.mxu0 0.0
      %1867 = vmatprep.subr.mxu0 0.0
      %1868 = vmatpush1.msra.mxu0 0.0
      %1869 = vmatprep.subr.mxu0 0.0
      %1870 = vmatpush1.msra.mxu0 %v1580
      %1871 = vmatprep.subr.mxu0 0.0
      %1872 = vmatpush1.msra.mxu0 %v1579
      %1873 = vmatprep.subr.mxu0 0.0
      %1874 = vmatpush1.msra.mxu0 %v1578
      %1875 = vmatprep.subr.mxu0 0.0
      %1876 = vmatpush1.msra.mxu0 %v1577
      %1877 = vmatprep.subr.mxu0 0.0
      %1878 = vmatpush1.msra.mxu0 %v1576
      %1879 = vmatprep.subr.mxu0 0.0
      %1880 = vmatpush1.msra.mxu0 %v1575
      %1881 = vmatprep.subr.mxu0 0.0
      %1882 = vmatpush1.msra.mxu0 %v1574
      %1883 = vmatprep.subr.mxu0 0.0
      %1884 = vmatpush1.msra.mxu0 %v1573
      %1885 = vmatprep.subr.mxu0 0.0
      %1886 = vmatpush2.msra.mxu0 0.0
      %1887 = vmatprep.subr.mxu0 0.0
      %1888 = vmatpush2.msra.mxu0 0.0
      %1889 = vmatprep.subr.mxu0 0.0
      %1890 = vmatpush2.msra.mxu0 0.0
      %1891 = vmatprep.subr.mxu0 0.0
      %1892 = vmatpush2.msra.mxu0 0.0
      %1893 = vmatprep.subr.mxu0 0.0
      %1894 = vmatpush2.msra.mxu0 0.0
      %1895 = vmatprep.subr.mxu0 0.0
      %1896 = vmatpush2.msra.mxu0 0.0
      %1897 = vmatprep.subr.mxu0 0.0
      %1898 = vmatpush2.msra.mxu0 0.0
      %1899 = vmatprep.subr.mxu0 0.0
      %1900 = vmatpush2.msra.mxu0 0.0
      %1901 = vmatprep.subr.mxu0 0.0
      %1902 = vmatpush2.msra.mxu0 0.0
      %1903 = vmatprep.subr.mxu0 0.0
      %1904 = vmatpush2.msra.mxu0 0.0
      %1905 = vmatprep.subr.mxu0 0.0
      %1906 = vmatpush2.msra.mxu0 0.0
      %1907 = vmatprep.subr.mxu0 0.0
      %1908 = vmatpush2.msra.mxu0 0.0
      %1909 = vmatprep.subr.mxu0 0.0
      %1910 = vmatpush2.msra.mxu0 0.0
      %1911 = vmatprep.subr.mxu0 0.0
      %1912 = vmatpush2.msra.mxu0 0.0
      %1913 = vmatprep.subr.mxu0 0.0
      %1914 = vmatpush2.msra.mxu0 0.0
      %1915 = vmatprep.subr.mxu0 0.0
      %1916 = vmatpush2.msra.mxu0 0.0
      %1917 = vmatprep.mubr.f32.mxu0 0.0
      %1918 = vmatmul.mubr.f32.gmra.mxu0 %v1848
      %v1919 = vpop.f32.mrf.mxu0
      %v1920 = vadd.f32 0.0, %v1919
      %v1921 = vpop.f32.mrf.mxu0
      %1922 = vmatprep.mubr.f32.mxu0 0.0
      %1923 = vmatmul.mubr.f32.gmra.mxu0 %v1851
      %v1924 = vpop.f32.mrf.mxu0
      %v1925 = vadd.f32 0.0, %v1924
      %v1926 = vpop.f32.mrf.mxu0
      %1927 = vdwg.mxu0
      %v1928 = vmax.f32 %v1842, %v1920
      %v1929 = vmax.f32 %v1843, %v1925
      %1930 = vst.msk [vmem:[%s291] sm:$0xff] %vm802, %v1928
      %1931 = vst.msk [vmem:[%s291 + $0x8] sm:$0xff] %vm802, %v1929
      %p1932 = scmp.lt.s32.totalorder %s19, 1
      %s1933 = scalar_select %p1932, %s19, 1
      %s1934 = smul.addr %s1933, 8
      %s1935 = smul.addr %s1934, 8
      %s1936 = scalar_lea.vmem %s6, %s1935
      %p1937 = scmp.lt.s32.totalorder %s19, 1
      %s1938 = scalar_select %p1937, %s19, 1
      %s1939 = smul.addr %s1938, 2
      %s1940 = smul.addr %s1939, 8
      %s1941 = scalar_lea.vmem %s7, %s1940
      // Predicated region
      $region45: #{encoder_forward.4} parent=43 // pred_check
        %p1942 = pneg %p168
      $region46: #{encoder_forward.4} parent=43 // pred_check_branch
        %1944 = sbr.rel (%p1942) target = $region48
      $region47: #{encoder_forward.4} parent=43 // pred_region
        _
      $region48: #{encoder_forward.4} parent=43 // pred_fallthru
        _
      // Predicated region
      $region49: #{encoder_forward.4} parent=43 // pred_check
        %p1945 = pneg %p194
      $region50: #{encoder_forward.4} parent=43 // pred_check_branch
        %1947 = sbr.rel (%p1945) target = $region52
      $region51: #{encoder_forward.4} parent=43 // pred_region
        _
      $region52: #{encoder_forward.4} parent=43 // pred_fallthru
        _
    $region44: #{encoder_forward.4} parent=5 // pred_fallthru
      _
    %p1948 = scmp.le.s32.totalorder 2, %s14
    // Predicated region
    $region53: #{encoder_forward.4} parent=5 // pred_check
      %p1949 = pneg %p1948
    $region54: #{encoder_forward.4} parent=5 // pred_check_branch
      %1951 = sbr.rel (%p1949) target = $region56
    $region55: #{encoder_forward.4} parent=5 // pred_region
      %s1952 = ssub.s32 %s14, 2
      // Predicated region
      $region57: #{encoder_forward.4} parent=55 // pred_check
        %p1953 = pneg %p174
      $region58: #{encoder_forward.4} parent=55 // pred_check_branch
        %1955 = sbr.rel (%p1953) target = $region60
      $region59: #{encoder_forward.4} parent=55 // pred_region
        %p1956 = scmp.lt.s32.totalorder %s20, 1
        %s1957 = scalar_select %p1956, %s20, 1
        %s1958 = smul.addr %s1957, 8
        %s1959 = smul.addr %s1958, 8
        %s1960 = scalar_lea.vmem %s6, %s1959
      $region60: #{encoder_forward.4} parent=55 // pred_fallthru
        _
      // Predicated region
      $region61: #{encoder_forward.4} parent=55 // pred_check
        %p1961 = pneg %p200
      $region62: #{encoder_forward.4} parent=55 // pred_check_branch
        %1963 = sbr.rel (%p1961) target = $region64
      $region63: #{encoder_forward.4} parent=55 // pred_region
        %p1964 = scmp.lt.s32.totalorder %s20, 1
        %s1965 = scalar_select %p1964, %s20, 1
        %s1966 = smul.addr %s1965, 2
        %s1967 = smul.addr %s1966, 8
        %s1968 = scalar_lea.vmem %s7, %s1967
      $region64: #{encoder_forward.4} parent=55 // pred_fallthru
        _
    $region56: #{encoder_forward.4} parent=5 // pred_fallthru
      _
  $region6: #{encoder_forward.4} parent=0 // loop_footer
    %s18 = sadd.s32 1, %s14
  $region7: #{encoder_forward.4} parent=0 // loop_footer_branch
    %13 = sbr.rel target = $region3
  $region8: #{encoder_forward.4} parent=0 // loop_exit
    _

</llo_original>
